<compile_context>
chip_gen: v6e
topology: v6e:2x2x1
jax: 0.10.0
libtpu: 0.0.40
codegen_flags: <defaults>
</compile_context>

<pallas_src>
import jax
import jax.numpy as jnp
from jax import lax
from jax.experimental import pallas as pl
from jax.experimental.pallas import tpu as pltpu

SELU_ALPHA = 1.6732632423543772
SELU_SCALE = 1.0507009873554805


def _selu(x):
    # Clamp the exp argument so the (unselected) positive branch never overflows.
    return SELU_SCALE * jnp.where(
        x > 0, x, SELU_ALPHA * (jnp.exp(jnp.minimum(x, 0.0)) - 1.0))


# ---------------------------------------------------------------------------
# Pallas kernel
# ---------------------------------------------------------------------------
def encoder_rnn_kernel(gi1_ref, h1_0_ref, h2_0_ref,
                       w_hh1_ref, w_hh2_ref,
                       w_ih2_ref, b2_ref, b_hn1_ref, b_hn2_ref,
                       out2_ref, h1f_ref, h2f_ref):
    BP, G = h1_0_ref.shape
    S = out2_ref.shape[0] // BP

    # ---- hoisted, loop-invariant values (read refs / broadcast once) ----
    w_hh1 = w_hh1_ref[...]                                        # (G, 3G)
    w_hh2 = w_hh2_ref[...]                                        # (G, 3G)
    w_ih2 = w_ih2_ref[...]                                        # (G, 3G)
    wdt = w_hh1.dtype                                             # f32 (or bf16 on v6e/v7x)
    b2 = jnp.broadcast_to(b2_ref[...], (BP, 3 * G))               # (BP, 3G)
    b_hn1 = jnp.broadcast_to(b_hn1_ref[...], (BP, G))             # (BP, G)
    b_hn2 = jnp.broadcast_to(b_hn2_ref[...], (BP, G))             # (BP, G)

    h1 = h1_0_ref[...]                                            # (BP, G)
    h2 = h2_0_ref[...]                                            # (BP, G)

    # step-0 hidden->hidden projections (pipeline carries)
    gh1 = jnp.dot(h1.astype(wdt), w_hh1, preferred_element_type=jnp.float32)
    gh2 = jnp.dot(h2.astype(wdt), w_hh2, preferred_element_type=jnp.float32)

    # S is small and static -> fully unrolled serial recurrence with static,
    # tile-aligned slices and software-pipelined next-step gh matmuls.
    # TODO(synk): for long sequences switch to a time-blocked grid (hidden
    # carried in scratch) instead of keeping the whole sequence in VMEM.
    for t in range(S):
        row = t * BP
        gi1 = gi1_ref[pl.ds(row, BP), :]                          # (BP, 3G) precomputed

        # ----- layer 1 gates (r/z biases pre-folded into gi1) -----
        r1 = jax.nn.sigmoid(gi1[:, 0:G] + gh1[:, 0:G])
        z1 = jax.nn.sigmoid(gi1[:, G:2 * G] + gh1[:, G:2 * G])
        n1 = jnp.tanh(gi1[:, 2 * G:3 * G] + r1 * (gh1[:, 2 * G:3 * G] + b_hn1))
        h1 = (1.0 - z1) * n1 + z1 * h1

        # issue next-step layer-1 hidden projection now: overlaps the MXU pass
        # with this step's layer-2 gate (EUP/VPU) work.
        if t + 1 < S:
            gh1 = jnp.dot(h1.astype(wdt), w_hh1,
                          preferred_element_type=jnp.float32)

        # ----- layer 2: input projection + gates -----
        gi2 = jnp.dot(h1.astype(wdt), w_ih2,
                      preferred_element_type=jnp.float32) + b2    # (BP, 3G)
        r2 = jax.nn.sigmoid(gi2[:, 0:G] + gh2[:, 0:G])
        z2 = jax.nn.sigmoid(gi2[:, G:2 * G] + gh2[:, G:2 * G])
        n2 = jnp.tanh(gi2[:, 2 * G:3 * G] + r2 * (gh2[:, 2 * G:3 * G] + b_hn2))
        h2 = (1.0 - z2) * n2 + z2 * h2

        # issue next-step layer-2 hidden projection (overlaps the out2 store
        # and the next step's layer-1 gate math).
        if t + 1 < S:
            gh2 = jnp.dot(h2.astype(wdt), w_hh2,
                          preferred_element_type=jnp.float32)

        out2_ref[pl.ds(row, BP), :] = h2                          # aligned, lane-dense store

    # final hidden states written once, after the loop
    h1f_ref[...] = h1
    h2f_ref[...] = h2


# ---------------------------------------------------------------------------
# Parameter preparation (done ONCE, not per forward step)
# ---------------------------------------------------------------------------
def _pad_gate_mat(w, H, G):
    """(H, 3H) gate-blocked [r,z,n] -> (G, 3G) with gate g at lane offset g*G."""
    out = jnp.zeros((G, 3 * G), w.dtype)
    for g in range(3):
        out = out.at[:H, g * G:g * G + H].set(w[:, g * H:(g + 1) * H])
    return out


def _pad_gate_vec(b, H, G):
    """(1, 3H) -> (1, 3G) with gate g at lane offset g*G."""
    out = jnp.zeros((1, 3 * G), b.dtype)
    for g in range(3):
        out = out.at[:, g * G:g * G + H].set(b[:, g * H:(g + 1) * H])
    return out


def _pad_vec(b, H, G):
    """(1, H) -> (1, G)."""
    return jnp.zeros((1, G), b.dtype).at[:, :H].set(b)


def prepare_encoder_params(params, weights_dtype=jnp.float32):
    """Pad / fuse weights for the kernel layout.

    weights_dtype: jnp.float32 (default, exact) or jnp.bfloat16 (v6e/v7x MXU
    fast path; relax verification tolerance to ~1e-2 if used).
    """
    H = params["embedding"].shape[1]
    G = max(128, ((H + 127) // 128) * 128)

    emb = params["embedding"]
    emb_p = jnp.zeros((emb.shape[0], G), emb.dtype).at[:, :H].set(emb)

    def fold_bias(b_ih, b_hh):
        # r,z biases summed (they are only ever added together); n keeps b_ih only.
        r = b_ih[:, 0:H] + b_hh[:, 0:H]
        z = b_ih[:, H:2 * H] + b_hh[:, H:2 * H]
        n = b_ih[:, 2 * H:3 * H]
        return jnp.concatenate([r, z, n], axis=1)

    # ---- layer-1 input projection folded into a lookup table ----
    # selu is elementwise over embedding rows, so
    #   selu(emb[tokens]) @ W_ih1 + b == (selu(emb) @ W_ih1 + b)[tokens]
    w_ih1_p = _pad_gate_mat(params["w_ih1"], H, G)
    b1_p = _pad_gate_vec(fold_bias(params["b_ih1"], params["b_hh1"]), H, G)
    gi1_table = (jnp.dot(_selu(emb_p), w_ih1_p,
                         preferred_element_type=jnp.float32) + b1_p)  # (VOC, 3G)

    return {
        "hidden_size": H,
        "padded_hidden": G,
        "gi1_table": gi1_table.astype(jnp.float32),
        "w_hh1_p": _pad_gate_mat(params["w_hh1"], H, G).astype(weights_dtype),
        "w_hh2_p": _pad_gate_mat(params["w_hh2"], H, G).astype(weights_dtype),
        "w_ih2_p": _pad_gate_mat(params["w_ih2"], H, G).astype(weights_dtype),
        "b2_p": _pad_gate_vec(fold_bias(params["b_ih2"], params["b_hh2"]), H, G),
        "b_hn1_p": _pad_vec(params["b_hh1"][:, 2 * H:3 * H], H, G),
        "b_hn2_p": _pad_vec(params["b_hh2"][:, 2 * H:3 * H], H, G),
    }


# ---------------------------------------------------------------------------
# Forward wrapper
# ---------------------------------------------------------------------------
def encoder_rnn_forward(tokens, hidden1, hidden2, prep):
    """tokens: (S, B) int32; hidden1/hidden2: (1, B, H) f32.  Returns (hidden1, hidden2, output2)."""
    S, B = tokens.shape
    H = prep["hidden_size"]
    G = prep["padded_hidden"]
    BP = ((B + 7) // 8) * 8                       # batch padded to 8 sublanes

    # glue: embedding gather is now a gi1-table gather (data-dependent row gather)
    gi1 = prep["gi1_table"][tokens]               # (S, B, 3G) -- SELU + W_ih1 + bias prefolded
    if BP != B:
        gi1 = jnp.pad(gi1, ((0, 0), (0, BP - B), (0, 0)))
    gi1_flat = gi1.reshape(S * BP, 3 * G)

    h1_0 = jnp.zeros((BP, G), jnp.float32).at[:B, :H].set(hidden1[0])
    h2_0 = jnp.zeros((BP, G), jnp.float32).at[:B, :H].set(hidden2[0])

    vmem = pl.BlockSpec(memory_space=pltpu.MemorySpace.VMEM)

    # advisory cost hint for XLA scheduling around the custom call
    w_itemsize = jnp.dtype(prep["w_hh1_p"].dtype).itemsize
    flops = 18 * S * BP * G * G + 12 * BP * G * G            # 3 matmuls/step + prologue gh1/gh2
    transcendentals = 6 * S * BP * G                          # 4 sigmoid + 2 tanh per elem/step
    bytes_accessed = (gi1_flat.size * 4 + S * BP * G * 4      # gi1 in, out2 out
                      + 3 * G * 3 * G * w_itemsize            # W_hh1, W_hh2, W_ih2
                      + 4 * BP * G * 4 + 7 * G * 4)           # hiddens in/out, biases
    cost = pl.CostEstimate(flops=flops, transcendentals=transcendentals,
                           bytes_accessed=bytes_accessed)

    # NOTE: total VMEM footprint at these shapes is ~1 MiB, far under every
    # generation's scoped default; set pltpu.CompilerParams(vmem_limit_bytes=...)
    # explicitly only when scaling H/S toward v7x's 64 MiB physical VMEM.
    out2_p, h1f_p, h2f_p = pl.pallas_call(
        encoder_rnn_kernel,
        out_shape=(
            jax.ShapeDtypeStruct((S * BP, G), jnp.float32),   # out2 (padded)
            jax.ShapeDtypeStruct((BP, G), jnp.float32),       # final hidden1 (padded)
            jax.ShapeDtypeStruct((BP, G), jnp.float32),       # final hidden2 (padded)
        ),
        in_specs=[vmem] * 9,
        out_specs=(vmem, vmem, vmem),
        # initial hidden states donate their buffers to the final hidden outputs
        input_output_aliases={1: 1, 2: 2},
        cost_estimate=cost,
    )(gi1_flat, h1_0, h2_0,
      prep["w_hh1_p"], prep["w_hh2_p"],
      prep["w_ih2_p"], prep["b2_p"], prep["b_hn1_p"], prep["b_hn2_p"])

    # padded batch rows / lanes are junk by design -- slice them away here.
    out2 = out2_p.reshape(S, BP, G)[:, :B, :H]
    return h1f_p[:B, :H][None], h2f_p[:B, :H][None], out2


# ---------------------------------------------------------------------------
# Pure-JAX reference (mirrors the PyTorch module semantics, unpadded)
# ---------------------------------------------------------------------------
def _gru_cell(x, h, w_ih, w_hh, b_ih, b_hh):
    """One PyTorch-semantics GRU cell step. x,h: (B,H); w_*: (H,3H); b_*: (1,3H)."""
    H = h.shape[-1]
    gi = jnp.dot(x, w_ih, preferred_element_type=jnp.float32) + b_ih
    gh = jnp.dot(h, w_hh, preferred_element_type=jnp.float32) + b_hh
    i_r, i_z, i_n = gi[:, 0:H], gi[:, H:2 * H], gi[:, 2 * H:3 * H]
    h_r, h_z, h_n = gh[:, 0:H], gh[:, H:2 * H], gh[:, 2 * H:3 * H]
    r = jax.nn.sigmoid(i_r + h_r)
    z = jax.nn.sigmoid(i_z + h_z)
    n = jnp.tanh(i_n + r * h_n)
    return (1.0 - z) * n + z * h


def reference_forward(tokens, hidden1, hidden2, params):
    x = _selu(params["embedding"][tokens])

    def layer(xs, h0, w_ih, w_hh, b_ih, b_hh):
        def step(h, xt):
            h_new = _gru_cell(xt, h, w_ih, w_hh, b_ih, b_hh)
            return h_new, h_new
        h_last, ys = lax.scan(step, h0, xs)
        return ys, h_last

    out1, h1 = layer(x, hidden1[0], params["w_ih1"], params["w_hh1"],
                     params["b_ih1"], params["b_hh1"])
    out2, h2 = layer(out1, hidden2[0], params["w_ih2"], params["w_hh2"],
                     params["b_ih2"], params["b_hh2"])
    return h1[None], h2[None], out2


def init_params(key, voc_size, hidden_size):
    ks = jax.random.split(key, 9)
    bound = 1.0 / jnp.sqrt(hidden_size)
    u = lambda k, shape: jax.random.uniform(k, shape, jnp.float32, -bound, bound)
    return {
        "embedding": jax.random.normal(ks[0], (voc_size, hidden_size), jnp.float32),
        # stored pre-transposed: (H, 3H), gate order [r, z, n]
        "w_ih1": u(ks[1], (hidden_size, 3 * hidden_size)),
        "w_hh1": u(ks[2], (hidden_size, 3 * hidden_size)),
        "b_ih1": u(ks[3], (1, 3 * hidden_size)),
        "b_hh1": u(ks[4], (1, 3 * hidden_size)),
        "w_ih2": u(ks[5], (hidden_size, 3 * hidden_size)),
        "w_hh2": u(ks[6], (hidden_size, 3 * hidden_size)),
        "b_ih2": u(ks[7], (1, 3 * hidden_size)),
        "b_hh2": u(ks[8], (1, 3 * hidden_size)),
    }


if __name__ == "__main__":
    SEQ, BATCH, HIDDEN, VOC = 8, 2, 32, 50

    key = jax.random.PRNGKey(0)
    k_tok, k_par = jax.random.split(key)

    params = init_params(k_par, VOC, HIDDEN)
    # one-time weight padding / fusion (pass weights_dtype=jnp.bfloat16 on
    # v6e/v7x for the bf16 MXU fast path; then relax tolerance to ~1e-2)
    prep = prepare_encoder_params(params, weights_dtype=jnp.float32)

    tokens = jax.random.randint(k_tok, (SEQ, BATCH), 0, VOC, dtype=jnp.int32)
    hidden1 = jnp.zeros((1, BATCH, HIDDEN), jnp.float32)   # initHidden
    hidden2 = jnp.zeros((1, BATCH, HIDDEN), jnp.float32)

    h1, h2, out2 = encoder_rnn_forward(tokens, hidden1, hidden2, prep)
    jax.block_until_ready((h1, h2, out2))

    # sanity check against the pure-JAX reference
    h1_r, h2_r, out2_r = reference_forward(tokens, hidden1, hidden2, params)
    assert h1.shape == h1_r.shape and h2.shape == h2_r.shape and out2.shape == out2_r.shape
    assert jnp.allclose(h1, h1_r, atol=1e-5, rtol=1e-5)
    assert jnp.allclose(h2, h2_r, atol=1e-5, rtol=1e-5)
    assert jnp.allclose(out2, out2_r, atol=1e-5, rtol=1e-5)

    print("KERNEL_OK")
</pallas_src>

<mosaic_0001>
module attributes {stable_mosaic.version = 11 : i64} {
  func.func @encoder_rnn_kernel(%arg0: memref<64x384xf32, #tpu.memory_space<vmem>>, %arg1: memref<8x128xf32, #tpu.memory_space<vmem>>, %arg2: memref<8x128xf32, #tpu.memory_space<vmem>>, %arg3: memref<128x384xf32, #tpu.memory_space<vmem>>, %arg4: memref<128x384xf32, #tpu.memory_space<vmem>>, %arg5: memref<128x384xf32, #tpu.memory_space<vmem>>, %arg6: memref<1x384xf32, #tpu.memory_space<vmem>>, %arg7: memref<1x128xf32, #tpu.memory_space<vmem>>, %arg8: memref<1x128xf32, #tpu.memory_space<vmem>>, %arg9: memref<64x128xf32, #tpu.memory_space<vmem>>, %arg10: memref<8x128xf32, #tpu.memory_space<vmem>>, %arg11: memref<8x128xf32, #tpu.memory_space<vmem>>) attributes {dimension_semantics = [], scalar_prefetch = 0 : i64, scratch_operands = 0 : i64, tpu.core_type = #tpu.core_type<tc>} {
    %c0 = arith.constant 0 : index
    %c0_0 = arith.constant 0 : index
    %0 = vector.load %arg3[%c0, %c0_0] : memref<128x384xf32, #tpu.memory_space<vmem>>, vector<128x384xf32>
    %c0_1 = arith.constant 0 : index
    %c0_2 = arith.constant 0 : index
    %1 = vector.load %arg4[%c0_1, %c0_2] : memref<128x384xf32, #tpu.memory_space<vmem>>, vector<128x384xf32>
    %c0_3 = arith.constant 0 : index
    %c0_4 = arith.constant 0 : index
    %2 = vector.load %arg5[%c0_3, %c0_4] : memref<128x384xf32, #tpu.memory_space<vmem>>, vector<128x384xf32>
    %c0_5 = arith.constant 0 : index
    %c0_6 = arith.constant 0 : index
    %3 = vector.load %arg6[%c0_5, %c0_6] : memref<1x384xf32, #tpu.memory_space<vmem>>, vector<1x384xf32>
    %4 = vector.shape_cast %3 : vector<1x384xf32> to vector<1x384xf32>
    %5 = vector.broadcast %4 : vector<1x384xf32> to vector<8x384xf32>
    %c0_7 = arith.constant 0 : index
    %c0_8 = arith.constant 0 : index
    %6 = vector.load %arg7[%c0_7, %c0_8] : memref<1x128xf32, #tpu.memory_space<vmem>>, vector<1x128xf32>
    %7 = vector.shape_cast %6 : vector<1x128xf32> to vector<1x128xf32>
    %8 = vector.broadcast %7 : vector<1x128xf32> to vector<8x128xf32>
    %c0_9 = arith.constant 0 : index
    %c0_10 = arith.constant 0 : index
    %9 = vector.load %arg8[%c0_9, %c0_10] : memref<1x128xf32, #tpu.memory_space<vmem>>, vector<1x128xf32>
    %10 = vector.shape_cast %9 : vector<1x128xf32> to vector<1x128xf32>
    %11 = vector.broadcast %10 : vector<1x128xf32> to vector<8x128xf32>
    %c0_11 = arith.constant 0 : index
    %c0_12 = arith.constant 0 : index
    %12 = vector.load %arg1[%c0_11, %c0_12] : memref<8x128xf32, #tpu.memory_space<vmem>>, vector<8x128xf32>
    %c0_13 = arith.constant 0 : index
    %c0_14 = arith.constant 0 : index
    %13 = vector.load %arg2[%c0_13, %c0_14] : memref<8x128xf32, #tpu.memory_space<vmem>>, vector<8x128xf32>
    %cst = arith.constant dense<0.000000e+00> : vector<8x384xf32>
    %14 = tpu.matmul %12, %0, %cst {dimension_numbers = #tpu.dot_dimension_numbers<[1], [0], [0], [1], [0, 0, 1, 1], [], []>} : vector<8x128xf32>, vector<128x384xf32>, vector<8x384xf32> -> vector<8x384xf32>
    %cst_15 = arith.constant dense<0.000000e+00> : vector<8x384xf32>
    %15 = tpu.matmul %13, %1, %cst_15 {dimension_numbers = #tpu.dot_dimension_numbers<[1], [0], [0], [1], [0, 0, 1, 1], [], []>} : vector<8x128xf32>, vector<128x384xf32>, vector<8x384xf32> -> vector<8x384xf32>
    %c0_16 = arith.constant 0 : index
    %c0_17 = arith.constant 0 : index
    %16 = vector.load %arg0[%c0_16, %c0_17] : memref<64x384xf32, #tpu.memory_space<vmem>>, vector<8x384xf32>
    %17 = vector.extract_strided_slice %16 {offsets = [0, 0], sizes = [8, 128], strides = [1, 1]} : vector<8x384xf32> to vector<8x128xf32>
    %18 = vector.extract_strided_slice %14 {offsets = [0, 0], sizes = [8, 128], strides = [1, 1]} : vector<8x384xf32> to vector<8x128xf32>
    %19 = arith.addf %17, %18 : vector<8x128xf32>
    %20 = arith.negf %19 : vector<8x128xf32>
    %21 = math.exp %20 : vector<8x128xf32>
    %cst_18 = arith.constant 1.000000e+00 : f32
    %22 = vector.broadcast %cst_18 : f32 to vector<8x128xf32>
    %23 = arith.addf %22, %21 : vector<8x128xf32>
    %24 = arith.divf %22, %23 : vector<8x128xf32>
    %25 = vector.extract_strided_slice %16 {offsets = [0, 128], sizes = [8, 128], strides = [1, 1]} : vector<8x384xf32> to vector<8x128xf32>
    %26 = vector.extract_strided_slice %14 {offsets = [0, 128], sizes = [8, 128], strides = [1, 1]} : vector<8x384xf32> to vector<8x128xf32>
    %27 = arith.addf %25, %26 : vector<8x128xf32>
    %28 = arith.negf %27 : vector<8x128xf32>
    %29 = math.exp %28 : vector<8x128xf32>
    %cst_19 = arith.constant 1.000000e+00 : f32
    %30 = vector.broadcast %cst_19 : f32 to vector<8x128xf32>
    %31 = arith.addf %30, %29 : vector<8x128xf32>
    %32 = arith.divf %30, %31 : vector<8x128xf32>
    %33 = vector.extract_strided_slice %16 {offsets = [0, 256], sizes = [8, 128], strides = [1, 1]} : vector<8x384xf32> to vector<8x128xf32>
    %34 = vector.extract_strided_slice %14 {offsets = [0, 256], sizes = [8, 128], strides = [1, 1]} : vector<8x384xf32> to vector<8x128xf32>
    %35 = arith.addf %34, %8 : vector<8x128xf32>
    %36 = arith.mulf %24, %35 : vector<8x128xf32>
    %37 = arith.addf %33, %36 : vector<8x128xf32>
    %38 = math.tanh %37 : vector<8x128xf32>
    %cst_20 = arith.constant 1.000000e+00 : f32
    %39 = vector.broadcast %cst_20 : f32 to vector<8x128xf32>
    %40 = arith.subf %39, %32 : vector<8x128xf32>
    %41 = arith.mulf %40, %38 : vector<8x128xf32>
    %42 = arith.mulf %32, %12 : vector<8x128xf32>
    %43 = arith.addf %41, %42 : vector<8x128xf32>
    %cst_21 = arith.constant dense<0.000000e+00> : vector<8x384xf32>
    %44 = tpu.matmul %43, %0, %cst_21 {dimension_numbers = #tpu.dot_dimension_numbers<[1], [0], [0], [1], [0, 0, 1, 1], [], []>} : vector<8x128xf32>, vector<128x384xf32>, vector<8x384xf32> -> vector<8x384xf32>
    %cst_22 = arith.constant dense<0.000000e+00> : vector<8x384xf32>
    %45 = tpu.matmul %43, %2, %cst_22 {dimension_numbers = #tpu.dot_dimension_numbers<[1], [0], [0], [1], [0, 0, 1, 1], [], []>} : vector<8x128xf32>, vector<128x384xf32>, vector<8x384xf32> -> vector<8x384xf32>
    %46 = arith.addf %45, %5 : vector<8x384xf32>
    %47 = vector.extract_strided_slice %46 {offsets = [0, 0], sizes = [8, 128], strides = [1, 1]} : vector<8x384xf32> to vector<8x128xf32>
    %48 = vector.extract_strided_slice %15 {offsets = [0, 0], sizes = [8, 128], strides = [1, 1]} : vector<8x384xf32> to vector<8x128xf32>
    %49 = arith.addf %47, %48 : vector<8x128xf32>
    %50 = arith.negf %49 : vector<8x128xf32>
    %51 = math.exp %50 : vector<8x128xf32>
    %cst_23 = arith.constant 1.000000e+00 : f32
    %52 = vector.broadcast %cst_23 : f32 to vector<8x128xf32>
    %53 = arith.addf %52, %51 : vector<8x128xf32>
    %54 = arith.divf %52, %53 : vector<8x128xf32>
    %55 = vector.extract_strided_slice %46 {offsets = [0, 128], sizes = [8, 128], strides = [1, 1]} : vector<8x384xf32> to vector<8x128xf32>
    %56 = vector.extract_strided_slice %15 {offsets = [0, 128], sizes = [8, 128], strides = [1, 1]} : vector<8x384xf32> to vector<8x128xf32>
    %57 = arith.addf %55, %56 : vector<8x128xf32>
    %58 = arith.negf %57 : vector<8x128xf32>
    %59 = math.exp %58 : vector<8x128xf32>
    %cst_24 = arith.constant 1.000000e+00 : f32
    %60 = vector.broadcast %cst_24 : f32 to vector<8x128xf32>
    %61 = arith.addf %60, %59 : vector<8x128xf32>
    %62 = arith.divf %60, %61 : vector<8x128xf32>
    %63 = vector.extract_strided_slice %46 {offsets = [0, 256], sizes = [8, 128], strides = [1, 1]} : vector<8x384xf32> to vector<8x128xf32>
    %64 = vector.extract_strided_slice %15 {offsets = [0, 256], sizes = [8, 128], strides = [1, 1]} : vector<8x384xf32> to vector<8x128xf32>
    %65 = arith.addf %64, %11 : vector<8x128xf32>
    %66 = arith.mulf %54, %65 : vector<8x128xf32>
    %67 = arith.addf %63, %66 : vector<8x128xf32>
    %68 = math.tanh %67 : vector<8x128xf32>
    %cst_25 = arith.constant 1.000000e+00 : f32
    %69 = vector.broadcast %cst_25 : f32 to vector<8x128xf32>
    %70 = arith.subf %69, %62 : vector<8x128xf32>
    %71 = arith.mulf %70, %68 : vector<8x128xf32>
    %72 = arith.mulf %62, %13 : vector<8x128xf32>
    %73 = arith.addf %71, %72 : vector<8x128xf32>
    %cst_26 = arith.constant dense<0.000000e+00> : vector<8x384xf32>
    %74 = tpu.matmul %73, %1, %cst_26 {dimension_numbers = #tpu.dot_dimension_numbers<[1], [0], [0], [1], [0, 0, 1, 1], [], []>} : vector<8x128xf32>, vector<128x384xf32>, vector<8x384xf32> -> vector<8x384xf32>
    %c0_27 = arith.constant 0 : index
    %c0_28 = arith.constant 0 : index
    %75 = vector.load %arg9[%c0_27, %c0_28] : memref<64x128xf32, #tpu.memory_space<vmem>>, vector<8x128xf32>
    tpu.vector_store %arg9[%c0_27, %c0_28], %73 {strides = array<i32>} : memref<64x128xf32, #tpu.memory_space<vmem>>, vector<8x128xf32>,
    %c8 = arith.constant 8 : index
    %c0_29 = arith.constant 0 : index
    %76 = vector.load %arg0[%c8, %c0_29] : memref<64x384xf32, #tpu.memory_space<vmem>>, vector<8x384xf32>
    %77 = vector.extract_strided_slice %76 {offsets = [0, 0], sizes = [8, 128], strides = [1, 1]} : vector<8x384xf32> to vector<8x128xf32>
    %78 = vector.extract_strided_slice %44 {offsets = [0, 0], sizes = [8, 128], strides = [1, 1]} : vector<8x384xf32> to vector<8x128xf32>
    %79 = arith.addf %77, %78 : vector<8x128xf32>
    %80 = arith.negf %79 : vector<8x128xf32>
    %81 = math.exp %80 : vector<8x128xf32>
    %cst_30 = arith.constant 1.000000e+00 : f32
    %82 = vector.broadcast %cst_30 : f32 to vector<8x128xf32>
    %83 = arith.addf %82, %81 : vector<8x128xf32>
    %84 = arith.divf %82, %83 : vector<8x128xf32>
    %85 = vector.extract_strided_slice %76 {offsets = [0, 128], sizes = [8, 128], strides = [1, 1]} : vector<8x384xf32> to vector<8x128xf32>
    %86 = vector.extract_strided_slice %44 {offsets = [0, 128], sizes = [8, 128], strides = [1, 1]} : vector<8x384xf32> to vector<8x128xf32>
    %87 = arith.addf %85, %86 : vector<8x128xf32>
    %88 = arith.negf %87 : vector<8x128xf32>
    %89 = math.exp %88 : vector<8x128xf32>
    %cst_31 = arith.constant 1.000000e+00 : f32
    %90 = vector.broadcast %cst_31 : f32 to vector<8x128xf32>
    %91 = arith.addf %90, %89 : vector<8x128xf32>
    %92 = arith.divf %90, %91 : vector<8x128xf32>
    %93 = vector.extract_strided_slice %76 {offsets = [0, 256], sizes = [8, 128], strides = [1, 1]} : vector<8x384xf32> to vector<8x128xf32>
    %94 = vector.extract_strided_slice %44 {offsets = [0, 256], sizes = [8, 128], strides = [1, 1]} : vector<8x384xf32> to vector<8x128xf32>
    %95 = arith.addf %94, %8 : vector<8x128xf32>
    %96 = arith.mulf %84, %95 : vector<8x128xf32>
    %97 = arith.addf %93, %96 : vector<8x128xf32>
    %98 = math.tanh %97 : vector<8x128xf32>
    %cst_32 = arith.constant 1.000000e+00 : f32
    %99 = vector.broadcast %cst_32 : f32 to vector<8x128xf32>
    %100 = arith.subf %99, %92 : vector<8x128xf32>
    %101 = arith.mulf %100, %98 : vector<8x128xf32>
    %102 = arith.mulf %92, %43 : vector<8x128xf32>
    %103 = arith.addf %101, %102 : vector<8x128xf32>
    %cst_33 = arith.constant dense<0.000000e+00> : vector<8x384xf32>
    %104 = tpu.matmul %103, %0, %cst_33 {dimension_numbers = #tpu.dot_dimension_numbers<[1], [0], [0], [1], [0, 0, 1, 1], [], []>} : vector<8x128xf32>, vector<128x384xf32>, vector<8x384xf32> -> vector<8x384xf32>
    %cst_34 = arith.constant dense<0.000000e+00> : vector<8x384xf32>
    %105 = tpu.matmul %103, %2, %cst_34 {dimension_numbers = #tpu.dot_dimension_numbers<[1], [0], [0], [1], [0, 0, 1, 1], [], []>} : vector<8x128xf32>, vector<128x384xf32>, vector<8x384xf32> -> vector<8x384xf32>
    %106 = arith.addf %105, %5 : vector<8x384xf32>
    %107 = vector.extract_strided_slice %106 {offsets = [0, 0], sizes = [8, 128], strides = [1, 1]} : vector<8x384xf32> to vector<8x128xf32>
    %108 = vector.extract_strided_slice %74 {offsets = [0, 0], sizes = [8, 128], strides = [1, 1]} : vector<8x384xf32> to vector<8x128xf32>
    %109 = arith.addf %107, %108 : vector<8x128xf32>
    %110 = arith.negf %109 : vector<8x128xf32>
    %111 = math.exp %110 : vector<8x128xf32>
    %cst_35 = arith.constant 1.000000e+00 : f32
    %112 = vector.broadcast %cst_35 : f32 to vector<8x128xf32>
    %113 = arith.addf %112, %111 : vector<8x128xf32>
    %114 = arith.divf %112, %113 : vector<8x128xf32>
    %115 = vector.extract_strided_slice %106 {offsets = [0, 128], sizes = [8, 128], strides = [1, 1]} : vector<8x384xf32> to vector<8x128xf32>
    %116 = vector.extract_strided_slice %74 {offsets = [0, 128], sizes = [8, 128], strides = [1, 1]} : vector<8x384xf32> to vector<8x128xf32>
    %117 = arith.addf %115, %116 : vector<8x128xf32>
    %118 = arith.negf %117 : vector<8x128xf32>
    %119 = math.exp %118 : vector<8x128xf32>
    %cst_36 = arith.constant 1.000000e+00 : f32
    %120 = vector.broadcast %cst_36 : f32 to vector<8x128xf32>
    %121 = arith.addf %120, %119 : vector<8x128xf32>
    %122 = arith.divf %120, %121 : vector<8x128xf32>
    %123 = vector.extract_strided_slice %106 {offsets = [0, 256], sizes = [8, 128], strides = [1, 1]} : vector<8x384xf32> to vector<8x128xf32>
    %124 = vector.extract_strided_slice %74 {offsets = [0, 256], sizes = [8, 128], strides = [1, 1]} : vector<8x384xf32> to vector<8x128xf32>
    %125 = arith.addf %124, %11 : vector<8x128xf32>
    %126 = arith.mulf %114, %125 : vector<8x128xf32>
    %127 = arith.addf %123, %126 : vector<8x128xf32>
    %128 = math.tanh %127 : vector<8x128xf32>
    %cst_37 = arith.constant 1.000000e+00 : f32
    %129 = vector.broadcast %cst_37 : f32 to vector<8x128xf32>
    %130 = arith.subf %129, %122 : vector<8x128xf32>
    %131 = arith.mulf %130, %128 : vector<8x128xf32>
    %132 = arith.mulf %122, %73 : vector<8x128xf32>
    %133 = arith.addf %131, %132 : vector<8x128xf32>
    %cst_38 = arith.constant dense<0.000000e+00> : vector<8x384xf32>
    %134 = tpu.matmul %133, %1, %cst_38 {dimension_numbers = #tpu.dot_dimension_numbers<[1], [0], [0], [1], [0, 0, 1, 1], [], []>} : vector<8x128xf32>, vector<128x384xf32>, vector<8x384xf32> -> vector<8x384xf32>
    %c8_39 = arith.constant 8 : index
    %c0_40 = arith.constant 0 : index
    %135 = vector.load %arg9[%c8_39, %c0_40] : memref<64x128xf32, #tpu.memory_space<vmem>>, vector<8x128xf32>
    tpu.vector_store %arg9[%c8_39, %c0_40], %133 {strides = array<i32>} : memref<64x128xf32, #tpu.memory_space<vmem>>, vector<8x128xf32>,
    %c16 = arith.constant 16 : index
    %c0_41 = arith.constant 0 : index
    %136 = vector.load %arg0[%c16, %c0_41] : memref<64x384xf32, #tpu.memory_space<vmem>>, vector<8x384xf32>
    %137 = vector.extract_strided_slice %136 {offsets = [0, 0], sizes = [8, 128], strides = [1, 1]} : vector<8x384xf32> to vector<8x128xf32>
    %138 = vector.extract_strided_slice %104 {offsets = [0, 0], sizes = [8, 128], strides = [1, 1]} : vector<8x384xf32> to vector<8x128xf32>
    %139 = arith.addf %137, %138 : vector<8x128xf32>
    %140 = arith.negf %139 : vector<8x128xf32>
    %141 = math.exp %140 : vector<8x128xf32>
    %cst_42 = arith.constant 1.000000e+00 : f32
    %142 = vector.broadcast %cst_42 : f32 to vector<8x128xf32>
    %143 = arith.addf %142, %141 : vector<8x128xf32>
    %144 = arith.divf %142, %143 : vector<8x128xf32>
    %145 = vector.extract_strided_slice %136 {offsets = [0, 128], sizes = [8, 128], strides = [1, 1]} : vector<8x384xf32> to vector<8x128xf32>
    %146 = vector.extract_strided_slice %104 {offsets = [0, 128], sizes = [8, 128], strides = [1, 1]} : vector<8x384xf32> to vector<8x128xf32>
    %147 = arith.addf %145, %146 : vector<8x128xf32>
    %148 = arith.negf %147 : vector<8x128xf32>
    %149 = math.exp %148 : vector<8x128xf32>
    %cst_43 = arith.constant 1.000000e+00 : f32
    %150 = vector.broadcast %cst_43 : f32 to vector<8x128xf32>
    %151 = arith.addf %150, %149 : vector<8x128xf32>
    %152 = arith.divf %150, %151 : vector<8x128xf32>
    %153 = vector.extract_strided_slice %136 {offsets = [0, 256], sizes = [8, 128], strides = [1, 1]} : vector<8x384xf32> to vector<8x128xf32>
    %154 = vector.extract_strided_slice %104 {offsets = [0, 256], sizes = [8, 128], strides = [1, 1]} : vector<8x384xf32> to vector<8x128xf32>
    %155 = arith.addf %154, %8 : vector<8x128xf32>
    %156 = arith.mulf %144, %155 : vector<8x128xf32>
    %157 = arith.addf %153, %156 : vector<8x128xf32>
    %158 = math.tanh %157 : vector<8x128xf32>
    %cst_44 = arith.constant 1.000000e+00 : f32
    %159 = vector.broadcast %cst_44 : f32 to vector<8x128xf32>
    %160 = arith.subf %159, %152 : vector<8x128xf32>
    %161 = arith.mulf %160, %158 : vector<8x128xf32>
    %162 = arith.mulf %152, %103 : vector<8x128xf32>
    %163 = arith.addf %161, %162 : vector<8x128xf32>
    %cst_45 = arith.constant dense<0.000000e+00> : vector<8x384xf32>
    %164 = tpu.matmul %163, %0, %cst_45 {dimension_numbers = #tpu.dot_dimension_numbers<[1], [0], [0], [1], [0, 0, 1, 1], [], []>} : vector<8x128xf32>, vector<128x384xf32>, vector<8x384xf32> -> vector<8x384xf32>
    %cst_46 = arith.constant dense<0.000000e+00> : vector<8x384xf32>
    %165 = tpu.matmul %163, %2, %cst_46 {dimension_numbers = #tpu.dot_dimension_numbers<[1], [0], [0], [1], [0, 0, 1, 1], [], []>} : vector<8x128xf32>, vector<128x384xf32>, vector<8x384xf32> -> vector<8x384xf32>
    %166 = arith.addf %165, %5 : vector<8x384xf32>
    %167 = vector.extract_strided_slice %166 {offsets = [0, 0], sizes = [8, 128], strides = [1, 1]} : vector<8x384xf32> to vector<8x128xf32>
    %168 = vector.extract_strided_slice %134 {offsets = [0, 0], sizes = [8, 128], strides = [1, 1]} : vector<8x384xf32> to vector<8x128xf32>
    %169 = arith.addf %167, %168 : vector<8x128xf32>
    %170 = arith.negf %169 : vector<8x128xf32>
    %171 = math.exp %170 : vector<8x128xf32>
    %cst_47 = arith.constant 1.000000e+00 : f32
    %172 = vector.broadcast %cst_47 : f32 to vector<8x128xf32>
    %173 = arith.addf %172, %171 : vector<8x128xf32>
    %174 = arith.divf %172, %173 : vector<8x128xf32>
    %175 = vector.extract_strided_slice %166 {offsets = [0, 128], sizes = [8, 128], strides = [1, 1]} : vector<8x384xf32> to vector<8x128xf32>
    %176 = vector.extract_strided_slice %134 {offsets = [0, 128], sizes = [8, 128], strides = [1, 1]} : vector<8x384xf32> to vector<8x128xf32>
    %177 = arith.addf %175, %176 : vector<8x128xf32>
    %178 = arith.negf %177 : vector<8x128xf32>
    %179 = math.exp %178 : vector<8x128xf32>
    %cst_48 = arith.constant 1.000000e+00 : f32
    %180 = vector.broadcast %cst_48 : f32 to vector<8x128xf32>
    %181 = arith.addf %180, %179 : vector<8x128xf32>
    %182 = arith.divf %180, %181 : vector<8x128xf32>
    %183 = vector.extract_strided_slice %166 {offsets = [0, 256], sizes = [8, 128], strides = [1, 1]} : vector<8x384xf32> to vector<8x128xf32>
    %184 = vector.extract_strided_slice %134 {offsets = [0, 256], sizes = [8, 128], strides = [1, 1]} : vector<8x384xf32> to vector<8x128xf32>
    %185 = arith.addf %184, %11 : vector<8x128xf32>
    %186 = arith.mulf %174, %185 : vector<8x128xf32>
    %187 = arith.addf %183, %186 : vector<8x128xf32>
    %188 = math.tanh %187 : vector<8x128xf32>
    %cst_49 = arith.constant 1.000000e+00 : f32
    %189 = vector.broadcast %cst_49 : f32 to vector<8x128xf32>
    %190 = arith.subf %189, %182 : vector<8x128xf32>
    %191 = arith.mulf %190, %188 : vector<8x128xf32>
    %192 = arith.mulf %182, %133 : vector<8x128xf32>
    %193 = arith.addf %191, %192 : vector<8x128xf32>
    %cst_50 = arith.constant dense<0.000000e+00> : vector<8x384xf32>
    %194 = tpu.matmul %193, %1, %cst_50 {dimension_numbers = #tpu.dot_dimension_numbers<[1], [0], [0], [1], [0, 0, 1, 1], [], []>} : vector<8x128xf32>, vector<128x384xf32>, vector<8x384xf32> -> vector<8x384xf32>
    %c16_51 = arith.constant 16 : index
    %c0_52 = arith.constant 0 : index
    %195 = vector.load %arg9[%c16_51, %c0_52] : memref<64x128xf32, #tpu.memory_space<vmem>>, vector<8x128xf32>
    tpu.vector_store %arg9[%c16_51, %c0_52], %193 {strides = array<i32>} : memref<64x128xf32, #tpu.memory_space<vmem>>, vector<8x128xf32>,
    %c24 = arith.constant 24 : index
    %c0_53 = arith.constant 0 : index
    %196 = vector.load %arg0[%c24, %c0_53] : memref<64x384xf32, #tpu.memory_space<vmem>>, vector<8x384xf32>
    %197 = vector.extract_strided_slice %196 {offsets = [0, 0], sizes = [8, 128], strides = [1, 1]} : vector<8x384xf32> to vector<8x128xf32>
    %198 = vector.extract_strided_slice %164 {offsets = [0, 0], sizes = [8, 128], strides = [1, 1]} : vector<8x384xf32> to vector<8x128xf32>
    %199 = arith.addf %197, %198 : vector<8x128xf32>
    %200 = arith.negf %199 : vector<8x128xf32>
    %201 = math.exp %200 : vector<8x128xf32>
    %cst_54 = arith.constant 1.000000e+00 : f32
    %202 = vector.broadcast %cst_54 : f32 to vector<8x128xf32>
    %203 = arith.addf %202, %201 : vector<8x128xf32>
    %204 = arith.divf %202, %203 : vector<8x128xf32>
    %205 = vector.extract_strided_slice %196 {offsets = [0, 128], sizes = [8, 128], strides = [1, 1]} : vector<8x384xf32> to vector<8x128xf32>
    %206 = vector.extract_strided_slice %164 {offsets = [0, 128], sizes = [8, 128], strides = [1, 1]} : vector<8x384xf32> to vector<8x128xf32>
    %207 = arith.addf %205, %206 : vector<8x128xf32>
    %208 = arith.negf %207 : vector<8x128xf32>
    %209 = math.exp %208 : vector<8x128xf32>
    %cst_55 = arith.constant 1.000000e+00 : f32
    %210 = vector.broadcast %cst_55 : f32 to vector<8x128xf32>
    %211 = arith.addf %210, %209 : vector<8x128xf32>
    %212 = arith.divf %210, %211 : vector<8x128xf32>
    %213 = vector.extract_strided_slice %196 {offsets = [0, 256], sizes = [8, 128], strides = [1, 1]} : vector<8x384xf32> to vector<8x128xf32>
    %214 = vector.extract_strided_slice %164 {offsets = [0, 256], sizes = [8, 128], strides = [1, 1]} : vector<8x384xf32> to vector<8x128xf32>
    %215 = arith.addf %214, %8 : vector<8x128xf32>
    %216 = arith.mulf %204, %215 : vector<8x128xf32>
    %217 = arith.addf %213, %216 : vector<8x128xf32>
    %218 = math.tanh %217 : vector<8x128xf32>
    %cst_56 = arith.constant 1.000000e+00 : f32
    %219 = vector.broadcast %cst_56 : f32 to vector<8x128xf32>
    %220 = arith.subf %219, %212 : vector<8x128xf32>
    %221 = arith.mulf %220, %218 : vector<8x128xf32>
    %222 = arith.mulf %212, %163 : vector<8x128xf32>
    %223 = arith.addf %221, %222 : vector<8x128xf32>
    %cst_57 = arith.constant dense<0.000000e+00> : vector<8x384xf32>
    %224 = tpu.matmul %223, %0, %cst_57 {dimension_numbers = #tpu.dot_dimension_numbers<[1], [0], [0], [1], [0, 0, 1, 1], [], []>} : vector<8x128xf32>, vector<128x384xf32>, vector<8x384xf32> -> vector<8x384xf32>
    %cst_58 = arith.constant dense<0.000000e+00> : vector<8x384xf32>
    %225 = tpu.matmul %223, %2, %cst_58 {dimension_numbers = #tpu.dot_dimension_numbers<[1], [0], [0], [1], [0, 0, 1, 1], [], []>} : vector<8x128xf32>, vector<128x384xf32>, vector<8x384xf32> -> vector<8x384xf32>
    %226 = arith.addf %225, %5 : vector<8x384xf32>
    %227 = vector.extract_strided_slice %226 {offsets = [0, 0], sizes = [8, 128], strides = [1, 1]} : vector<8x384xf32> to vector<8x128xf32>
    %228 = vector.extract_strided_slice %194 {offsets = [0, 0], sizes = [8, 128], strides = [1, 1]} : vector<8x384xf32> to vector<8x128xf32>
    %229 = arith.addf %227, %228 : vector<8x128xf32>
    %230 = arith.negf %229 : vector<8x128xf32>
    %231 = math.exp %230 : vector<8x128xf32>
    %cst_59 = arith.constant 1.000000e+00 : f32
    %232 = vector.broadcast %cst_59 : f32 to vector<8x128xf32>
    %233 = arith.addf %232, %231 : vector<8x128xf32>
    %234 = arith.divf %232, %233 : vector<8x128xf32>
    %235 = vector.extract_strided_slice %226 {offsets = [0, 128], sizes = [8, 128], strides = [1, 1]} : vector<8x384xf32> to vector<8x128xf32>
    %236 = vector.extract_strided_slice %194 {offsets = [0, 128], sizes = [8, 128], strides = [1, 1]} : vector<8x384xf32> to vector<8x128xf32>
    %237 = arith.addf %235, %236 : vector<8x128xf32>
    %238 = arith.negf %237 : vector<8x128xf32>
    %239 = math.exp %238 : vector<8x128xf32>
    %cst_60 = arith.constant 1.000000e+00 : f32
    %240 = vector.broadcast %cst_60 : f32 to vector<8x128xf32>
    %241 = arith.addf %240, %239 : vector<8x128xf32>
    %242 = arith.divf %240, %241 : vector<8x128xf32>
    %243 = vector.extract_strided_slice %226 {offsets = [0, 256], sizes = [8, 128], strides = [1, 1]} : vector<8x384xf32> to vector<8x128xf32>
    %244 = vector.extract_strided_slice %194 {offsets = [0, 256], sizes = [8, 128], strides = [1, 1]} : vector<8x384xf32> to vector<8x128xf32>
    %245 = arith.addf %244, %11 : vector<8x128xf32>
    %246 = arith.mulf %234, %245 : vector<8x128xf32>
    %247 = arith.addf %243, %246 : vector<8x128xf32>
    %248 = math.tanh %247 : vector<8x128xf32>
    %cst_61 = arith.constant 1.000000e+00 : f32
    %249 = vector.broadcast %cst_61 : f32 to vector<8x128xf32>
    %250 = arith.subf %249, %242 : vector<8x128xf32>
    %251 = arith.mulf %250, %248 : vector<8x128xf32>
    %252 = arith.mulf %242, %193 : vector<8x128xf32>
    %253 = arith.addf %251, %252 : vector<8x128xf32>
    %cst_62 = arith.constant dense<0.000000e+00> : vector<8x384xf32>
    %254 = tpu.matmul %253, %1, %cst_62 {dimension_numbers = #tpu.dot_dimension_numbers<[1], [0], [0], [1], [0, 0, 1, 1], [], []>} : vector<8x128xf32>, vector<128x384xf32>, vector<8x384xf32> -> vector<8x384xf32>
    %c24_63 = arith.constant 24 : index
    %c0_64 = arith.constant 0 : index
    %255 = vector.load %arg9[%c24_63, %c0_64] : memref<64x128xf32, #tpu.memory_space<vmem>>, vector<8x128xf32>
    tpu.vector_store %arg9[%c24_63, %c0_64], %253 {strides = array<i32>} : memref<64x128xf32, #tpu.memory_space<vmem>>, vector<8x128xf32>,
    %c32 = arith.constant 32 : index
    %c0_65 = arith.constant 0 : index
    %256 = vector.load %arg0[%c32, %c0_65] : memref<64x384xf32, #tpu.memory_space<vmem>>, vector<8x384xf32>
    %257 = vector.extract_strided_slice %256 {offsets = [0, 0], sizes = [8, 128], strides = [1, 1]} : vector<8x384xf32> to vector<8x128xf32>
    %258 = vector.extract_strided_slice %224 {offsets = [0, 0], sizes = [8, 128], strides = [1, 1]} : vector<8x384xf32> to vector<8x128xf32>
    %259 = arith.addf %257, %258 : vector<8x128xf32>
    %260 = arith.negf %259 : vector<8x128xf32>
    %261 = math.exp %260 : vector<8x128xf32>
    %cst_66 = arith.constant 1.000000e+00 : f32
    %262 = vector.broadcast %cst_66 : f32 to vector<8x128xf32>
    %263 = arith.addf %262, %261 : vector<8x128xf32>
    %264 = arith.divf %262, %263 : vector<8x128xf32>
    %265 = vector.extract_strided_slice %256 {offsets = [0, 128], sizes = [8, 128], strides = [1, 1]} : vector<8x384xf32> to vector<8x128xf32>
    %266 = vector.extract_strided_slice %224 {offsets = [0, 128], sizes = [8, 128], strides = [1, 1]} : vector<8x384xf32> to vector<8x128xf32>
    %267 = arith.addf %265, %266 : vector<8x128xf32>
    %268 = arith.negf %267 : vector<8x128xf32>
    %269 = math.exp %268 : vector<8x128xf32>
    %cst_67 = arith.constant 1.000000e+00 : f32
    %270 = vector.broadcast %cst_67 : f32 to vector<8x128xf32>
    %271 = arith.addf %270, %269 : vector<8x128xf32>
    %272 = arith.divf %270, %271 : vector<8x128xf32>
    %273 = vector.extract_strided_slice %256 {offsets = [0, 256], sizes = [8, 128], strides = [1, 1]} : vector<8x384xf32> to vector<8x128xf32>
    %274 = vector.extract_strided_slice %224 {offsets = [0, 256], sizes = [8, 128], strides = [1, 1]} : vector<8x384xf32> to vector<8x128xf32>
    %275 = arith.addf %274, %8 : vector<8x128xf32>
    %276 = arith.mulf %264, %275 : vector<8x128xf32>
    %277 = arith.addf %273, %276 : vector<8x128xf32>
    %278 = math.tanh %277 : vector<8x128xf32>
    %cst_68 = arith.constant 1.000000e+00 : f32
    %279 = vector.broadcast %cst_68 : f32 to vector<8x128xf32>
    %280 = arith.subf %279, %272 : vector<8x128xf32>
    %281 = arith.mulf %280, %278 : vector<8x128xf32>
    %282 = arith.mulf %272, %223 : vector<8x128xf32>
    %283 = arith.addf %281, %282 : vector<8x128xf32>
    %cst_69 = arith.constant dense<0.000000e+00> : vector<8x384xf32>
    %284 = tpu.matmul %283, %0, %cst_69 {dimension_numbers = #tpu.dot_dimension_numbers<[1], [0], [0], [1], [0, 0, 1, 1], [], []>} : vector<8x128xf32>, vector<128x384xf32>, vector<8x384xf32> -> vector<8x384xf32>
    %cst_70 = arith.constant dense<0.000000e+00> : vector<8x384xf32>
    %285 = tpu.matmul %283, %2, %cst_70 {dimension_numbers = #tpu.dot_dimension_numbers<[1], [0], [0], [1], [0, 0, 1, 1], [], []>} : vector<8x128xf32>, vector<128x384xf32>, vector<8x384xf32> -> vector<8x384xf32>
    %286 = arith.addf %285, %5 : vector<8x384xf32>
    %287 = vector.extract_strided_slice %286 {offsets = [0, 0], sizes = [8, 128], strides = [1, 1]} : vector<8x384xf32> to vector<8x128xf32>
    %288 = vector.extract_strided_slice %254 {offsets = [0, 0], sizes = [8, 128], strides = [1, 1]} : vector<8x384xf32> to vector<8x128xf32>
    %289 = arith.addf %287, %288 : vector<8x128xf32>
    %290 = arith.negf %289 : vector<8x128xf32>
    %291 = math.exp %290 : vector<8x128xf32>
    %cst_71 = arith.constant 1.000000e+00 : f32
    %292 = vector.broadcast %cst_71 : f32 to vector<8x128xf32>
    %293 = arith.addf %292, %291 : vector<8x128xf32>
    %294 = arith.divf %292, %293 : vector<8x128xf32>
    %295 = vector.extract_strided_slice %286 {offsets = [0, 128], sizes = [8, 128], strides = [1, 1]} : vector<8x384xf32> to vector<8x128xf32>
    %296 = vector.extract_strided_slice %254 {offsets = [0, 128], sizes = [8, 128], strides = [1, 1]} : vector<8x384xf32> to vector<8x128xf32>
    %297 = arith.addf %295, %296 : vector<8x128xf32>
    %298 = arith.negf %297 : vector<8x128xf32>
    %299 = math.exp %298 : vector<8x128xf32>
    %cst_72 = arith.constant 1.000000e+00 : f32
    %300 = vector.broadcast %cst_72 : f32 to vector<8x128xf32>
    %301 = arith.addf %300, %299 : vector<8x128xf32>
    %302 = arith.divf %300, %301 : vector<8x128xf32>
    %303 = vector.extract_strided_slice %286 {offsets = [0, 256], sizes = [8, 128], strides = [1, 1]} : vector<8x384xf32> to vector<8x128xf32>
    %304 = vector.extract_strided_slice %254 {offsets = [0, 256], sizes = [8, 128], strides = [1, 1]} : vector<8x384xf32> to vector<8x128xf32>
    %305 = arith.addf %304, %11 : vector<8x128xf32>
    %306 = arith.mulf %294, %305 : vector<8x128xf32>
    %307 = arith.addf %303, %306 : vector<8x128xf32>
    %308 = math.tanh %307 : vector<8x128xf32>
    %cst_73 = arith.constant 1.000000e+00 : f32
    %309 = vector.broadcast %cst_73 : f32 to vector<8x128xf32>
    %310 = arith.subf %309, %302 : vector<8x128xf32>
    %311 = arith.mulf %310, %308 : vector<8x128xf32>
    %312 = arith.mulf %302, %253 : vector<8x128xf32>
    %313 = arith.addf %311, %312 : vector<8x128xf32>
    %cst_74 = arith.constant dense<0.000000e+00> : vector<8x384xf32>
    %314 = tpu.matmul %313, %1, %cst_74 {dimension_numbers = #tpu.dot_dimension_numbers<[1], [0], [0], [1], [0, 0, 1, 1], [], []>} : vector<8x128xf32>, vector<128x384xf32>, vector<8x384xf32> -> vector<8x384xf32>
    %c32_75 = arith.constant 32 : index
    %c0_76 = arith.constant 0 : index
    %315 = vector.load %arg9[%c32_75, %c0_76] : memref<64x128xf32, #tpu.memory_space<vmem>>, vector<8x128xf32>
    tpu.vector_store %arg9[%c32_75, %c0_76], %313 {strides = array<i32>} : memref<64x128xf32, #tpu.memory_space<vmem>>, vector<8x128xf32>,
    %c40 = arith.constant 40 : index
    %c0_77 = arith.constant 0 : index
    %316 = vector.load %arg0[%c40, %c0_77] : memref<64x384xf32, #tpu.memory_space<vmem>>, vector<8x384xf32>
    %317 = vector.extract_strided_slice %316 {offsets = [0, 0], sizes = [8, 128], strides = [1, 1]} : vector<8x384xf32> to vector<8x128xf32>
    %318 = vector.extract_strided_slice %284 {offsets = [0, 0], sizes = [8, 128], strides = [1, 1]} : vector<8x384xf32> to vector<8x128xf32>
    %319 = arith.addf %317, %318 : vector<8x128xf32>
    %320 = arith.negf %319 : vector<8x128xf32>
    %321 = math.exp %320 : vector<8x128xf32>
    %cst_78 = arith.constant 1.000000e+00 : f32
    %322 = vector.broadcast %cst_78 : f32 to vector<8x128xf32>
    %323 = arith.addf %322, %321 : vector<8x128xf32>
    %324 = arith.divf %322, %323 : vector<8x128xf32>
    %325 = vector.extract_strided_slice %316 {offsets = [0, 128], sizes = [8, 128], strides = [1, 1]} : vector<8x384xf32> to vector<8x128xf32>
    %326 = vector.extract_strided_slice %284 {offsets = [0, 128], sizes = [8, 128], strides = [1, 1]} : vector<8x384xf32> to vector<8x128xf32>
    %327 = arith.addf %325, %326 : vector<8x128xf32>
    %328 = arith.negf %327 : vector<8x128xf32>
    %329 = math.exp %328 : vector<8x128xf32>
    %cst_79 = arith.constant 1.000000e+00 : f32
    %330 = vector.broadcast %cst_79 : f32 to vector<8x128xf32>
    %331 = arith.addf %330, %329 : vector<8x128xf32>
    %332 = arith.divf %330, %331 : vector<8x128xf32>
    %333 = vector.extract_strided_slice %316 {offsets = [0, 256], sizes = [8, 128], strides = [1, 1]} : vector<8x384xf32> to vector<8x128xf32>
    %334 = vector.extract_strided_slice %284 {offsets = [0, 256], sizes = [8, 128], strides = [1, 1]} : vector<8x384xf32> to vector<8x128xf32>
    %335 = arith.addf %334, %8 : vector<8x128xf32>
    %336 = arith.mulf %324, %335 : vector<8x128xf32>
    %337 = arith.addf %333, %336 : vector<8x128xf32>
    %338 = math.tanh %337 : vector<8x128xf32>
    %cst_80 = arith.constant 1.000000e+00 : f32
    %339 = vector.broadcast %cst_80 : f32 to vector<8x128xf32>
    %340 = arith.subf %339, %332 : vector<8x128xf32>
    %341 = arith.mulf %340, %338 : vector<8x128xf32>
    %342 = arith.mulf %332, %283 : vector<8x128xf32>
    %343 = arith.addf %341, %342 : vector<8x128xf32>
    %cst_81 = arith.constant dense<0.000000e+00> : vector<8x384xf32>
    %344 = tpu.matmul %343, %0, %cst_81 {dimension_numbers = #tpu.dot_dimension_numbers<[1], [0], [0], [1], [0, 0, 1, 1], [], []>} : vector<8x128xf32>, vector<128x384xf32>, vector<8x384xf32> -> vector<8x384xf32>
    %cst_82 = arith.constant dense<0.000000e+00> : vector<8x384xf32>
    %345 = tpu.matmul %343, %2, %cst_82 {dimension_numbers = #tpu.dot_dimension_numbers<[1], [0], [0], [1], [0, 0, 1, 1], [], []>} : vector<8x128xf32>, vector<128x384xf32>, vector<8x384xf32> -> vector<8x384xf32>
    %346 = arith.addf %345, %5 : vector<8x384xf32>
    %347 = vector.extract_strided_slice %346 {offsets = [0, 0], sizes = [8, 128], strides = [1, 1]} : vector<8x384xf32> to vector<8x128xf32>
    %348 = vector.extract_strided_slice %314 {offsets = [0, 0], sizes = [8, 128], strides = [1, 1]} : vector<8x384xf32> to vector<8x128xf32>
    %349 = arith.addf %347, %348 : vector<8x128xf32>
    %350 = arith.negf %349 : vector<8x128xf32>
    %351 = math.exp %350 : vector<8x128xf32>
    %cst_83 = arith.constant 1.000000e+00 : f32
    %352 = vector.broadcast %cst_83 : f32 to vector<8x128xf32>
    %353 = arith.addf %352, %351 : vector<8x128xf32>
    %354 = arith.divf %352, %353 : vector<8x128xf32>
    %355 = vector.extract_strided_slice %346 {offsets = [0, 128], sizes = [8, 128], strides = [1, 1]} : vector<8x384xf32> to vector<8x128xf32>
    %356 = vector.extract_strided_slice %314 {offsets = [0, 128], sizes = [8, 128], strides = [1, 1]} : vector<8x384xf32> to vector<8x128xf32>
    %357 = arith.addf %355, %356 : vector<8x128xf32>
    %358 = arith.negf %357 : vector<8x128xf32>
    %359 = math.exp %358 : vector<8x128xf32>
    %cst_84 = arith.constant 1.000000e+00 : f32
    %360 = vector.broadcast %cst_84 : f32 to vector<8x128xf32>
    %361 = arith.addf %360, %359 : vector<8x128xf32>
    %362 = arith.divf %360, %361 : vector<8x128xf32>
    %363 = vector.extract_strided_slice %346 {offsets = [0, 256], sizes = [8, 128], strides = [1, 1]} : vector<8x384xf32> to vector<8x128xf32>
    %364 = vector.extract_strided_slice %314 {offsets = [0, 256], sizes = [8, 128], strides = [1, 1]} : vector<8x384xf32> to vector<8x128xf32>
    %365 = arith.addf %364, %11 : vector<8x128xf32>
    %366 = arith.mulf %354, %365 : vector<8x128xf32>
    %367 = arith.addf %363, %366 : vector<8x128xf32>
    %368 = math.tanh %367 : vector<8x128xf32>
    %cst_85 = arith.constant 1.000000e+00 : f32
    %369 = vector.broadcast %cst_85 : f32 to vector<8x128xf32>
    %370 = arith.subf %369, %362 : vector<8x128xf32>
    %371 = arith.mulf %370, %368 : vector<8x128xf32>
    %372 = arith.mulf %362, %313 : vector<8x128xf32>
    %373 = arith.addf %371, %372 : vector<8x128xf32>
    %cst_86 = arith.constant dense<0.000000e+00> : vector<8x384xf32>
    %374 = tpu.matmul %373, %1, %cst_86 {dimension_numbers = #tpu.dot_dimension_numbers<[1], [0], [0], [1], [0, 0, 1, 1], [], []>} : vector<8x128xf32>, vector<128x384xf32>, vector<8x384xf32> -> vector<8x384xf32>
    %c40_87 = arith.constant 40 : index
    %c0_88 = arith.constant 0 : index
    %375 = vector.load %arg9[%c40_87, %c0_88] : memref<64x128xf32, #tpu.memory_space<vmem>>, vector<8x128xf32>
    tpu.vector_store %arg9[%c40_87, %c0_88], %373 {strides = array<i32>} : memref<64x128xf32, #tpu.memory_space<vmem>>, vector<8x128xf32>,
    %c48 = arith.constant 48 : index
    %c0_89 = arith.constant 0 : index
    %376 = vector.load %arg0[%c48, %c0_89] : memref<64x384xf32, #tpu.memory_space<vmem>>, vector<8x384xf32>
    %377 = vector.extract_strided_slice %376 {offsets = [0, 0], sizes = [8, 128], strides = [1, 1]} : vector<8x384xf32> to vector<8x128xf32>
    %378 = vector.extract_strided_slice %344 {offsets = [0, 0], sizes = [8, 128], strides = [1, 1]} : vector<8x384xf32> to vector<8x128xf32>
    %379 = arith.addf %377, %378 : vector<8x128xf32>
    %380 = arith.negf %379 : vector<8x128xf32>
    %381 = math.exp %380 : vector<8x128xf32>
    %cst_90 = arith.constant 1.000000e+00 : f32
    %382 = vector.broadcast %cst_90 : f32 to vector<8x128xf32>
    %383 = arith.addf %382, %381 : vector<8x128xf32>
    %384 = arith.divf %382, %383 : vector<8x128xf32>
    %385 = vector.extract_strided_slice %376 {offsets = [0, 128], sizes = [8, 128], strides = [1, 1]} : vector<8x384xf32> to vector<8x128xf32>
    %386 = vector.extract_strided_slice %344 {offsets = [0, 128], sizes = [8, 128], strides = [1, 1]} : vector<8x384xf32> to vector<8x128xf32>
    %387 = arith.addf %385, %386 : vector<8x128xf32>
    %388 = arith.negf %387 : vector<8x128xf32>
    %389 = math.exp %388 : vector<8x128xf32>
    %cst_91 = arith.constant 1.000000e+00 : f32
    %390 = vector.broadcast %cst_91 : f32 to vector<8x128xf32>
    %391 = arith.addf %390, %389 : vector<8x128xf32>
    %392 = arith.divf %390, %391 : vector<8x128xf32>
    %393 = vector.extract_strided_slice %376 {offsets = [0, 256], sizes = [8, 128], strides = [1, 1]} : vector<8x384xf32> to vector<8x128xf32>
    %394 = vector.extract_strided_slice %344 {offsets = [0, 256], sizes = [8, 128], strides = [1, 1]} : vector<8x384xf32> to vector<8x128xf32>
    %395 = arith.addf %394, %8 : vector<8x128xf32>
    %396 = arith.mulf %384, %395 : vector<8x128xf32>
    %397 = arith.addf %393, %396 : vector<8x128xf32>
    %398 = math.tanh %397 : vector<8x128xf32>
    %cst_92 = arith.constant 1.000000e+00 : f32
    %399 = vector.broadcast %cst_92 : f32 to vector<8x128xf32>
    %400 = arith.subf %399, %392 : vector<8x128xf32>
    %401 = arith.mulf %400, %398 : vector<8x128xf32>
    %402 = arith.mulf %392, %343 : vector<8x128xf32>
    %403 = arith.addf %401, %402 : vector<8x128xf32>
    %cst_93 = arith.constant dense<0.000000e+00> : vector<8x384xf32>
    %404 = tpu.matmul %403, %0, %cst_93 {dimension_numbers = #tpu.dot_dimension_numbers<[1], [0], [0], [1], [0, 0, 1, 1], [], []>} : vector<8x128xf32>, vector<128x384xf32>, vector<8x384xf32> -> vector<8x384xf32>
    %cst_94 = arith.constant dense<0.000000e+00> : vector<8x384xf32>
    %405 = tpu.matmul %403, %2, %cst_94 {dimension_numbers = #tpu.dot_dimension_numbers<[1], [0], [0], [1], [0, 0, 1, 1], [], []>} : vector<8x128xf32>, vector<128x384xf32>, vector<8x384xf32> -> vector<8x384xf32>
    %406 = arith.addf %405, %5 : vector<8x384xf32>
    %407 = vector.extract_strided_slice %406 {offsets = [0, 0], sizes = [8, 128], strides = [1, 1]} : vector<8x384xf32> to vector<8x128xf32>
    %408 = vector.extract_strided_slice %374 {offsets = [0, 0], sizes = [8, 128], strides = [1, 1]} : vector<8x384xf32> to vector<8x128xf32>
    %409 = arith.addf %407, %408 : vector<8x128xf32>
    %410 = arith.negf %409 : vector<8x128xf32>
    %411 = math.exp %410 : vector<8x128xf32>
    %cst_95 = arith.constant 1.000000e+00 : f32
    %412 = vector.broadcast %cst_95 : f32 to vector<8x128xf32>
    %413 = arith.addf %412, %411 : vector<8x128xf32>
    %414 = arith.divf %412, %413 : vector<8x128xf32>
    %415 = vector.extract_strided_slice %406 {offsets = [0, 128], sizes = [8, 128], strides = [1, 1]} : vector<8x384xf32> to vector<8x128xf32>
    %416 = vector.extract_strided_slice %374 {offsets = [0, 128], sizes = [8, 128], strides = [1, 1]} : vector<8x384xf32> to vector<8x128xf32>
    %417 = arith.addf %415, %416 : vector<8x128xf32>
    %418 = arith.negf %417 : vector<8x128xf32>
    %419 = math.exp %418 : vector<8x128xf32>
    %cst_96 = arith.constant 1.000000e+00 : f32
    %420 = vector.broadcast %cst_96 : f32 to vector<8x128xf32>
    %421 = arith.addf %420, %419 : vector<8x128xf32>
    %422 = arith.divf %420, %421 : vector<8x128xf32>
    %423 = vector.extract_strided_slice %406 {offsets = [0, 256], sizes = [8, 128], strides = [1, 1]} : vector<8x384xf32> to vector<8x128xf32>
    %424 = vector.extract_strided_slice %374 {offsets = [0, 256], sizes = [8, 128], strides = [1, 1]} : vector<8x384xf32> to vector<8x128xf32>
    %425 = arith.addf %424, %11 : vector<8x128xf32>
    %426 = arith.mulf %414, %425 : vector<8x128xf32>
    %427 = arith.addf %423, %426 : vector<8x128xf32>
    %428 = math.tanh %427 : vector<8x128xf32>
    %cst_97 = arith.constant 1.000000e+00 : f32
    %429 = vector.broadcast %cst_97 : f32 to vector<8x128xf32>
    %430 = arith.subf %429, %422 : vector<8x128xf32>
    %431 = arith.mulf %430, %428 : vector<8x128xf32>
    %432 = arith.mulf %422, %373 : vector<8x128xf32>
    %433 = arith.addf %431, %432 : vector<8x128xf32>
    %cst_98 = arith.constant dense<0.000000e+00> : vector<8x384xf32>
    %434 = tpu.matmul %433, %1, %cst_98 {dimension_numbers = #tpu.dot_dimension_numbers<[1], [0], [0], [1], [0, 0, 1, 1], [], []>} : vector<8x128xf32>, vector<128x384xf32>, vector<8x384xf32> -> vector<8x384xf32>
    %c48_99 = arith.constant 48 : index
    %c0_100 = arith.constant 0 : index
    %435 = vector.load %arg9[%c48_99, %c0_100] : memref<64x128xf32, #tpu.memory_space<vmem>>, vector<8x128xf32>
    tpu.vector_store %arg9[%c48_99, %c0_100], %433 {strides = array<i32>} : memref<64x128xf32, #tpu.memory_space<vmem>>, vector<8x128xf32>,
    %c56 = arith.constant 56 : index
    %c0_101 = arith.constant 0 : index
    %436 = vector.load %arg0[%c56, %c0_101] : memref<64x384xf32, #tpu.memory_space<vmem>>, vector<8x384xf32>
    %437 = vector.extract_strided_slice %436 {offsets = [0, 0], sizes = [8, 128], strides = [1, 1]} : vector<8x384xf32> to vector<8x128xf32>
    %438 = vector.extract_strided_slice %404 {offsets = [0, 0], sizes = [8, 128], strides = [1, 1]} : vector<8x384xf32> to vector<8x128xf32>
    %439 = arith.addf %437, %438 : vector<8x128xf32>
    %440 = arith.negf %439 : vector<8x128xf32>
    %441 = math.exp %440 : vector<8x128xf32>
    %cst_102 = arith.constant 1.000000e+00 : f32
    %442 = vector.broadcast %cst_102 : f32 to vector<8x128xf32>
    %443 = arith.addf %442, %441 : vector<8x128xf32>
    %444 = arith.divf %442, %443 : vector<8x128xf32>
    %445 = vector.extract_strided_slice %436 {offsets = [0, 128], sizes = [8, 128], strides = [1, 1]} : vector<8x384xf32> to vector<8x128xf32>
    %446 = vector.extract_strided_slice %404 {offsets = [0, 128], sizes = [8, 128], strides = [1, 1]} : vector<8x384xf32> to vector<8x128xf32>
    %447 = arith.addf %445, %446 : vector<8x128xf32>
    %448 = arith.negf %447 : vector<8x128xf32>
    %449 = math.exp %448 : vector<8x128xf32>
    %cst_103 = arith.constant 1.000000e+00 : f32
    %450 = vector.broadcast %cst_103 : f32 to vector<8x128xf32>
    %451 = arith.addf %450, %449 : vector<8x128xf32>
    %452 = arith.divf %450, %451 : vector<8x128xf32>
    %453 = vector.extract_strided_slice %436 {offsets = [0, 256], sizes = [8, 128], strides = [1, 1]} : vector<8x384xf32> to vector<8x128xf32>
    %454 = vector.extract_strided_slice %404 {offsets = [0, 256], sizes = [8, 128], strides = [1, 1]} : vector<8x384xf32> to vector<8x128xf32>
    %455 = arith.addf %454, %8 : vector<8x128xf32>
    %456 = arith.mulf %444, %455 : vector<8x128xf32>
    %457 = arith.addf %453, %456 : vector<8x128xf32>
    %458 = math.tanh %457 : vector<8x128xf32>
    %cst_104 = arith.constant 1.000000e+00 : f32
    %459 = vector.broadcast %cst_104 : f32 to vector<8x128xf32>
    %460 = arith.subf %459, %452 : vector<8x128xf32>
    %461 = arith.mulf %460, %458 : vector<8x128xf32>
    %462 = arith.mulf %452, %403 : vector<8x128xf32>
    %463 = arith.addf %461, %462 : vector<8x128xf32>
    %cst_105 = arith.constant dense<0.000000e+00> : vector<8x384xf32>
    %464 = tpu.matmul %463, %2, %cst_105 {dimension_numbers = #tpu.dot_dimension_numbers<[1], [0], [0], [1], [0, 0, 1, 1], [], []>} : vector<8x128xf32>, vector<128x384xf32>, vector<8x384xf32> -> vector<8x384xf32>
    %465 = arith.addf %464, %5 : vector<8x384xf32>
    %466 = vector.extract_strided_slice %465 {offsets = [0, 0], sizes = [8, 128], strides = [1, 1]} : vector<8x384xf32> to vector<8x128xf32>
    %467 = vector.extract_strided_slice %434 {offsets = [0, 0], sizes = [8, 128], strides = [1, 1]} : vector<8x384xf32> to vector<8x128xf32>
    %468 = arith.addf %466, %467 : vector<8x128xf32>
    %469 = arith.negf %468 : vector<8x128xf32>
    %470 = math.exp %469 : vector<8x128xf32>
    %cst_106 = arith.constant 1.000000e+00 : f32
    %471 = vector.broadcast %cst_106 : f32 to vector<8x128xf32>
    %472 = arith.addf %471, %470 : vector<8x128xf32>
    %473 = arith.divf %471, %472 : vector<8x128xf32>
    %474 = vector.extract_strided_slice %465 {offsets = [0, 128], sizes = [8, 128], strides = [1, 1]} : vector<8x384xf32> to vector<8x128xf32>
    %475 = vector.extract_strided_slice %434 {offsets = [0, 128], sizes = [8, 128], strides = [1, 1]} : vector<8x384xf32> to vector<8x128xf32>
    %476 = arith.addf %474, %475 : vector<8x128xf32>
    %477 = arith.negf %476 : vector<8x128xf32>
    %478 = math.exp %477 : vector<8x128xf32>
    %cst_107 = arith.constant 1.000000e+00 : f32
    %479 = vector.broadcast %cst_107 : f32 to vector<8x128xf32>
    %480 = arith.addf %479, %478 : vector<8x128xf32>
    %481 = arith.divf %479, %480 : vector<8x128xf32>
    %482 = vector.extract_strided_slice %465 {offsets = [0, 256], sizes = [8, 128], strides = [1, 1]} : vector<8x384xf32> to vector<8x128xf32>
    %483 = vector.extract_strided_slice %434 {offsets = [0, 256], sizes = [8, 128], strides = [1, 1]} : vector<8x384xf32> to vector<8x128xf32>
    %484 = arith.addf %483, %11 : vector<8x128xf32>
    %485 = arith.mulf %473, %484 : vector<8x128xf32>
    %486 = arith.addf %482, %485 : vector<8x128xf32>
    %487 = math.tanh %486 : vector<8x128xf32>
    %cst_108 = arith.constant 1.000000e+00 : f32
    %488 = vector.broadcast %cst_108 : f32 to vector<8x128xf32>
    %489 = arith.subf %488, %481 : vector<8x128xf32>
    %490 = arith.mulf %489, %487 : vector<8x128xf32>
    %491 = arith.mulf %481, %433 : vector<8x128xf32>
    %492 = arith.addf %490, %491 : vector<8x128xf32>
    %c56_109 = arith.constant 56 : index
    %c0_110 = arith.constant 0 : index
    %493 = vector.load %arg9[%c56_109, %c0_110] : memref<64x128xf32, #tpu.memory_space<vmem>>, vector<8x128xf32>
    tpu.vector_store %arg9[%c56_109, %c0_110], %492 {strides = array<i32>} : memref<64x128xf32, #tpu.memory_space<vmem>>, vector<8x128xf32>,
    %c0_111 = arith.constant 0 : index
    %c0_112 = arith.constant 0 : index
    %494 = vector.load %arg10[%c0_111, %c0_112] : memref<8x128xf32, #tpu.memory_space<vmem>>, vector<8x128xf32>
    tpu.vector_store %arg10[%c0_111, %c0_112], %463 {strides = array<i32>} : memref<8x128xf32, #tpu.memory_space<vmem>>, vector<8x128xf32>,
    %c0_113 = arith.constant 0 : index
    %c0_114 = arith.constant 0 : index
    %495 = vector.load %arg11[%c0_113, %c0_114] : memref<8x128xf32, #tpu.memory_space<vmem>>, vector<8x128xf32>
    tpu.vector_store %arg11[%c0_113, %c0_114], %492 {strides = array<i32>} : memref<8x128xf32, #tpu.memory_space<vmem>>, vector<8x128xf32>,
    return
  }
}

</mosaic_0001>

<llo_original>
// kernel: tpu_custom_call.1
$region0: #{tpu_custom_call.1}
  #allocation0 [shape = 'u32[]', space=smem, size = 0x4, offset = 0x4, fixed_abs, tag = 'smem constant byte address 0x4 - core index']
  #allocation1 [shape = 'u32[144,128]{1,0:T(1,128)}', space=vmem, size = 0x12000, scoped, tag = 'internal scratch']
  %s0 = inlined_call_operand.hbm [shape: f32[64,384], index: 0, kind: input, shape index: {}]
  %s1 = inlined_call_operand.hbm [shape: f32[8,128], index: 1, kind: input, shape index: {}, may-alias: {1,10}]
  %s2 = inlined_call_operand.hbm [shape: f32[8,128], index: 2, kind: input, shape index: {}, may-alias: {2,11}]
  %s3 = inlined_call_operand.hbm [shape: f32[128,384], index: 3, kind: input, shape index: {}]
  %s4 = inlined_call_operand.hbm [shape: f32[128,384], index: 4, kind: input, shape index: {}]
  %s5 = inlined_call_operand.hbm [shape: f32[128,384], index: 5, kind: input, shape index: {}]
  %s6 = inlined_call_operand.vmem [shape: f32[1,384], index: 6, kind: input, shape index: {}]
  %s7 = inlined_call_operand.vmem [shape: f32[1,128], index: 7, kind: input, shape index: {}]
  %s8 = inlined_call_operand.vmem [shape: f32[1,128], index: 8, kind: input, shape index: {}]
  %s9 = inlined_call_operand.hbm [shape: f32[64,128], index: 9, kind: output, shape index: {0}]
  %s10 = inlined_call_operand.hbm [shape: f32[8,128], index: 10, kind: output, shape index: {1}, may-alias: {1,10}]
  %s11 = inlined_call_operand.hbm [shape: f32[8,128], index: 11, kind: output, shape index: {2}, may-alias: {2,11}]
  %12 = xla_tuple %s9, %s10, %s11
  %s13 = sld [smem:[#allocation0]]
  $region86: #{tpu_custom_call.1} parent=0
    _
  %s15 = ssub.s32 1, %s13
  %s16 = scalar_select 0, %s15, %s13
  $region1: #{tpu_custom_call.1} parent=0
    #allocation2 [shape = 'u8[98304]{0}', space=vmem, size = 0x18000, scoped, tag = 'input window, operand 0, single buffered']
    #allocation3 [shape = 's32[1]{0}', space=sflag, size = 0x4, scoped, tag = 'scoped memory for tpu_custom_call.1']
    #allocation4 [shape = 's32[1]{0}', space=sflag, size = 0x4, scoped, tag = 'scoped memory for tpu_custom_call.1']
    #allocation5 [shape = 'u8[4096]{0}', space=vmem, size = 0x1000, scoped, tag = 'input window, operand 1, single buffered']
    #allocation6 [shape = 's32[1]{0}', space=sflag, size = 0x4, scoped, tag = 'scoped memory for tpu_custom_call.1']
    #allocation7 [shape = 'u8[4096]{0}', space=vmem, size = 0x1000, scoped, tag = 'input window, operand 2, single buffered']
    #allocation8 [shape = 'u8[196608]{0}', space=vmem, size = 0x30000, scoped, tag = 'input window, operand 3, single buffered']
    #allocation9 [shape = 's32[1]{0}', space=sflag, size = 0x4, scoped, tag = 'scoped memory for tpu_custom_call.1']
    #allocation10 [shape = 'u8[196608]{0}', space=vmem, size = 0x30000, scoped, tag = 'input window, operand 4, single buffered']
    #allocation11 [shape = 'u8[196608]{0}', space=vmem, size = 0x30000, scoped, tag = 'input window, operand 5, single buffered']
    #allocation12 [shape = 's32[1]{0}', space=sflag, size = 0x4, scoped, tag = 'scoped memory for tpu_custom_call.1']
    #allocation13 [shape = 'u8[32768]{0}', space=vmem, size = 0x8000, scoped, tag = 'output window, operand 0, single buffered']
    #allocation14 [shape = 'u8[4096]{0}', space=vmem, size = 0x1000, scoped, tag = 'output window, operand 1, single buffered']
    #allocation15 [shape = 's32[1]{0}', space=sflag, size = 0x4, scoped, tag = 'scoped memory for tpu_custom_call.1']
    #allocation16 [shape = 'u8[4096]{0}', space=vmem, size = 0x1000, scoped, tag = 'output window, operand 2, single buffered']
    %17 = vsyncpa [#allocation3], 0
    %18 = vsyncpa [#allocation6], 0
    %19 = vsyncpa [#allocation9], 0
    %20 = vsyncpa [#allocation12], 0
    %21 = vsyncpa [#allocation4], 0
    %22 = vsyncpa [#allocation15], 0
    // Predicated region
    $region2: #{tpu_custom_call.1} parent=1 // pred_check
      _
    $region3: #{tpu_custom_call.1} parent=1 // pred_check_branch
      %24 = sbr.rel (0) target = $region5
    $region4: #{tpu_custom_call.1} parent=1 // pred_region
      %s26 = ssub.s32 3072, 3072
      %27 = vsyncadd [#allocation3], %s26
      %s28 = sshll.u32 [#allocation2], 4
      %s29 = int_to_ptr.vmem [resolvable:$true] %s28
      %34 = dma.hbm_to_vmem [thread:$0]  %s0, 3072, %s29, [#allocation3], 384, 384, 24
    $region5: #{tpu_custom_call.1} parent=1 // pred_fallthru
      _
    // Predicated region
    $region6: #{tpu_custom_call.1} parent=1 // pred_check
      _
    $region7: #{tpu_custom_call.1} parent=1 // pred_check_branch
      %36 = sbr.rel (0) target = $region9
    $region8: #{tpu_custom_call.1} parent=1 // pred_region
      %s38 = ssub.s32 128, 128
      %39 = vsyncadd [#allocation6], %s38
      %s41 = sshll.u32 [#allocation5], 4
      %s42 = int_to_ptr.vmem [resolvable:$true] %s41
      %44 = dma.hbm_to_vmem [thread:$0]  %s1, 128, %s42, [#allocation6]
    $region9: #{tpu_custom_call.1} parent=1 // pred_fallthru
      _
    // Predicated region
    $region10: #{tpu_custom_call.1} parent=1 // pred_check
      _
    $region11: #{tpu_custom_call.1} parent=1 // pred_check_branch
      %46 = sbr.rel (0) target = $region13
    $region12: #{tpu_custom_call.1} parent=1 // pred_region
      %s48 = ssub.s32 128, 128
      %49 = vsyncadd [#allocation6], %s48
      %s51 = sshll.u32 [#allocation7], 4
      %s52 = int_to_ptr.vmem [resolvable:$true] %s51
      %54 = dma.hbm_to_vmem [thread:$0]  %s2, 128, %s52, [#allocation6]
    $region13: #{tpu_custom_call.1} parent=1 // pred_fallthru
      _
    // Predicated region
    $region14: #{tpu_custom_call.1} parent=1 // pred_check
      _
    $region15: #{tpu_custom_call.1} parent=1 // pred_check_branch
      %56 = sbr.rel (0) target = $region17
    $region16: #{tpu_custom_call.1} parent=1 // pred_region
      %s58 = ssub.s32 6144, 6144
      %59 = vsyncadd [#allocation9], %s58
      %s60 = sshll.u32 [#allocation8], 4
      %s61 = int_to_ptr.vmem [resolvable:$true] %s60
      %66 = dma.hbm_to_vmem [thread:$0]  %s3, 6144, %s61, [#allocation9], 384, 384, 24
    $region17: #{tpu_custom_call.1} parent=1 // pred_fallthru
      _
    // Predicated region
    $region18: #{tpu_custom_call.1} parent=1 // pred_check
      _
    $region19: #{tpu_custom_call.1} parent=1 // pred_check_branch
      %68 = sbr.rel (0) target = $region21
    $region20: #{tpu_custom_call.1} parent=1 // pred_region
      %s70 = ssub.s32 6144, 6144
      %71 = vsyncadd [#allocation9], %s70
      %s72 = sshll.u32 [#allocation10], 4
      %s73 = int_to_ptr.vmem [resolvable:$true] %s72
      %78 = dma.hbm_to_vmem [thread:$0]  %s4, 6144, %s73, [#allocation9], 384, 384, 24
    $region21: #{tpu_custom_call.1} parent=1 // pred_fallthru
      _
    // Predicated region
    $region22: #{tpu_custom_call.1} parent=1 // pred_check
      _
    $region23: #{tpu_custom_call.1} parent=1 // pred_check_branch
      %80 = sbr.rel (0) target = $region25
    $region24: #{tpu_custom_call.1} parent=1 // pred_region
      %s82 = ssub.s32 6144, 6144
      %83 = vsyncadd [#allocation12], %s82
      %s84 = sshll.u32 [#allocation11], 4
      %s85 = int_to_ptr.vmem [resolvable:$true] %s84
      %90 = dma.hbm_to_vmem [thread:$0]  %s5, 6144, %s85, [#allocation12], 384, 384, 24
    $region25: #{tpu_custom_call.1} parent=1 // pred_fallthru
      _
    // Predicated region
    $region26: #{tpu_custom_call.1} parent=1 // pred_check
      _
    $region27: #{tpu_custom_call.1} parent=1 // pred_check_branch
      %92 = sbr.rel (0) target = $region29
    $region28: #{tpu_custom_call.1} parent=1 // pred_region
      _
    $region29: #{tpu_custom_call.1} parent=1 // pred_fallthru
      _
    // Predicated region
    $region30: #{tpu_custom_call.1} parent=1 // pred_check
      _
    $region31: #{tpu_custom_call.1} parent=1 // pred_check_branch
      %94 = sbr.rel (0) target = $region33
    $region32: #{tpu_custom_call.1} parent=1 // pred_region
      _
    $region33: #{tpu_custom_call.1} parent=1 // pred_fallthru
      _
    // Predicated region
    $region34: #{tpu_custom_call.1} parent=1 // pred_check
      _
    $region35: #{tpu_custom_call.1} parent=1 // pred_check_branch
      %96 = sbr.rel (0) target = $region37
    $region36: #{tpu_custom_call.1} parent=1 // pred_region
      _
    $region37: #{tpu_custom_call.1} parent=1 // pred_fallthru
      _
    // Predicated region
    $region38: #{tpu_custom_call.1} parent=1 // pred_check
      _
    $region39: #{tpu_custom_call.1} parent=1 // pred_check_branch
      %98 = sbr.rel (0) target = $region41
    $region40: #{tpu_custom_call.1} parent=1 // pred_region
      %99 = dma.done [#allocation3], 3072
    $region41: #{tpu_custom_call.1} parent=1 // pred_fallthru
      _
    // Predicated region
    $region42: #{tpu_custom_call.1} parent=1 // pred_check
      _
    $region43: #{tpu_custom_call.1} parent=1 // pred_check_branch
      %101 = sbr.rel (0) target = $region45
    $region44: #{tpu_custom_call.1} parent=1 // pred_region
      %102 = dma.done [#allocation6], 128
    $region45: #{tpu_custom_call.1} parent=1 // pred_fallthru
      _
    // Predicated region
    $region46: #{tpu_custom_call.1} parent=1 // pred_check
      _
    $region47: #{tpu_custom_call.1} parent=1 // pred_check_branch
      %104 = sbr.rel (0) target = $region49
    $region48: #{tpu_custom_call.1} parent=1 // pred_region
      %105 = dma.done [#allocation6], 128
    $region49: #{tpu_custom_call.1} parent=1 // pred_fallthru
      _
    // Predicated region
    $region50: #{tpu_custom_call.1} parent=1 // pred_check
      _
    $region51: #{tpu_custom_call.1} parent=1 // pred_check_branch
      %107 = sbr.rel (0) target = $region53
    $region52: #{tpu_custom_call.1} parent=1 // pred_region
      %108 = dma.done [#allocation9], 6144
    $region53: #{tpu_custom_call.1} parent=1 // pred_fallthru
      _
    // Predicated region
    $region54: #{tpu_custom_call.1} parent=1 // pred_check
      _
    $region55: #{tpu_custom_call.1} parent=1 // pred_check_branch
      %110 = sbr.rel (0) target = $region57
    $region56: #{tpu_custom_call.1} parent=1 // pred_region
      %111 = dma.done [#allocation9], 6144
    $region57: #{tpu_custom_call.1} parent=1 // pred_fallthru
      _
    // Predicated region
    $region58: #{tpu_custom_call.1} parent=1 // pred_check
      _
    $region59: #{tpu_custom_call.1} parent=1 // pred_check_branch
      %113 = sbr.rel (0) target = $region61
    $region60: #{tpu_custom_call.1} parent=1 // pred_region
      %114 = dma.done [#allocation12], 6144
    $region61: #{tpu_custom_call.1} parent=1 // pred_fallthru
      _
    %v115 = vld [vmem:[#allocation8] sm:$0xff]
    %v116 = vld [vmem:[#allocation8 + $0x8] sm:$0xff]
    %v117 = vld [vmem:[#allocation8 + $0x10] sm:$0xff]
    %v118 = vld [vmem:[#allocation8 + $0x18] sm:$0xff]
    %v119 = vld [vmem:[#allocation8 + $0x20] sm:$0xff]
    %v120 = vld [vmem:[#allocation8 + $0x28] sm:$0xff]
    %v121 = vld [vmem:[#allocation8 + $0x30] sm:$0xff]
    %v122 = vld [vmem:[#allocation8 + $0x38] sm:$0xff]
    %v123 = vld [vmem:[#allocation8 + $0x40] sm:$0xff]
    %v124 = vld [vmem:[#allocation8 + $0x48] sm:$0xff]
    %v125 = vld [vmem:[#allocation8 + $0x50] sm:$0xff]
    %v126 = vld [vmem:[#allocation8 + $0x58] sm:$0xff]
    %v127 = vld [vmem:[#allocation8 + $0x60] sm:$0xff]
    %v128 = vld [vmem:[#allocation8 + $0x68] sm:$0xff]
    %v129 = vld [vmem:[#allocation8 + $0x70] sm:$0xff]
    %v130 = vld [vmem:[#allocation8 + $0x78] sm:$0xff]
    %v131 = vld [vmem:[#allocation8 + $0x80] sm:$0xff]
    %v132 = vld [vmem:[#allocation8 + $0x88] sm:$0xff]
    %v133 = vld [vmem:[#allocation8 + $0x90] sm:$0xff]
    %v134 = vld [vmem:[#allocation8 + $0x98] sm:$0xff]
    %v135 = vld [vmem:[#allocation8 + $0xa0] sm:$0xff]
    %v136 = vld [vmem:[#allocation8 + $0xa8] sm:$0xff]
    %v137 = vld [vmem:[#allocation8 + $0xb0] sm:$0xff]
    %v138 = vld [vmem:[#allocation8 + $0xb8] sm:$0xff]
    %v139 = vld [vmem:[#allocation8 + $0xc0] sm:$0xff]
    %v140 = vld [vmem:[#allocation8 + $0xc8] sm:$0xff]
    %v141 = vld [vmem:[#allocation8 + $0xd0] sm:$0xff]
    %v142 = vld [vmem:[#allocation8 + $0xd8] sm:$0xff]
    %v143 = vld [vmem:[#allocation8 + $0xe0] sm:$0xff]
    %v144 = vld [vmem:[#allocation8 + $0xe8] sm:$0xff]
    %v145 = vld [vmem:[#allocation8 + $0xf0] sm:$0xff]
    %v146 = vld [vmem:[#allocation8 + $0xf8] sm:$0xff]
    %v147 = vld [vmem:[#allocation8 + $0x100] sm:$0xff]
    %v148 = vld [vmem:[#allocation8 + $0x108] sm:$0xff]
    %v149 = vld [vmem:[#allocation8 + $0x110] sm:$0xff]
    %v150 = vld [vmem:[#allocation8 + $0x118] sm:$0xff]
    %v151 = vld [vmem:[#allocation8 + $0x120] sm:$0xff]
    %v152 = vld [vmem:[#allocation8 + $0x128] sm:$0xff]
    %v153 = vld [vmem:[#allocation8 + $0x130] sm:$0xff]
    %v154 = vld [vmem:[#allocation8 + $0x138] sm:$0xff]
    %v155 = vld [vmem:[#allocation8 + $0x140] sm:$0xff]
    %v156 = vld [vmem:[#allocation8 + $0x148] sm:$0xff]
    %v157 = vld [vmem:[#allocation8 + $0x150] sm:$0xff]
    %v158 = vld [vmem:[#allocation8 + $0x158] sm:$0xff]
    %v159 = vld [vmem:[#allocation8 + $0x160] sm:$0xff]
    %v160 = vld [vmem:[#allocation8 + $0x168] sm:$0xff]
    %v161 = vld [vmem:[#allocation8 + $0x170] sm:$0xff]
    %v162 = vld [vmem:[#allocation8 + $0x178] sm:$0xff]
    %v163 = vld [vmem:[#allocation10] sm:$0xff]
    %v164 = vld [vmem:[#allocation10 + $0x8] sm:$0xff]
    %v165 = vld [vmem:[#allocation10 + $0x10] sm:$0xff]
    %v166 = vld [vmem:[#allocation10 + $0x18] sm:$0xff]
    %v167 = vld [vmem:[#allocation10 + $0x20] sm:$0xff]
    %v168 = vld [vmem:[#allocation10 + $0x28] sm:$0xff]
    %v169 = vld [vmem:[#allocation10 + $0x30] sm:$0xff]
    %v170 = vld [vmem:[#allocation10 + $0x38] sm:$0xff]
    %v171 = vld [vmem:[#allocation10 + $0x40] sm:$0xff]
    %v172 = vld [vmem:[#allocation10 + $0x48] sm:$0xff]
    %v173 = vld [vmem:[#allocation10 + $0x50] sm:$0xff]
    %v174 = vld [vmem:[#allocation10 + $0x58] sm:$0xff]
    %v175 = vld [vmem:[#allocation10 + $0x60] sm:$0xff]
    %v176 = vld [vmem:[#allocation10 + $0x68] sm:$0xff]
    %v177 = vld [vmem:[#allocation10 + $0x70] sm:$0xff]
    %v178 = vld [vmem:[#allocation10 + $0x78] sm:$0xff]
    %v179 = vld [vmem:[#allocation10 + $0x80] sm:$0xff]
    %v180 = vld [vmem:[#allocation10 + $0x88] sm:$0xff]
    %v181 = vld [vmem:[#allocation10 + $0x90] sm:$0xff]
    %v182 = vld [vmem:[#allocation10 + $0x98] sm:$0xff]
    %v183 = vld [vmem:[#allocation10 + $0xa0] sm:$0xff]
    %v184 = vld [vmem:[#allocation10 + $0xa8] sm:$0xff]
    %v185 = vld [vmem:[#allocation10 + $0xb0] sm:$0xff]
    %v186 = vld [vmem:[#allocation10 + $0xb8] sm:$0xff]
    %v187 = vld [vmem:[#allocation10 + $0xc0] sm:$0xff]
    %v188 = vld [vmem:[#allocation10 + $0xc8] sm:$0xff]
    %v189 = vld [vmem:[#allocation10 + $0xd0] sm:$0xff]
    %v190 = vld [vmem:[#allocation10 + $0xd8] sm:$0xff]
    %v191 = vld [vmem:[#allocation10 + $0xe0] sm:$0xff]
    %v192 = vld [vmem:[#allocation10 + $0xe8] sm:$0xff]
    %v193 = vld [vmem:[#allocation10 + $0xf0] sm:$0xff]
    %v194 = vld [vmem:[#allocation10 + $0xf8] sm:$0xff]
    %v195 = vld [vmem:[#allocation10 + $0x100] sm:$0xff]
    %v196 = vld [vmem:[#allocation10 + $0x108] sm:$0xff]
    %v197 = vld [vmem:[#allocation10 + $0x110] sm:$0xff]
    %v198 = vld [vmem:[#allocation10 + $0x118] sm:$0xff]
    %v199 = vld [vmem:[#allocation10 + $0x120] sm:$0xff]
    %v200 = vld [vmem:[#allocation10 + $0x128] sm:$0xff]
    %v201 = vld [vmem:[#allocation10 + $0x130] sm:$0xff]
    %v202 = vld [vmem:[#allocation10 + $0x138] sm:$0xff]
    %v203 = vld [vmem:[#allocation10 + $0x140] sm:$0xff]
    %v204 = vld [vmem:[#allocation10 + $0x148] sm:$0xff]
    %v205 = vld [vmem:[#allocation10 + $0x150] sm:$0xff]
    %v206 = vld [vmem:[#allocation10 + $0x158] sm:$0xff]
    %v207 = vld [vmem:[#allocation10 + $0x160] sm:$0xff]
    %v208 = vld [vmem:[#allocation10 + $0x168] sm:$0xff]
    %v209 = vld [vmem:[#allocation10 + $0x170] sm:$0xff]
    %v210 = vld [vmem:[#allocation10 + $0x178] sm:$0xff]
    %v211 = vld [vmem:[#allocation11] sm:$0xff]
    %v212 = vld [vmem:[#allocation11 + $0x8] sm:$0xff]
    %v213 = vld [vmem:[#allocation11 + $0x10] sm:$0xff]
    %v214 = vld [vmem:[#allocation11 + $0x18] sm:$0xff]
    %v215 = vld [vmem:[#allocation11 + $0x20] sm:$0xff]
    %v216 = vld [vmem:[#allocation11 + $0x28] sm:$0xff]
    %v217 = vld [vmem:[#allocation11 + $0x30] sm:$0xff]
    %v218 = vld [vmem:[#allocation11 + $0x38] sm:$0xff]
    %v219 = vld [vmem:[#allocation11 + $0x40] sm:$0xff]
    %v220 = vld [vmem:[#allocation11 + $0x48] sm:$0xff]
    %v221 = vld [vmem:[#allocation11 + $0x50] sm:$0xff]
    %v222 = vld [vmem:[#allocation11 + $0x58] sm:$0xff]
    %v223 = vld [vmem:[#allocation11 + $0x60] sm:$0xff]
    %v224 = vld [vmem:[#allocation11 + $0x68] sm:$0xff]
    %v225 = vld [vmem:[#allocation11 + $0x70] sm:$0xff]
    %v226 = vld [vmem:[#allocation11 + $0x78] sm:$0xff]
    %v227 = vld [vmem:[#allocation11 + $0x80] sm:$0xff]
    %v228 = vld [vmem:[#allocation11 + $0x88] sm:$0xff]
    %v229 = vld [vmem:[#allocation11 + $0x90] sm:$0xff]
    %v230 = vld [vmem:[#allocation11 + $0x98] sm:$0xff]
    %v231 = vld [vmem:[#allocation11 + $0xa0] sm:$0xff]
    %v232 = vld [vmem:[#allocation11 + $0xa8] sm:$0xff]
    %v233 = vld [vmem:[#allocation11 + $0xb0] sm:$0xff]
    %v234 = vld [vmem:[#allocation11 + $0xb8] sm:$0xff]
    %v235 = vld [vmem:[#allocation11 + $0xc0] sm:$0xff]
    %v236 = vld [vmem:[#allocation11 + $0xc8] sm:$0xff]
    %v237 = vld [vmem:[#allocation11 + $0xd0] sm:$0xff]
    %v238 = vld [vmem:[#allocation11 + $0xd8] sm:$0xff]
    %v239 = vld [vmem:[#allocation11 + $0xe0] sm:$0xff]
    %v240 = vld [vmem:[#allocation11 + $0xe8] sm:$0xff]
    %v241 = vld [vmem:[#allocation11 + $0xf0] sm:$0xff]
    %v242 = vld [vmem:[#allocation11 + $0xf8] sm:$0xff]
    %v243 = vld [vmem:[#allocation11 + $0x100] sm:$0xff]
    %v244 = vld [vmem:[#allocation11 + $0x108] sm:$0xff]
    %v245 = vld [vmem:[#allocation11 + $0x110] sm:$0xff]
    %v246 = vld [vmem:[#allocation11 + $0x118] sm:$0xff]
    %v247 = vld [vmem:[#allocation11 + $0x120] sm:$0xff]
    %v248 = vld [vmem:[#allocation11 + $0x128] sm:$0xff]
    %v249 = vld [vmem:[#allocation11 + $0x130] sm:$0xff]
    %v250 = vld [vmem:[#allocation11 + $0x138] sm:$0xff]
    %v251 = vld [vmem:[#allocation11 + $0x140] sm:$0xff]
    %v252 = vld [vmem:[#allocation11 + $0x148] sm:$0xff]
    %v253 = vld [vmem:[#allocation11 + $0x150] sm:$0xff]
    %v254 = vld [vmem:[#allocation11 + $0x158] sm:$0xff]
    %v255 = vld [vmem:[#allocation11 + $0x160] sm:$0xff]
    %v256 = vld [vmem:[#allocation11 + $0x168] sm:$0xff]
    %v257 = vld [vmem:[#allocation11 + $0x170] sm:$0xff]
    %v258 = vld [vmem:[#allocation11 + $0x178] sm:$0xff]
    %v259 = vld [vmem:[%s6] sm:$0x7]
    %v261 = vlaneseq
    %v262 = vshrl.u32 %v261, 7
    %v263 = vsub.s32 0, %v262
    %v264 = vrot.slane %v259, %v263
    %v265 = vlaneseq
    %v266 = vshrl.u32 %v265, 7
    %v267 = vsub.s32 1, %v266
    %v268 = vrot.slane %v259, %v267
    %v269 = vlaneseq
    %v270 = vshrl.u32 %v269, 7
    %v271 = vsub.s32 2, %v270
    %v272 = vrot.slane %v259, %v271
    %v276 = vld [vmem:[%s7] sm:$0x1]
    %v278 = vlaneseq
    %v279 = vshrl.u32 %v278, 7
    %v280 = vsub.s32 0, %v279
    %v281 = vrot.slane %v276, %v280
    %v283 = vld [vmem:[%s8] sm:$0x1]
    %v285 = vlaneseq
    %v286 = vshrl.u32 %v285, 7
    %v287 = vsub.s32 0, %v286
    %v288 = vrot.slane %v283, %v287
    %v290 = vld [vmem:[#allocation5] sm:$0xff]
    %v291 = vld [vmem:[#allocation7] sm:$0xff]
    %292 = vmatprep.subr.mxu0 %v161
    %293 = vmatpush1.msra.mxu0 %v160
    %294 = vmatprep.subr.mxu0 %v158
    %295 = vmatpush1.msra.mxu0 %v157
    %296 = vmatprep.subr.mxu0 %v155
    %297 = vmatpush1.msra.mxu0 %v154
    %298 = vmatprep.subr.mxu0 %v152
    %299 = vmatpush1.msra.mxu0 %v151
    %300 = vmatprep.subr.mxu0 %v149
    %301 = vmatpush1.msra.mxu0 %v148
    %302 = vmatprep.subr.mxu0 %v146
    %303 = vmatpush1.msra.mxu0 %v145
    %304 = vmatprep.subr.mxu0 %v143
    %305 = vmatpush1.msra.mxu0 %v142
    %306 = vmatprep.subr.mxu0 %v140
    %307 = vmatpush1.msra.mxu0 %v139
    %308 = vmatprep.subr.mxu0 %v137
    %309 = vmatpush1.msra.mxu0 %v136
    %310 = vmatprep.subr.mxu0 %v134
    %311 = vmatpush1.msra.mxu0 %v133
    %312 = vmatprep.subr.mxu0 %v131
    %313 = vmatpush1.msra.mxu0 %v130
    %314 = vmatprep.subr.mxu0 %v128
    %315 = vmatpush1.msra.mxu0 %v127
    %316 = vmatprep.subr.mxu0 %v125
    %317 = vmatpush1.msra.mxu0 %v124
    %318 = vmatprep.subr.mxu0 %v122
    %319 = vmatpush1.msra.mxu0 %v121
    %320 = vmatprep.subr.mxu0 %v119
    %321 = vmatpush1.msra.mxu0 %v118
    %322 = vmatprep.subr.mxu0 %v116
    %323 = vmatpush1.msra.mxu0 %v115
    %324 = vmatprep.subr.mxu0 0.0
    %325 = vmatpush2.msra.mxu0 0.0
    %326 = vmatprep.subr.mxu0 0.0
    %327 = vmatpush2.msra.mxu0 0.0
    %328 = vmatprep.subr.mxu0 0.0
    %329 = vmatpush2.msra.mxu0 0.0
    %330 = vmatprep.subr.mxu0 0.0
    %331 = vmatpush2.msra.mxu0 0.0
    %332 = vmatprep.subr.mxu0 0.0
    %333 = vmatpush2.msra.mxu0 0.0
    %334 = vmatprep.subr.mxu0 0.0
    %335 = vmatpush2.msra.mxu0 0.0
    %336 = vmatprep.subr.mxu0 0.0
    %337 = vmatpush2.msra.mxu0 0.0
    %338 = vmatprep.subr.mxu0 0.0
    %339 = vmatpush2.msra.mxu0 0.0
    %340 = vmatprep.subr.mxu0 0.0
    %341 = vmatpush2.msra.mxu0 0.0
    %342 = vmatprep.subr.mxu0 0.0
    %343 = vmatpush2.msra.mxu0 0.0
    %344 = vmatprep.subr.mxu0 0.0
    %345 = vmatpush2.msra.mxu0 0.0
    %346 = vmatprep.subr.mxu0 0.0
    %347 = vmatpush2.msra.mxu0 0.0
    %348 = vmatprep.subr.mxu0 0.0
    %349 = vmatpush2.msra.mxu0 0.0
    %350 = vmatprep.subr.mxu0 0.0
    %351 = vmatpush2.msra.mxu0 0.0
    %352 = vmatprep.subr.mxu0 0.0
    %353 = vmatpush2.msra.mxu0 0.0
    %354 = vmatprep.subr.mxu0 0.0
    %355 = vmatpush2.msra.mxu0 0.0
    %356 = vmatprep.mubr.f32.mxu0 0.0
    %357 = vmatmul.mubr.f32.gmra.mxu0 %v290
    %v358 = vpop.f32.mrf.mxu0
    %v359 = vadd.f32 0.0, %v358
    %v360 = vpop.f32.mrf.mxu0
    %v361 = vadd.f32 0.0, %v360
    %362 = vdwg.mxu0
    %363 = vmatprep.subr.mxu0 0.0
    %364 = vmatpush1.msra.mxu0 %v162
    %365 = vmatprep.subr.mxu0 0.0
    %366 = vmatpush1.msra.mxu0 %v159
    %367 = vmatprep.subr.mxu0 0.0
    %368 = vmatpush1.msra.mxu0 %v156
    %369 = vmatprep.subr.mxu0 0.0
    %370 = vmatpush1.msra.mxu0 %v153
    %371 = vmatprep.subr.mxu0 0.0
    %372 = vmatpush1.msra.mxu0 %v150
    %373 = vmatprep.subr.mxu0 0.0
    %374 = vmatpush1.msra.mxu0 %v147
    %375 = vmatprep.subr.mxu0 0.0
    %376 = vmatpush1.msra.mxu0 %v144
    %377 = vmatprep.subr.mxu0 0.0
    %378 = vmatpush1.msra.mxu0 %v141
    %379 = vmatprep.subr.mxu0 0.0
    %380 = vmatpush1.msra.mxu0 %v138
    %381 = vmatprep.subr.mxu0 0.0
    %382 = vmatpush1.msra.mxu0 %v135
    %383 = vmatprep.subr.mxu0 0.0
    %384 = vmatpush1.msra.mxu0 %v132
    %385 = vmatprep.subr.mxu0 0.0
    %386 = vmatpush1.msra.mxu0 %v129
    %387 = vmatprep.subr.mxu0 0.0
    %388 = vmatpush1.msra.mxu0 %v126
    %389 = vmatprep.subr.mxu0 0.0
    %390 = vmatpush1.msra.mxu0 %v123
    %391 = vmatprep.subr.mxu0 0.0
    %392 = vmatpush1.msra.mxu0 %v120
    %393 = vmatprep.subr.mxu0 0.0
    %394 = vmatpush1.msra.mxu0 %v117
    %395 = vmatprep.subr.mxu0 0.0
    %396 = vmatpush2.msra.mxu0 0.0
    %397 = vmatprep.subr.mxu0 0.0
    %398 = vmatpush2.msra.mxu0 0.0
    %399 = vmatprep.subr.mxu0 0.0
    %400 = vmatpush2.msra.mxu0 0.0
    %401 = vmatprep.subr.mxu0 0.0
    %402 = vmatpush2.msra.mxu0 0.0
    %403 = vmatprep.subr.mxu0 0.0
    %404 = vmatpush2.msra.mxu0 0.0
    %405 = vmatprep.subr.mxu0 0.0
    %406 = vmatpush2.msra.mxu0 0.0
    %407 = vmatprep.subr.mxu0 0.0
    %408 = vmatpush2.msra.mxu0 0.0
    %409 = vmatprep.subr.mxu0 0.0
    %410 = vmatpush2.msra.mxu0 0.0
    %411 = vmatprep.subr.mxu0 0.0
    %412 = vmatpush2.msra.mxu0 0.0
    %413 = vmatprep.subr.mxu0 0.0
    %414 = vmatpush2.msra.mxu0 0.0
    %415 = vmatprep.subr.mxu0 0.0
    %416 = vmatpush2.msra.mxu0 0.0
    %417 = vmatprep.subr.mxu0 0.0
    %418 = vmatpush2.msra.mxu0 0.0
    %419 = vmatprep.subr.mxu0 0.0
    %420 = vmatpush2.msra.mxu0 0.0
    %421 = vmatprep.subr.mxu0 0.0
    %422 = vmatpush2.msra.mxu0 0.0
    %423 = vmatprep.subr.mxu0 0.0
    %424 = vmatpush2.msra.mxu0 0.0
    %425 = vmatprep.subr.mxu0 0.0
    %426 = vmatpush2.msra.mxu0 0.0
    %427 = vmatprep.mubr.f32.mxu0 0.0
    %428 = vmatmul.mubr.f32.gmra.mxu0 %v290
    %v429 = vpop.f32.mrf.mxu0
    %v430 = vadd.f32 0.0, %v429
    %v431 = vpop.f32.mrf.mxu0
    %432 = vdwg.mxu0
    %433 = vmatprep.subr.mxu0 %v209
    %434 = vmatpush1.msra.mxu0 %v208
    %435 = vmatprep.subr.mxu0 %v206
    %436 = vmatpush1.msra.mxu0 %v205
    %437 = vmatprep.subr.mxu0 %v203
    %438 = vmatpush1.msra.mxu0 %v202
    %439 = vmatprep.subr.mxu0 %v200
    %440 = vmatpush1.msra.mxu0 %v199
    %441 = vmatprep.subr.mxu0 %v197
    %442 = vmatpush1.msra.mxu0 %v196
    %443 = vmatprep.subr.mxu0 %v194
    %444 = vmatpush1.msra.mxu0 %v193
    %445 = vmatprep.subr.mxu0 %v191
    %446 = vmatpush1.msra.mxu0 %v190
    %447 = vmatprep.subr.mxu0 %v188
    %448 = vmatpush1.msra.mxu0 %v187
    %449 = vmatprep.subr.mxu0 %v185
    %450 = vmatpush1.msra.mxu0 %v184
    %451 = vmatprep.subr.mxu0 %v182
    %452 = vmatpush1.msra.mxu0 %v181
    %453 = vmatprep.subr.mxu0 %v179
    %454 = vmatpush1.msra.mxu0 %v178
    %455 = vmatprep.subr.mxu0 %v176
    %456 = vmatpush1.msra.mxu0 %v175
    %457 = vmatprep.subr.mxu0 %v173
    %458 = vmatpush1.msra.mxu0 %v172
    %459 = vmatprep.subr.mxu0 %v170
    %460 = vmatpush1.msra.mxu0 %v169
    %461 = vmatprep.subr.mxu0 %v167
    %462 = vmatpush1.msra.mxu0 %v166
    %463 = vmatprep.subr.mxu0 %v164
    %464 = vmatpush1.msra.mxu0 %v163
    %465 = vmatprep.subr.mxu0 0.0
    %466 = vmatpush2.msra.mxu0 0.0
    %467 = vmatprep.subr.mxu0 0.0
    %468 = vmatpush2.msra.mxu0 0.0
    %469 = vmatprep.subr.mxu0 0.0
    %470 = vmatpush2.msra.mxu0 0.0
    %471 = vmatprep.subr.mxu0 0.0
    %472 = vmatpush2.msra.mxu0 0.0
    %473 = vmatprep.subr.mxu0 0.0
    %474 = vmatpush2.msra.mxu0 0.0
    %475 = vmatprep.subr.mxu0 0.0
    %476 = vmatpush2.msra.mxu0 0.0
    %477 = vmatprep.subr.mxu0 0.0
    %478 = vmatpush2.msra.mxu0 0.0
    %479 = vmatprep.subr.mxu0 0.0
    %480 = vmatpush2.msra.mxu0 0.0
    %481 = vmatprep.subr.mxu0 0.0
    %482 = vmatpush2.msra.mxu0 0.0
    %483 = vmatprep.subr.mxu0 0.0
    %484 = vmatpush2.msra.mxu0 0.0
    %485 = vmatprep.subr.mxu0 0.0
    %486 = vmatpush2.msra.mxu0 0.0
    %487 = vmatprep.subr.mxu0 0.0
    %488 = vmatpush2.msra.mxu0 0.0
    %489 = vmatprep.subr.mxu0 0.0
    %490 = vmatpush2.msra.mxu0 0.0
    %491 = vmatprep.subr.mxu0 0.0
    %492 = vmatpush2.msra.mxu0 0.0
    %493 = vmatprep.subr.mxu0 0.0
    %494 = vmatpush2.msra.mxu0 0.0
    %495 = vmatprep.subr.mxu0 0.0
    %496 = vmatpush2.msra.mxu0 0.0
    %497 = vmatprep.mubr.f32.mxu0 0.0
    %498 = vmatmul.mubr.f32.gmra.mxu0 %v291
    %v499 = vpop.f32.mrf.mxu0
    %v500 = vadd.f32 0.0, %v499
    %v501 = vpop.f32.mrf.mxu0
    %v502 = vadd.f32 0.0, %v501
    %503 = vdwg.mxu0
    %504 = vmatprep.subr.mxu0 0.0
    %505 = vmatpush1.msra.mxu0 %v210
    %506 = vmatprep.subr.mxu0 0.0
    %507 = vmatpush1.msra.mxu0 %v207
    %508 = vmatprep.subr.mxu0 0.0
    %509 = vmatpush1.msra.mxu0 %v204
    %510 = vmatprep.subr.mxu0 0.0
    %511 = vmatpush1.msra.mxu0 %v201
    %512 = vmatprep.subr.mxu0 0.0
    %513 = vmatpush1.msra.mxu0 %v198
    %514 = vmatprep.subr.mxu0 0.0
    %515 = vmatpush1.msra.mxu0 %v195
    %516 = vmatprep.subr.mxu0 0.0
    %517 = vmatpush1.msra.mxu0 %v192
    %518 = vmatprep.subr.mxu0 0.0
    %519 = vmatpush1.msra.mxu0 %v189
    %520 = vmatprep.subr.mxu0 0.0
    %521 = vmatpush1.msra.mxu0 %v186
    %522 = vmatprep.subr.mxu0 0.0
    %523 = vmatpush1.msra.mxu0 %v183
    %524 = vmatprep.subr.mxu0 0.0
    %525 = vmatpush1.msra.mxu0 %v180
    %526 = vmatprep.subr.mxu0 0.0
    %527 = vmatpush1.msra.mxu0 %v177
    %528 = vmatprep.subr.mxu0 0.0
    %529 = vmatpush1.msra.mxu0 %v174
    %530 = vmatprep.subr.mxu0 0.0
    %531 = vmatpush1.msra.mxu0 %v171
    %532 = vmatprep.subr.mxu0 0.0
    %533 = vmatpush1.msra.mxu0 %v168
    %534 = vmatprep.subr.mxu0 0.0
    %535 = vmatpush1.msra.mxu0 %v165
    %536 = vmatprep.subr.mxu0 0.0
    %537 = vmatpush2.msra.mxu0 0.0
    %538 = vmatprep.subr.mxu0 0.0
    %539 = vmatpush2.msra.mxu0 0.0
    %540 = vmatprep.subr.mxu0 0.0
    %541 = vmatpush2.msra.mxu0 0.0
    %542 = vmatprep.subr.mxu0 0.0
    %543 = vmatpush2.msra.mxu0 0.0
    %544 = vmatprep.subr.mxu0 0.0
    %545 = vmatpush2.msra.mxu0 0.0
    %546 = vmatprep.subr.mxu0 0.0
    %547 = vmatpush2.msra.mxu0 0.0
    %548 = vmatprep.subr.mxu0 0.0
    %549 = vmatpush2.msra.mxu0 0.0
    %550 = vmatprep.subr.mxu0 0.0
    %551 = vmatpush2.msra.mxu0 0.0
    %552 = vmatprep.subr.mxu0 0.0
    %553 = vmatpush2.msra.mxu0 0.0
    %554 = vmatprep.subr.mxu0 0.0
    %555 = vmatpush2.msra.mxu0 0.0
    %556 = vmatprep.subr.mxu0 0.0
    %557 = vmatpush2.msra.mxu0 0.0
    %558 = vmatprep.subr.mxu0 0.0
    %559 = vmatpush2.msra.mxu0 0.0
    %560 = vmatprep.subr.mxu0 0.0
    %561 = vmatpush2.msra.mxu0 0.0
    %562 = vmatprep.subr.mxu0 0.0
    %563 = vmatpush2.msra.mxu0 0.0
    %564 = vmatprep.subr.mxu0 0.0
    %565 = vmatpush2.msra.mxu0 0.0
    %566 = vmatprep.subr.mxu0 0.0
    %567 = vmatpush2.msra.mxu0 0.0
    %568 = vmatprep.mubr.f32.mxu0 0.0
    %569 = vmatmul.mubr.f32.gmra.mxu0 %v291
    %v570 = vpop.f32.mrf.mxu0
    %v571 = vadd.f32 0.0, %v570
    %v572 = vpop.f32.mrf.mxu0
    %573 = vdwg.mxu0
    %v574 = vld [vmem:[#allocation2] sm:$0xff]
    %v575 = vld [vmem:[#allocation2 + $0x8] sm:$0xff]
    %v576 = vld [vmem:[#allocation2 + $0x10] sm:$0xff]
    %v577 = vadd.f32 %v574, %v359
    %v578 = vxor.u32 %v577, 2147483648
    %v579 = vmul.f32 %v578, 1.442695
    %v580 = vpow.pop %v579
    %v581 = vadd.f32 %v580, 1.0
    %v582 = vrcp.pop %v581
    %v583 = vmul.f32 1.0, %v582
    %v584 = vadd.f32 %v575, %v361
    %v585 = vxor.u32 %v584, 2147483648
    %v586 = vmul.f32 %v585, 1.442695
    %v587 = vpow.pop %v586
    %v588 = vadd.f32 %v587, 1.0
    %v589 = vrcp.pop %v588
    %v590 = vmul.f32 1.0, %v589
    %v591 = vadd.f32 %v430, %v281
    %v592 = vmul.f32 %v583, %v591
    %v593 = vadd.f32 %v576, %v592
    %v594 = vtanh.pop %v593
    %v595 = vsub.f32 1.0, %v590
    %v596 = vmul.f32 %v595, %v594
    %v597 = vmul.f32 %v590, %v290
    %v598 = vadd.f32 %v596, %v597
    %599 = vmatprep.subr.mxu0 %v161
    %600 = vmatpush1.msra.mxu0 %v160
    %601 = vmatprep.subr.mxu0 %v158
    %602 = vmatpush1.msra.mxu0 %v157
    %603 = vmatprep.subr.mxu0 %v155
    %604 = vmatpush1.msra.mxu0 %v154
    %605 = vmatprep.subr.mxu0 %v152
    %606 = vmatpush1.msra.mxu0 %v151
    %607 = vmatprep.subr.mxu0 %v149
    %608 = vmatpush1.msra.mxu0 %v148
    %609 = vmatprep.subr.mxu0 %v146
    %610 = vmatpush1.msra.mxu0 %v145
    %611 = vmatprep.subr.mxu0 %v143
    %612 = vmatpush1.msra.mxu0 %v142
    %613 = vmatprep.subr.mxu0 %v140
    %614 = vmatpush1.msra.mxu0 %v139
    %615 = vmatprep.subr.mxu0 %v137
    %616 = vmatpush1.msra.mxu0 %v136
    %617 = vmatprep.subr.mxu0 %v134
    %618 = vmatpush1.msra.mxu0 %v133
    %619 = vmatprep.subr.mxu0 %v131
    %620 = vmatpush1.msra.mxu0 %v130
    %621 = vmatprep.subr.mxu0 %v128
    %622 = vmatpush1.msra.mxu0 %v127
    %623 = vmatprep.subr.mxu0 %v125
    %624 = vmatpush1.msra.mxu0 %v124
    %625 = vmatprep.subr.mxu0 %v122
    %626 = vmatpush1.msra.mxu0 %v121
    %627 = vmatprep.subr.mxu0 %v119
    %628 = vmatpush1.msra.mxu0 %v118
    %629 = vmatprep.subr.mxu0 %v116
    %630 = vmatpush1.msra.mxu0 %v115
    %631 = vmatprep.subr.mxu0 0.0
    %632 = vmatpush2.msra.mxu0 0.0
    %633 = vmatprep.subr.mxu0 0.0
    %634 = vmatpush2.msra.mxu0 0.0
    %635 = vmatprep.subr.mxu0 0.0
    %636 = vmatpush2.msra.mxu0 0.0
    %637 = vmatprep.subr.mxu0 0.0
    %638 = vmatpush2.msra.mxu0 0.0
    %639 = vmatprep.subr.mxu0 0.0
    %640 = vmatpush2.msra.mxu0 0.0
    %641 = vmatprep.subr.mxu0 0.0
    %642 = vmatpush2.msra.mxu0 0.0
    %643 = vmatprep.subr.mxu0 0.0
    %644 = vmatpush2.msra.mxu0 0.0
    %645 = vmatprep.subr.mxu0 0.0
    %646 = vmatpush2.msra.mxu0 0.0
    %647 = vmatprep.subr.mxu0 0.0
    %648 = vmatpush2.msra.mxu0 0.0
    %649 = vmatprep.subr.mxu0 0.0
    %650 = vmatpush2.msra.mxu0 0.0
    %651 = vmatprep.subr.mxu0 0.0
    %652 = vmatpush2.msra.mxu0 0.0
    %653 = vmatprep.subr.mxu0 0.0
    %654 = vmatpush2.msra.mxu0 0.0
    %655 = vmatprep.subr.mxu0 0.0
    %656 = vmatpush2.msra.mxu0 0.0
    %657 = vmatprep.subr.mxu0 0.0
    %658 = vmatpush2.msra.mxu0 0.0
    %659 = vmatprep.subr.mxu0 0.0
    %660 = vmatpush2.msra.mxu0 0.0
    %661 = vmatprep.subr.mxu0 0.0
    %662 = vmatpush2.msra.mxu0 0.0
    %663 = vmatprep.mubr.f32.mxu0 0.0
    %664 = vmatmul.mubr.f32.gmra.mxu0 %v598
    %v665 = vpop.f32.mrf.mxu0
    %v666 = vadd.f32 0.0, %v665
    %v667 = vpop.f32.mrf.mxu0
    %v668 = vadd.f32 0.0, %v667
    %669 = vdwg.mxu0
    %670 = vmatprep.subr.mxu0 0.0
    %671 = vmatpush1.msra.mxu0 %v162
    %672 = vmatprep.subr.mxu0 0.0
    %673 = vmatpush1.msra.mxu0 %v159
    %674 = vmatprep.subr.mxu0 0.0
    %675 = vmatpush1.msra.mxu0 %v156
    %676 = vmatprep.subr.mxu0 0.0
    %677 = vmatpush1.msra.mxu0 %v153
    %678 = vmatprep.subr.mxu0 0.0
    %679 = vmatpush1.msra.mxu0 %v150
    %680 = vmatprep.subr.mxu0 0.0
    %681 = vmatpush1.msra.mxu0 %v147
    %682 = vmatprep.subr.mxu0 0.0
    %683 = vmatpush1.msra.mxu0 %v144
    %684 = vmatprep.subr.mxu0 0.0
    %685 = vmatpush1.msra.mxu0 %v141
    %686 = vmatprep.subr.mxu0 0.0
    %687 = vmatpush1.msra.mxu0 %v138
    %688 = vmatprep.subr.mxu0 0.0
    %689 = vmatpush1.msra.mxu0 %v135
    %690 = vmatprep.subr.mxu0 0.0
    %691 = vmatpush1.msra.mxu0 %v132
    %692 = vmatprep.subr.mxu0 0.0
    %693 = vmatpush1.msra.mxu0 %v129
    %694 = vmatprep.subr.mxu0 0.0
    %695 = vmatpush1.msra.mxu0 %v126
    %696 = vmatprep.subr.mxu0 0.0
    %697 = vmatpush1.msra.mxu0 %v123
    %698 = vmatprep.subr.mxu0 0.0
    %699 = vmatpush1.msra.mxu0 %v120
    %700 = vmatprep.subr.mxu0 0.0
    %701 = vmatpush1.msra.mxu0 %v117
    %702 = vmatprep.subr.mxu0 0.0
    %703 = vmatpush2.msra.mxu0 0.0
    %704 = vmatprep.subr.mxu0 0.0
    %705 = vmatpush2.msra.mxu0 0.0
    %706 = vmatprep.subr.mxu0 0.0
    %707 = vmatpush2.msra.mxu0 0.0
    %708 = vmatprep.subr.mxu0 0.0
    %709 = vmatpush2.msra.mxu0 0.0
    %710 = vmatprep.subr.mxu0 0.0
    %711 = vmatpush2.msra.mxu0 0.0
    %712 = vmatprep.subr.mxu0 0.0
    %713 = vmatpush2.msra.mxu0 0.0
    %714 = vmatprep.subr.mxu0 0.0
    %715 = vmatpush2.msra.mxu0 0.0
    %716 = vmatprep.subr.mxu0 0.0
    %717 = vmatpush2.msra.mxu0 0.0
    %718 = vmatprep.subr.mxu0 0.0
    %719 = vmatpush2.msra.mxu0 0.0
    %720 = vmatprep.subr.mxu0 0.0
    %721 = vmatpush2.msra.mxu0 0.0
    %722 = vmatprep.subr.mxu0 0.0
    %723 = vmatpush2.msra.mxu0 0.0
    %724 = vmatprep.subr.mxu0 0.0
    %725 = vmatpush2.msra.mxu0 0.0
    %726 = vmatprep.subr.mxu0 0.0
    %727 = vmatpush2.msra.mxu0 0.0
    %728 = vmatprep.subr.mxu0 0.0
    %729 = vmatpush2.msra.mxu0 0.0
    %730 = vmatprep.subr.mxu0 0.0
    %731 = vmatpush2.msra.mxu0 0.0
    %732 = vmatprep.subr.mxu0 0.0
    %733 = vmatpush2.msra.mxu0 0.0
    %734 = vmatprep.mubr.f32.mxu0 0.0
    %735 = vmatmul.mubr.f32.gmra.mxu0 %v598
    %v736 = vpop.f32.mrf.mxu0
    %v737 = vadd.f32 0.0, %v736
    %v738 = vpop.f32.mrf.mxu0
    %739 = vdwg.mxu0
    %740 = vmatprep.subr.mxu0 %v257
    %741 = vmatpush1.msra.mxu0 %v256
    %742 = vmatprep.subr.mxu0 %v254
    %743 = vmatpush1.msra.mxu0 %v253
    %744 = vmatprep.subr.mxu0 %v251
    %745 = vmatpush1.msra.mxu0 %v250
    %746 = vmatprep.subr.mxu0 %v248
    %747 = vmatpush1.msra.mxu0 %v247
    %748 = vmatprep.subr.mxu0 %v245
    %749 = vmatpush1.msra.mxu0 %v244
    %750 = vmatprep.subr.mxu0 %v242
    %751 = vmatpush1.msra.mxu0 %v241
    %752 = vmatprep.subr.mxu0 %v239
    %753 = vmatpush1.msra.mxu0 %v238
    %754 = vmatprep.subr.mxu0 %v236
    %755 = vmatpush1.msra.mxu0 %v235
    %756 = vmatprep.subr.mxu0 %v233
    %757 = vmatpush1.msra.mxu0 %v232
    %758 = vmatprep.subr.mxu0 %v230
    %759 = vmatpush1.msra.mxu0 %v229
    %760 = vmatprep.subr.mxu0 %v227
    %761 = vmatpush1.msra.mxu0 %v226
    %762 = vmatprep.subr.mxu0 %v224
    %763 = vmatpush1.msra.mxu0 %v223
    %764 = vmatprep.subr.mxu0 %v221
    %765 = vmatpush1.msra.mxu0 %v220
    %766 = vmatprep.subr.mxu0 %v218
    %767 = vmatpush1.msra.mxu0 %v217
    %768 = vmatprep.subr.mxu0 %v215
    %769 = vmatpush1.msra.mxu0 %v214
    %770 = vmatprep.subr.mxu0 %v212
    %771 = vmatpush1.msra.mxu0 %v211
    %772 = vmatprep.subr.mxu0 0.0
    %773 = vmatpush2.msra.mxu0 0.0
    %774 = vmatprep.subr.mxu0 0.0
    %775 = vmatpush2.msra.mxu0 0.0
    %776 = vmatprep.subr.mxu0 0.0
    %777 = vmatpush2.msra.mxu0 0.0
    %778 = vmatprep.subr.mxu0 0.0
    %779 = vmatpush2.msra.mxu0 0.0
    %780 = vmatprep.subr.mxu0 0.0
    %781 = vmatpush2.msra.mxu0 0.0
    %782 = vmatprep.subr.mxu0 0.0
    %783 = vmatpush2.msra.mxu0 0.0
    %784 = vmatprep.subr.mxu0 0.0
    %785 = vmatpush2.msra.mxu0 0.0
    %786 = vmatprep.subr.mxu0 0.0
    %787 = vmatpush2.msra.mxu0 0.0
    %788 = vmatprep.subr.mxu0 0.0
    %789 = vmatpush2.msra.mxu0 0.0
    %790 = vmatprep.subr.mxu0 0.0
    %791 = vmatpush2.msra.mxu0 0.0
    %792 = vmatprep.subr.mxu0 0.0
    %793 = vmatpush2.msra.mxu0 0.0
    %794 = vmatprep.subr.mxu0 0.0
    %795 = vmatpush2.msra.mxu0 0.0
    %796 = vmatprep.subr.mxu0 0.0
    %797 = vmatpush2.msra.mxu0 0.0
    %798 = vmatprep.subr.mxu0 0.0
    %799 = vmatpush2.msra.mxu0 0.0
    %800 = vmatprep.subr.mxu0 0.0
    %801 = vmatpush2.msra.mxu0 0.0
    %802 = vmatprep.subr.mxu0 0.0
    %803 = vmatpush2.msra.mxu0 0.0
    %804 = vmatprep.mubr.f32.mxu0 0.0
    %805 = vmatmul.mubr.f32.gmra.mxu0 %v598
    %v806 = vpop.f32.mrf.mxu0
    %v807 = vadd.f32 %v264, %v806
    %v808 = vpop.f32.mrf.mxu0
    %v809 = vadd.f32 %v268, %v808
    %810 = vdwg.mxu0
    %811 = vmatprep.subr.mxu0 0.0
    %812 = vmatpush1.msra.mxu0 %v258
    %813 = vmatprep.subr.mxu0 0.0
    %814 = vmatpush1.msra.mxu0 %v255
    %815 = vmatprep.subr.mxu0 0.0
    %816 = vmatpush1.msra.mxu0 %v252
    %817 = vmatprep.subr.mxu0 0.0
    %818 = vmatpush1.msra.mxu0 %v249
    %819 = vmatprep.subr.mxu0 0.0
    %820 = vmatpush1.msra.mxu0 %v246
    %821 = vmatprep.subr.mxu0 0.0
    %822 = vmatpush1.msra.mxu0 %v243
    %823 = vmatprep.subr.mxu0 0.0
    %824 = vmatpush1.msra.mxu0 %v240
    %825 = vmatprep.subr.mxu0 0.0
    %826 = vmatpush1.msra.mxu0 %v237
    %827 = vmatprep.subr.mxu0 0.0
    %828 = vmatpush1.msra.mxu0 %v234
    %829 = vmatprep.subr.mxu0 0.0
    %830 = vmatpush1.msra.mxu0 %v231
    %831 = vmatprep.subr.mxu0 0.0
    %832 = vmatpush1.msra.mxu0 %v228
    %833 = vmatprep.subr.mxu0 0.0
    %834 = vmatpush1.msra.mxu0 %v225
    %835 = vmatprep.subr.mxu0 0.0
    %836 = vmatpush1.msra.mxu0 %v222
    %837 = vmatprep.subr.mxu0 0.0
    %838 = vmatpush1.msra.mxu0 %v219
    %839 = vmatprep.subr.mxu0 0.0
    %840 = vmatpush1.msra.mxu0 %v216
    %841 = vmatprep.subr.mxu0 0.0
    %842 = vmatpush1.msra.mxu0 %v213
    %843 = vmatprep.subr.mxu0 0.0
    %844 = vmatpush2.msra.mxu0 0.0
    %845 = vmatprep.subr.mxu0 0.0
    %846 = vmatpush2.msra.mxu0 0.0
    %847 = vmatprep.subr.mxu0 0.0
    %848 = vmatpush2.msra.mxu0 0.0
    %849 = vmatprep.subr.mxu0 0.0
    %850 = vmatpush2.msra.mxu0 0.0
    %851 = vmatprep.subr.mxu0 0.0
    %852 = vmatpush2.msra.mxu0 0.0
    %853 = vmatprep.subr.mxu0 0.0
    %854 = vmatpush2.msra.mxu0 0.0
    %855 = vmatprep.subr.mxu0 0.0
    %856 = vmatpush2.msra.mxu0 0.0
    %857 = vmatprep.subr.mxu0 0.0
    %858 = vmatpush2.msra.mxu0 0.0
    %859 = vmatprep.subr.mxu0 0.0
    %860 = vmatpush2.msra.mxu0 0.0
    %861 = vmatprep.subr.mxu0 0.0
    %862 = vmatpush2.msra.mxu0 0.0
    %863 = vmatprep.subr.mxu0 0.0
    %864 = vmatpush2.msra.mxu0 0.0
    %865 = vmatprep.subr.mxu0 0.0
    %866 = vmatpush2.msra.mxu0 0.0
    %867 = vmatprep.subr.mxu0 0.0
    %868 = vmatpush2.msra.mxu0 0.0
    %869 = vmatprep.subr.mxu0 0.0
    %870 = vmatpush2.msra.mxu0 0.0
    %871 = vmatprep.subr.mxu0 0.0
    %872 = vmatpush2.msra.mxu0 0.0
    %873 = vmatprep.subr.mxu0 0.0
    %874 = vmatpush2.msra.mxu0 0.0
    %875 = vmatprep.mubr.f32.mxu0 0.0
    %876 = vmatmul.mubr.f32.gmra.mxu0 %v598
    %v877 = vpop.f32.mrf.mxu0
    %v878 = vadd.f32 %v272, %v877
    %v879 = vpop.f32.mrf.mxu0
    %880 = vdwg.mxu0
    %v881 = vadd.f32 %v807, %v500
    %v882 = vxor.u32 %v881, 2147483648
    %v883 = vmul.f32 %v882, 1.442695
    %v884 = vpow.pop %v883
    %v885 = vadd.f32 %v884, 1.0
    %v886 = vrcp.pop %v885
    %v887 = vmul.f32 1.0, %v886
    %v888 = vadd.f32 %v809, %v502
    %v889 = vxor.u32 %v888, 2147483648
    %v890 = vmul.f32 %v889, 1.442695
    %v891 = vpow.pop %v890
    %v892 = vadd.f32 %v891, 1.0
    %v893 = vrcp.pop %v892
    %v894 = vmul.f32 1.0, %v893
    %v895 = vadd.f32 %v571, %v288
    %v896 = vmul.f32 %v887, %v895
    %v897 = vadd.f32 %v878, %v896
    %v898 = vtanh.pop %v897
    %v899 = vsub.f32 1.0, %v894
    %v900 = vmul.f32 %v899, %v898
    %v901 = vmul.f32 %v894, %v291
    %v902 = vadd.f32 %v900, %v901
    %903 = vmatprep.subr.mxu0 %v209
    %904 = vmatpush1.msra.mxu0 %v208
    %905 = vmatprep.subr.mxu0 %v206
    %906 = vmatpush1.msra.mxu0 %v205
    %907 = vmatprep.subr.mxu0 %v203
    %908 = vmatpush1.msra.mxu0 %v202
    %909 = vmatprep.subr.mxu0 %v200
    %910 = vmatpush1.msra.mxu0 %v199
    %911 = vmatprep.subr.mxu0 %v197
    %912 = vmatpush1.msra.mxu0 %v196
    %913 = vmatprep.subr.mxu0 %v194
    %914 = vmatpush1.msra.mxu0 %v193
    %915 = vmatprep.subr.mxu0 %v191
    %916 = vmatpush1.msra.mxu0 %v190
    %917 = vmatprep.subr.mxu0 %v188
    %918 = vmatpush1.msra.mxu0 %v187
    %919 = vmatprep.subr.mxu0 %v185
    %920 = vmatpush1.msra.mxu0 %v184
    %921 = vmatprep.subr.mxu0 %v182
    %922 = vmatpush1.msra.mxu0 %v181
    %923 = vmatprep.subr.mxu0 %v179
    %924 = vmatpush1.msra.mxu0 %v178
    %925 = vmatprep.subr.mxu0 %v176
    %926 = vmatpush1.msra.mxu0 %v175
    %927 = vmatprep.subr.mxu0 %v173
    %928 = vmatpush1.msra.mxu0 %v172
    %929 = vmatprep.subr.mxu0 %v170
    %930 = vmatpush1.msra.mxu0 %v169
    %931 = vmatprep.subr.mxu0 %v167
    %932 = vmatpush1.msra.mxu0 %v166
    %933 = vmatprep.subr.mxu0 %v164
    %934 = vmatpush1.msra.mxu0 %v163
    %935 = vmatprep.subr.mxu0 0.0
    %936 = vmatpush2.msra.mxu0 0.0
    %937 = vmatprep.subr.mxu0 0.0
    %938 = vmatpush2.msra.mxu0 0.0
    %939 = vmatprep.subr.mxu0 0.0
    %940 = vmatpush2.msra.mxu0 0.0
    %941 = vmatprep.subr.mxu0 0.0
    %942 = vmatpush2.msra.mxu0 0.0
    %943 = vmatprep.subr.mxu0 0.0
    %944 = vmatpush2.msra.mxu0 0.0
    %945 = vmatprep.subr.mxu0 0.0
    %946 = vmatpush2.msra.mxu0 0.0
    %947 = vmatprep.subr.mxu0 0.0
    %948 = vmatpush2.msra.mxu0 0.0
    %949 = vmatprep.subr.mxu0 0.0
    %950 = vmatpush2.msra.mxu0 0.0
    %951 = vmatprep.subr.mxu0 0.0
    %952 = vmatpush2.msra.mxu0 0.0
    %953 = vmatprep.subr.mxu0 0.0
    %954 = vmatpush2.msra.mxu0 0.0
    %955 = vmatprep.subr.mxu0 0.0
    %956 = vmatpush2.msra.mxu0 0.0
    %957 = vmatprep.subr.mxu0 0.0
    %958 = vmatpush2.msra.mxu0 0.0
    %959 = vmatprep.subr.mxu0 0.0
    %960 = vmatpush2.msra.mxu0 0.0
    %961 = vmatprep.subr.mxu0 0.0
    %962 = vmatpush2.msra.mxu0 0.0
    %963 = vmatprep.subr.mxu0 0.0
    %964 = vmatpush2.msra.mxu0 0.0
    %965 = vmatprep.subr.mxu0 0.0
    %966 = vmatpush2.msra.mxu0 0.0
    %967 = vmatprep.mubr.f32.mxu0 0.0
    %968 = vmatmul.mubr.f32.gmra.mxu0 %v902
    %v969 = vpop.f32.mrf.mxu0
    %v970 = vadd.f32 0.0, %v969
    %v971 = vpop.f32.mrf.mxu0
    %v972 = vadd.f32 0.0, %v971
    %973 = vdwg.mxu0
    %974 = vmatprep.subr.mxu0 0.0
    %975 = vmatpush1.msra.mxu0 %v210
    %976 = vmatprep.subr.mxu0 0.0
    %977 = vmatpush1.msra.mxu0 %v207
    %978 = vmatprep.subr.mxu0 0.0
    %979 = vmatpush1.msra.mxu0 %v204
    %980 = vmatprep.subr.mxu0 0.0
    %981 = vmatpush1.msra.mxu0 %v201
    %982 = vmatprep.subr.mxu0 0.0
    %983 = vmatpush1.msra.mxu0 %v198
    %984 = vmatprep.subr.mxu0 0.0
    %985 = vmatpush1.msra.mxu0 %v195
    %986 = vmatprep.subr.mxu0 0.0
    %987 = vmatpush1.msra.mxu0 %v192
    %988 = vmatprep.subr.mxu0 0.0
    %989 = vmatpush1.msra.mxu0 %v189
    %990 = vmatprep.subr.mxu0 0.0
    %991 = vmatpush1.msra.mxu0 %v186
    %992 = vmatprep.subr.mxu0 0.0
    %993 = vmatpush1.msra.mxu0 %v183
    %994 = vmatprep.subr.mxu0 0.0
    %995 = vmatpush1.msra.mxu0 %v180
    %996 = vmatprep.subr.mxu0 0.0
    %997 = vmatpush1.msra.mxu0 %v177
    %998 = vmatprep.subr.mxu0 0.0
    %999 = vmatpush1.msra.mxu0 %v174
    %1000 = vmatprep.subr.mxu0 0.0
    %1001 = vmatpush1.msra.mxu0 %v171
    %1002 = vmatprep.subr.mxu0 0.0
    %1003 = vmatpush1.msra.mxu0 %v168
    %1004 = vmatprep.subr.mxu0 0.0
    %1005 = vmatpush1.msra.mxu0 %v165
    %1006 = vmatprep.subr.mxu0 0.0
    %1007 = vmatpush2.msra.mxu0 0.0
    %1008 = vmatprep.subr.mxu0 0.0
    %1009 = vmatpush2.msra.mxu0 0.0
    %1010 = vmatprep.subr.mxu0 0.0
    %1011 = vmatpush2.msra.mxu0 0.0
    %1012 = vmatprep.subr.mxu0 0.0
    %1013 = vmatpush2.msra.mxu0 0.0
    %1014 = vmatprep.subr.mxu0 0.0
    %1015 = vmatpush2.msra.mxu0 0.0
    %1016 = vmatprep.subr.mxu0 0.0
    %1017 = vmatpush2.msra.mxu0 0.0
    %1018 = vmatprep.subr.mxu0 0.0
    %1019 = vmatpush2.msra.mxu0 0.0
    %1020 = vmatprep.subr.mxu0 0.0
    %1021 = vmatpush2.msra.mxu0 0.0
    %1022 = vmatprep.subr.mxu0 0.0
    %1023 = vmatpush2.msra.mxu0 0.0
    %1024 = vmatprep.subr.mxu0 0.0
    %1025 = vmatpush2.msra.mxu0 0.0
    %1026 = vmatprep.subr.mxu0 0.0
    %1027 = vmatpush2.msra.mxu0 0.0
    %1028 = vmatprep.subr.mxu0 0.0
    %1029 = vmatpush2.msra.mxu0 0.0
    %1030 = vmatprep.subr.mxu0 0.0
    %1031 = vmatpush2.msra.mxu0 0.0
    %1032 = vmatprep.subr.mxu0 0.0
    %1033 = vmatpush2.msra.mxu0 0.0
    %1034 = vmatprep.subr.mxu0 0.0
    %1035 = vmatpush2.msra.mxu0 0.0
    %1036 = vmatprep.subr.mxu0 0.0
    %1037 = vmatpush2.msra.mxu0 0.0
    %1038 = vmatprep.mubr.f32.mxu0 0.0
    %1039 = vmatmul.mubr.f32.gmra.mxu0 %v902
    %v1040 = vpop.f32.mrf.mxu0
    %v1041 = vadd.f32 0.0, %v1040
    %v1042 = vpop.f32.mrf.mxu0
    %1043 = vdwg.mxu0
    %1044 = vst [vmem:[#allocation13] sm:$0xff] %v902
    %v1045 = vld [vmem:[#allocation2 + $0x18] sm:$0xff]
    %v1046 = vld [vmem:[#allocation2 + $0x20] sm:$0xff]
    %v1047 = vld [vmem:[#allocation2 + $0x28] sm:$0xff]
    %v1048 = vadd.f32 %v1045, %v666
    %v1049 = vxor.u32 %v1048, 2147483648
    %v1050 = vmul.f32 %v1049, 1.442695
    %v1051 = vpow.pop %v1050
    %v1052 = vadd.f32 %v1051, 1.0
    %v1053 = vrcp.pop %v1052
    %v1054 = vmul.f32 1.0, %v1053
    %v1055 = vadd.f32 %v1046, %v668
    %v1056 = vxor.u32 %v1055, 2147483648
    %v1057 = vmul.f32 %v1056, 1.442695
    %v1058 = vpow.pop %v1057
    %v1059 = vadd.f32 %v1058, 1.0
    %v1060 = vrcp.pop %v1059
    %v1061 = vmul.f32 1.0, %v1060
    %v1062 = vadd.f32 %v737, %v281
    %v1063 = vmul.f32 %v1054, %v1062
    %v1064 = vadd.f32 %v1047, %v1063
    %v1065 = vtanh.pop %v1064
    %v1066 = vsub.f32 1.0, %v1061
    %v1067 = vmul.f32 %v1066, %v1065
    %v1068 = vmul.f32 %v1061, %v598
    %v1069 = vadd.f32 %v1067, %v1068
    %1070 = vmatprep.subr.mxu0 %v161
    %1071 = vmatpush1.msra.mxu0 %v160
    %1072 = vmatprep.subr.mxu0 %v158
    %1073 = vmatpush1.msra.mxu0 %v157
    %1074 = vmatprep.subr.mxu0 %v155
    %1075 = vmatpush1.msra.mxu0 %v154
    %1076 = vmatprep.subr.mxu0 %v152
    %1077 = vmatpush1.msra.mxu0 %v151
    %1078 = vmatprep.subr.mxu0 %v149
    %1079 = vmatpush1.msra.mxu0 %v148
    %1080 = vmatprep.subr.mxu0 %v146
    %1081 = vmatpush1.msra.mxu0 %v145
    %1082 = vmatprep.subr.mxu0 %v143
    %1083 = vmatpush1.msra.mxu0 %v142
    %1084 = vmatprep.subr.mxu0 %v140
    %1085 = vmatpush1.msra.mxu0 %v139
    %1086 = vmatprep.subr.mxu0 %v137
    %1087 = vmatpush1.msra.mxu0 %v136
    %1088 = vmatprep.subr.mxu0 %v134
    %1089 = vmatpush1.msra.mxu0 %v133
    %1090 = vmatprep.subr.mxu0 %v131
    %1091 = vmatpush1.msra.mxu0 %v130
    %1092 = vmatprep.subr.mxu0 %v128
    %1093 = vmatpush1.msra.mxu0 %v127
    %1094 = vmatprep.subr.mxu0 %v125
    %1095 = vmatpush1.msra.mxu0 %v124
    %1096 = vmatprep.subr.mxu0 %v122
    %1097 = vmatpush1.msra.mxu0 %v121
    %1098 = vmatprep.subr.mxu0 %v119
    %1099 = vmatpush1.msra.mxu0 %v118
    %1100 = vmatprep.subr.mxu0 %v116
    %1101 = vmatpush1.msra.mxu0 %v115
    %1102 = vmatprep.subr.mxu0 0.0
    %1103 = vmatpush2.msra.mxu0 0.0
    %1104 = vmatprep.subr.mxu0 0.0
    %1105 = vmatpush2.msra.mxu0 0.0
    %1106 = vmatprep.subr.mxu0 0.0
    %1107 = vmatpush2.msra.mxu0 0.0
    %1108 = vmatprep.subr.mxu0 0.0
    %1109 = vmatpush2.msra.mxu0 0.0
    %1110 = vmatprep.subr.mxu0 0.0
    %1111 = vmatpush2.msra.mxu0 0.0
    %1112 = vmatprep.subr.mxu0 0.0
    %1113 = vmatpush2.msra.mxu0 0.0
    %1114 = vmatprep.subr.mxu0 0.0
    %1115 = vmatpush2.msra.mxu0 0.0
    %1116 = vmatprep.subr.mxu0 0.0
    %1117 = vmatpush2.msra.mxu0 0.0
    %1118 = vmatprep.subr.mxu0 0.0
    %1119 = vmatpush2.msra.mxu0 0.0
    %1120 = vmatprep.subr.mxu0 0.0
    %1121 = vmatpush2.msra.mxu0 0.0
    %1122 = vmatprep.subr.mxu0 0.0
    %1123 = vmatpush2.msra.mxu0 0.0
    %1124 = vmatprep.subr.mxu0 0.0
    %1125 = vmatpush2.msra.mxu0 0.0
    %1126 = vmatprep.subr.mxu0 0.0
    %1127 = vmatpush2.msra.mxu0 0.0
    %1128 = vmatprep.subr.mxu0 0.0
    %1129 = vmatpush2.msra.mxu0 0.0
    %1130 = vmatprep.subr.mxu0 0.0
    %1131 = vmatpush2.msra.mxu0 0.0
    %1132 = vmatprep.subr.mxu0 0.0
    %1133 = vmatpush2.msra.mxu0 0.0
    %1134 = vmatprep.mubr.f32.mxu0 0.0
    %1135 = vmatmul.mubr.f32.gmra.mxu0 %v1069
    %v1136 = vpop.f32.mrf.mxu0
    %v1137 = vadd.f32 0.0, %v1136
    %v1138 = vpop.f32.mrf.mxu0
    %v1139 = vadd.f32 0.0, %v1138
    %1140 = vdwg.mxu0
    %1141 = vmatprep.subr.mxu0 0.0
    %1142 = vmatpush1.msra.mxu0 %v162
    %1143 = vmatprep.subr.mxu0 0.0
    %1144 = vmatpush1.msra.mxu0 %v159
    %1145 = vmatprep.subr.mxu0 0.0
    %1146 = vmatpush1.msra.mxu0 %v156
    %1147 = vmatprep.subr.mxu0 0.0
    %1148 = vmatpush1.msra.mxu0 %v153
    %1149 = vmatprep.subr.mxu0 0.0
    %1150 = vmatpush1.msra.mxu0 %v150
    %1151 = vmatprep.subr.mxu0 0.0
    %1152 = vmatpush1.msra.mxu0 %v147
    %1153 = vmatprep.subr.mxu0 0.0
    %1154 = vmatpush1.msra.mxu0 %v144
    %1155 = vmatprep.subr.mxu0 0.0
    %1156 = vmatpush1.msra.mxu0 %v141
    %1157 = vmatprep.subr.mxu0 0.0
    %1158 = vmatpush1.msra.mxu0 %v138
    %1159 = vmatprep.subr.mxu0 0.0
    %1160 = vmatpush1.msra.mxu0 %v135
    %1161 = vmatprep.subr.mxu0 0.0
    %1162 = vmatpush1.msra.mxu0 %v132
    %1163 = vmatprep.subr.mxu0 0.0
    %1164 = vmatpush1.msra.mxu0 %v129
    %1165 = vmatprep.subr.mxu0 0.0
    %1166 = vmatpush1.msra.mxu0 %v126
    %1167 = vmatprep.subr.mxu0 0.0
    %1168 = vmatpush1.msra.mxu0 %v123
    %1169 = vmatprep.subr.mxu0 0.0
    %1170 = vmatpush1.msra.mxu0 %v120
    %1171 = vmatprep.subr.mxu0 0.0
    %1172 = vmatpush1.msra.mxu0 %v117
    %1173 = vmatprep.subr.mxu0 0.0
    %1174 = vmatpush2.msra.mxu0 0.0
    %1175 = vmatprep.subr.mxu0 0.0
    %1176 = vmatpush2.msra.mxu0 0.0
    %1177 = vmatprep.subr.mxu0 0.0
    %1178 = vmatpush2.msra.mxu0 0.0
    %1179 = vmatprep.subr.mxu0 0.0
    %1180 = vmatpush2.msra.mxu0 0.0
    %1181 = vmatprep.subr.mxu0 0.0
    %1182 = vmatpush2.msra.mxu0 0.0
    %1183 = vmatprep.subr.mxu0 0.0
    %1184 = vmatpush2.msra.mxu0 0.0
    %1185 = vmatprep.subr.mxu0 0.0
    %1186 = vmatpush2.msra.mxu0 0.0
    %1187 = vmatprep.subr.mxu0 0.0
    %1188 = vmatpush2.msra.mxu0 0.0
    %1189 = vmatprep.subr.mxu0 0.0
    %1190 = vmatpush2.msra.mxu0 0.0
    %1191 = vmatprep.subr.mxu0 0.0
    %1192 = vmatpush2.msra.mxu0 0.0
    %1193 = vmatprep.subr.mxu0 0.0
    %1194 = vmatpush2.msra.mxu0 0.0
    %1195 = vmatprep.subr.mxu0 0.0
    %1196 = vmatpush2.msra.mxu0 0.0
    %1197 = vmatprep.subr.mxu0 0.0
    %1198 = vmatpush2.msra.mxu0 0.0
    %1199 = vmatprep.subr.mxu0 0.0
    %1200 = vmatpush2.msra.mxu0 0.0
    %1201 = vmatprep.subr.mxu0 0.0
    %1202 = vmatpush2.msra.mxu0 0.0
    %1203 = vmatprep.subr.mxu0 0.0
    %1204 = vmatpush2.msra.mxu0 0.0
    %1205 = vmatprep.mubr.f32.mxu0 0.0
    %1206 = vmatmul.mubr.f32.gmra.mxu0 %v1069
    %v1207 = vpop.f32.mrf.mxu0
    %v1208 = vadd.f32 0.0, %v1207
    %v1209 = vpop.f32.mrf.mxu0
    %1210 = vdwg.mxu0
    %1211 = vmatprep.subr.mxu0 %v257
    %1212 = vmatpush1.msra.mxu0 %v256
    %1213 = vmatprep.subr.mxu0 %v254
    %1214 = vmatpush1.msra.mxu0 %v253
    %1215 = vmatprep.subr.mxu0 %v251
    %1216 = vmatpush1.msra.mxu0 %v250
    %1217 = vmatprep.subr.mxu0 %v248
    %1218 = vmatpush1.msra.mxu0 %v247
    %1219 = vmatprep.subr.mxu0 %v245
    %1220 = vmatpush1.msra.mxu0 %v244
    %1221 = vmatprep.subr.mxu0 %v242
    %1222 = vmatpush1.msra.mxu0 %v241
    %1223 = vmatprep.subr.mxu0 %v239
    %1224 = vmatpush1.msra.mxu0 %v238
    %1225 = vmatprep.subr.mxu0 %v236
    %1226 = vmatpush1.msra.mxu0 %v235
    %1227 = vmatprep.subr.mxu0 %v233
    %1228 = vmatpush1.msra.mxu0 %v232
    %1229 = vmatprep.subr.mxu0 %v230
    %1230 = vmatpush1.msra.mxu0 %v229
    %1231 = vmatprep.subr.mxu0 %v227
    %1232 = vmatpush1.msra.mxu0 %v226
    %1233 = vmatprep.subr.mxu0 %v224
    %1234 = vmatpush1.msra.mxu0 %v223
    %1235 = vmatprep.subr.mxu0 %v221
    %1236 = vmatpush1.msra.mxu0 %v220
    %1237 = vmatprep.subr.mxu0 %v218
    %1238 = vmatpush1.msra.mxu0 %v217
    %1239 = vmatprep.subr.mxu0 %v215
    %1240 = vmatpush1.msra.mxu0 %v214
    %1241 = vmatprep.subr.mxu0 %v212
    %1242 = vmatpush1.msra.mxu0 %v211
    %1243 = vmatprep.subr.mxu0 0.0
    %1244 = vmatpush2.msra.mxu0 0.0
    %1245 = vmatprep.subr.mxu0 0.0
    %1246 = vmatpush2.msra.mxu0 0.0
    %1247 = vmatprep.subr.mxu0 0.0
    %1248 = vmatpush2.msra.mxu0 0.0
    %1249 = vmatprep.subr.mxu0 0.0
    %1250 = vmatpush2.msra.mxu0 0.0
    %1251 = vmatprep.subr.mxu0 0.0
    %1252 = vmatpush2.msra.mxu0 0.0
    %1253 = vmatprep.subr.mxu0 0.0
    %1254 = vmatpush2.msra.mxu0 0.0
    %1255 = vmatprep.subr.mxu0 0.0
    %1256 = vmatpush2.msra.mxu0 0.0
    %1257 = vmatprep.subr.mxu0 0.0
    %1258 = vmatpush2.msra.mxu0 0.0
    %1259 = vmatprep.subr.mxu0 0.0
    %1260 = vmatpush2.msra.mxu0 0.0
    %1261 = vmatprep.subr.mxu0 0.0
    %1262 = vmatpush2.msra.mxu0 0.0
    %1263 = vmatprep.subr.mxu0 0.0
    %1264 = vmatpush2.msra.mxu0 0.0
    %1265 = vmatprep.subr.mxu0 0.0
    %1266 = vmatpush2.msra.mxu0 0.0
    %1267 = vmatprep.subr.mxu0 0.0
    %1268 = vmatpush2.msra.mxu0 0.0
    %1269 = vmatprep.subr.mxu0 0.0
    %1270 = vmatpush2.msra.mxu0 0.0
    %1271 = vmatprep.subr.mxu0 0.0
    %1272 = vmatpush2.msra.mxu0 0.0
    %1273 = vmatprep.subr.mxu0 0.0
    %1274 = vmatpush2.msra.mxu0 0.0
    %1275 = vmatprep.mubr.f32.mxu0 0.0
    %1276 = vmatmul.mubr.f32.gmra.mxu0 %v1069
    %v1277 = vpop.f32.mrf.mxu0
    %v1278 = vadd.f32 %v264, %v1277
    %v1279 = vpop.f32.mrf.mxu0
    %v1280 = vadd.f32 %v268, %v1279
    %1281 = vdwg.mxu0
    %1282 = vmatprep.subr.mxu0 0.0
    %1283 = vmatpush1.msra.mxu0 %v258
    %1284 = vmatprep.subr.mxu0 0.0
    %1285 = vmatpush1.msra.mxu0 %v255
    %1286 = vmatprep.subr.mxu0 0.0
    %1287 = vmatpush1.msra.mxu0 %v252
    %1288 = vmatprep.subr.mxu0 0.0
    %1289 = vmatpush1.msra.mxu0 %v249
    %1290 = vmatprep.subr.mxu0 0.0
    %1291 = vmatpush1.msra.mxu0 %v246
    %1292 = vmatprep.subr.mxu0 0.0
    %1293 = vmatpush1.msra.mxu0 %v243
    %1294 = vmatprep.subr.mxu0 0.0
    %1295 = vmatpush1.msra.mxu0 %v240
    %1296 = vmatprep.subr.mxu0 0.0
    %1297 = vmatpush1.msra.mxu0 %v237
    %1298 = vmatprep.subr.mxu0 0.0
    %1299 = vmatpush1.msra.mxu0 %v234
    %1300 = vmatprep.subr.mxu0 0.0
    %1301 = vmatpush1.msra.mxu0 %v231
    %1302 = vmatprep.subr.mxu0 0.0
    %1303 = vmatpush1.msra.mxu0 %v228
    %1304 = vmatprep.subr.mxu0 0.0
    %1305 = vmatpush1.msra.mxu0 %v225
    %1306 = vmatprep.subr.mxu0 0.0
    %1307 = vmatpush1.msra.mxu0 %v222
    %1308 = vmatprep.subr.mxu0 0.0
    %1309 = vmatpush1.msra.mxu0 %v219
    %1310 = vmatprep.subr.mxu0 0.0
    %1311 = vmatpush1.msra.mxu0 %v216
    %1312 = vmatprep.subr.mxu0 0.0
    %1313 = vmatpush1.msra.mxu0 %v213
    %1314 = vmatprep.subr.mxu0 0.0
    %1315 = vmatpush2.msra.mxu0 0.0
    %1316 = vmatprep.subr.mxu0 0.0
    %1317 = vmatpush2.msra.mxu0 0.0
    %1318 = vmatprep.subr.mxu0 0.0
    %1319 = vmatpush2.msra.mxu0 0.0
    %1320 = vmatprep.subr.mxu0 0.0
    %1321 = vmatpush2.msra.mxu0 0.0
    %1322 = vmatprep.subr.mxu0 0.0
    %1323 = vmatpush2.msra.mxu0 0.0
    %1324 = vmatprep.subr.mxu0 0.0
    %1325 = vmatpush2.msra.mxu0 0.0
    %1326 = vmatprep.subr.mxu0 0.0
    %1327 = vmatpush2.msra.mxu0 0.0
    %1328 = vmatprep.subr.mxu0 0.0
    %1329 = vmatpush2.msra.mxu0 0.0
    %1330 = vmatprep.subr.mxu0 0.0
    %1331 = vmatpush2.msra.mxu0 0.0
    %1332 = vmatprep.subr.mxu0 0.0
    %1333 = vmatpush2.msra.mxu0 0.0
    %1334 = vmatprep.subr.mxu0 0.0
    %1335 = vmatpush2.msra.mxu0 0.0
    %1336 = vmatprep.subr.mxu0 0.0
    %1337 = vmatpush2.msra.mxu0 0.0
    %1338 = vmatprep.subr.mxu0 0.0
    %1339 = vmatpush2.msra.mxu0 0.0
    %1340 = vmatprep.subr.mxu0 0.0
    %1341 = vmatpush2.msra.mxu0 0.0
    %1342 = vmatprep.subr.mxu0 0.0
    %1343 = vmatpush2.msra.mxu0 0.0
    %1344 = vmatprep.subr.mxu0 0.0
    %1345 = vmatpush2.msra.mxu0 0.0
    %1346 = vmatprep.mubr.f32.mxu0 0.0
    %1347 = vmatmul.mubr.f32.gmra.mxu0 %v1069
    %v1348 = vpop.f32.mrf.mxu0
    %v1349 = vadd.f32 %v272, %v1348
    %v1350 = vpop.f32.mrf.mxu0
    %1351 = vdwg.mxu0
    %v1352 = vadd.f32 %v1278, %v970
    %v1353 = vxor.u32 %v1352, 2147483648
    %v1354 = vmul.f32 %v1353, 1.442695
    %v1355 = vpow.pop %v1354
    %v1356 = vadd.f32 %v1355, 1.0
    %v1357 = vrcp.pop %v1356
    %v1358 = vmul.f32 1.0, %v1357
    %v1359 = vadd.f32 %v1280, %v972
    %v1360 = vxor.u32 %v1359, 2147483648
    %v1361 = vmul.f32 %v1360, 1.442695
    %v1362 = vpow.pop %v1361
    %v1363 = vadd.f32 %v1362, 1.0
    %v1364 = vrcp.pop %v1363
    %v1365 = vmul.f32 1.0, %v1364
    %v1366 = vadd.f32 %v1041, %v288
    %v1367 = vmul.f32 %v1358, %v1366
    %v1368 = vadd.f32 %v1349, %v1367
    %v1369 = vtanh.pop %v1368
    %v1370 = vsub.f32 1.0, %v1365
    %v1371 = vmul.f32 %v1370, %v1369
    %v1372 = vmul.f32 %v1365, %v902
    %v1373 = vadd.f32 %v1371, %v1372
    %1374 = vmatprep.subr.mxu0 %v209
    %1375 = vmatpush1.msra.mxu0 %v208
    %1376 = vmatprep.subr.mxu0 %v206
    %1377 = vmatpush1.msra.mxu0 %v205
    %1378 = vmatprep.subr.mxu0 %v203
    %1379 = vmatpush1.msra.mxu0 %v202
    %1380 = vmatprep.subr.mxu0 %v200
    %1381 = vmatpush1.msra.mxu0 %v199
    %1382 = vmatprep.subr.mxu0 %v197
    %1383 = vmatpush1.msra.mxu0 %v196
    %1384 = vmatprep.subr.mxu0 %v194
    %1385 = vmatpush1.msra.mxu0 %v193
    %1386 = vmatprep.subr.mxu0 %v191
    %1387 = vmatpush1.msra.mxu0 %v190
    %1388 = vmatprep.subr.mxu0 %v188
    %1389 = vmatpush1.msra.mxu0 %v187
    %1390 = vmatprep.subr.mxu0 %v185
    %1391 = vmatpush1.msra.mxu0 %v184
    %1392 = vmatprep.subr.mxu0 %v182
    %1393 = vmatpush1.msra.mxu0 %v181
    %1394 = vmatprep.subr.mxu0 %v179
    %1395 = vmatpush1.msra.mxu0 %v178
    %1396 = vmatprep.subr.mxu0 %v176
    %1397 = vmatpush1.msra.mxu0 %v175
    %1398 = vmatprep.subr.mxu0 %v173
    %1399 = vmatpush1.msra.mxu0 %v172
    %1400 = vmatprep.subr.mxu0 %v170
    %1401 = vmatpush1.msra.mxu0 %v169
    %1402 = vmatprep.subr.mxu0 %v167
    %1403 = vmatpush1.msra.mxu0 %v166
    %1404 = vmatprep.subr.mxu0 %v164
    %1405 = vmatpush1.msra.mxu0 %v163
    %1406 = vmatprep.subr.mxu0 0.0
    %1407 = vmatpush2.msra.mxu0 0.0
    %1408 = vmatprep.subr.mxu0 0.0
    %1409 = vmatpush2.msra.mxu0 0.0
    %1410 = vmatprep.subr.mxu0 0.0
    %1411 = vmatpush2.msra.mxu0 0.0
    %1412 = vmatprep.subr.mxu0 0.0
    %1413 = vmatpush2.msra.mxu0 0.0
    %1414 = vmatprep.subr.mxu0 0.0
    %1415 = vmatpush2.msra.mxu0 0.0
    %1416 = vmatprep.subr.mxu0 0.0
    %1417 = vmatpush2.msra.mxu0 0.0
    %1418 = vmatprep.subr.mxu0 0.0
    %1419 = vmatpush2.msra.mxu0 0.0
    %1420 = vmatprep.subr.mxu0 0.0
    %1421 = vmatpush2.msra.mxu0 0.0
    %1422 = vmatprep.subr.mxu0 0.0
    %1423 = vmatpush2.msra.mxu0 0.0
    %1424 = vmatprep.subr.mxu0 0.0
    %1425 = vmatpush2.msra.mxu0 0.0
    %1426 = vmatprep.subr.mxu0 0.0
    %1427 = vmatpush2.msra.mxu0 0.0
    %1428 = vmatprep.subr.mxu0 0.0
    %1429 = vmatpush2.msra.mxu0 0.0
    %1430 = vmatprep.subr.mxu0 0.0
    %1431 = vmatpush2.msra.mxu0 0.0
    %1432 = vmatprep.subr.mxu0 0.0
    %1433 = vmatpush2.msra.mxu0 0.0
    %1434 = vmatprep.subr.mxu0 0.0
    %1435 = vmatpush2.msra.mxu0 0.0
    %1436 = vmatprep.subr.mxu0 0.0
    %1437 = vmatpush2.msra.mxu0 0.0
    %1438 = vmatprep.mubr.f32.mxu0 0.0
    %1439 = vmatmul.mubr.f32.gmra.mxu0 %v1373
    %v1440 = vpop.f32.mrf.mxu0
    %v1441 = vadd.f32 0.0, %v1440
    %v1442 = vpop.f32.mrf.mxu0
    %v1443 = vadd.f32 0.0, %v1442
    %1444 = vdwg.mxu0
    %1445 = vmatprep.subr.mxu0 0.0
    %1446 = vmatpush1.msra.mxu0 %v210
    %1447 = vmatprep.subr.mxu0 0.0
    %1448 = vmatpush1.msra.mxu0 %v207
    %1449 = vmatprep.subr.mxu0 0.0
    %1450 = vmatpush1.msra.mxu0 %v204
    %1451 = vmatprep.subr.mxu0 0.0
    %1452 = vmatpush1.msra.mxu0 %v201
    %1453 = vmatprep.subr.mxu0 0.0
    %1454 = vmatpush1.msra.mxu0 %v198
    %1455 = vmatprep.subr.mxu0 0.0
    %1456 = vmatpush1.msra.mxu0 %v195
    %1457 = vmatprep.subr.mxu0 0.0
    %1458 = vmatpush1.msra.mxu0 %v192
    %1459 = vmatprep.subr.mxu0 0.0
    %1460 = vmatpush1.msra.mxu0 %v189
    %1461 = vmatprep.subr.mxu0 0.0
    %1462 = vmatpush1.msra.mxu0 %v186
    %1463 = vmatprep.subr.mxu0 0.0
    %1464 = vmatpush1.msra.mxu0 %v183
    %1465 = vmatprep.subr.mxu0 0.0
    %1466 = vmatpush1.msra.mxu0 %v180
    %1467 = vmatprep.subr.mxu0 0.0
    %1468 = vmatpush1.msra.mxu0 %v177
    %1469 = vmatprep.subr.mxu0 0.0
    %1470 = vmatpush1.msra.mxu0 %v174
    %1471 = vmatprep.subr.mxu0 0.0
    %1472 = vmatpush1.msra.mxu0 %v171
    %1473 = vmatprep.subr.mxu0 0.0
    %1474 = vmatpush1.msra.mxu0 %v168
    %1475 = vmatprep.subr.mxu0 0.0
    %1476 = vmatpush1.msra.mxu0 %v165
    %1477 = vmatprep.subr.mxu0 0.0
    %1478 = vmatpush2.msra.mxu0 0.0
    %1479 = vmatprep.subr.mxu0 0.0
    %1480 = vmatpush2.msra.mxu0 0.0
    %1481 = vmatprep.subr.mxu0 0.0
    %1482 = vmatpush2.msra.mxu0 0.0
    %1483 = vmatprep.subr.mxu0 0.0
    %1484 = vmatpush2.msra.mxu0 0.0
    %1485 = vmatprep.subr.mxu0 0.0
    %1486 = vmatpush2.msra.mxu0 0.0
    %1487 = vmatprep.subr.mxu0 0.0
    %1488 = vmatpush2.msra.mxu0 0.0
    %1489 = vmatprep.subr.mxu0 0.0
    %1490 = vmatpush2.msra.mxu0 0.0
    %1491 = vmatprep.subr.mxu0 0.0
    %1492 = vmatpush2.msra.mxu0 0.0
    %1493 = vmatprep.subr.mxu0 0.0
    %1494 = vmatpush2.msra.mxu0 0.0
    %1495 = vmatprep.subr.mxu0 0.0
    %1496 = vmatpush2.msra.mxu0 0.0
    %1497 = vmatprep.subr.mxu0 0.0
    %1498 = vmatpush2.msra.mxu0 0.0
    %1499 = vmatprep.subr.mxu0 0.0
    %1500 = vmatpush2.msra.mxu0 0.0
    %1501 = vmatprep.subr.mxu0 0.0
    %1502 = vmatpush2.msra.mxu0 0.0
    %1503 = vmatprep.subr.mxu0 0.0
    %1504 = vmatpush2.msra.mxu0 0.0
    %1505 = vmatprep.subr.mxu0 0.0
    %1506 = vmatpush2.msra.mxu0 0.0
    %1507 = vmatprep.subr.mxu0 0.0
    %1508 = vmatpush2.msra.mxu0 0.0
    %1509 = vmatprep.mubr.f32.mxu0 0.0
    %1510 = vmatmul.mubr.f32.gmra.mxu0 %v1373
    %v1511 = vpop.f32.mrf.mxu0
    %v1512 = vadd.f32 0.0, %v1511
    %v1513 = vpop.f32.mrf.mxu0
    %1514 = vdwg.mxu0
    %1515 = vst [vmem:[#allocation13 + $0x8] sm:$0xff] %v1373
    %v1516 = vld [vmem:[#allocation2 + $0x30] sm:$0xff]
    %v1517 = vld [vmem:[#allocation2 + $0x38] sm:$0xff]
    %v1518 = vld [vmem:[#allocation2 + $0x40] sm:$0xff]
    %v1519 = vadd.f32 %v1516, %v1137
    %v1520 = vxor.u32 %v1519, 2147483648
    %v1521 = vmul.f32 %v1520, 1.442695
    %v1522 = vpow.pop %v1521
    %v1523 = vadd.f32 %v1522, 1.0
    %v1524 = vrcp.pop %v1523
    %v1525 = vmul.f32 1.0, %v1524
    %v1526 = vadd.f32 %v1517, %v1139
    %v1527 = vxor.u32 %v1526, 2147483648
    %v1528 = vmul.f32 %v1527, 1.442695
    %v1529 = vpow.pop %v1528
    %v1530 = vadd.f32 %v1529, 1.0
    %v1531 = vrcp.pop %v1530
    %v1532 = vmul.f32 1.0, %v1531
    %v1533 = vadd.f32 %v1208, %v281
    %v1534 = vmul.f32 %v1525, %v1533
    %v1535 = vadd.f32 %v1518, %v1534
    %v1536 = vtanh.pop %v1535
    %v1537 = vsub.f32 1.0, %v1532
    %v1538 = vmul.f32 %v1537, %v1536
    %v1539 = vmul.f32 %v1532, %v1069
    %v1540 = vadd.f32 %v1538, %v1539
    %1541 = vmatprep.subr.mxu0 %v161
    %1542 = vmatpush1.msra.mxu0 %v160
    %1543 = vmatprep.subr.mxu0 %v158
    %1544 = vmatpush1.msra.mxu0 %v157
    %1545 = vmatprep.subr.mxu0 %v155
    %1546 = vmatpush1.msra.mxu0 %v154
    %1547 = vmatprep.subr.mxu0 %v152
    %1548 = vmatpush1.msra.mxu0 %v151
    %1549 = vmatprep.subr.mxu0 %v149
    %1550 = vmatpush1.msra.mxu0 %v148
    %1551 = vmatprep.subr.mxu0 %v146
    %1552 = vmatpush1.msra.mxu0 %v145
    %1553 = vmatprep.subr.mxu0 %v143
    %1554 = vmatpush1.msra.mxu0 %v142
    %1555 = vmatprep.subr.mxu0 %v140
    %1556 = vmatpush1.msra.mxu0 %v139
    %1557 = vmatprep.subr.mxu0 %v137
    %1558 = vmatpush1.msra.mxu0 %v136
    %1559 = vmatprep.subr.mxu0 %v134
    %1560 = vmatpush1.msra.mxu0 %v133
    %1561 = vmatprep.subr.mxu0 %v131
    %1562 = vmatpush1.msra.mxu0 %v130
    %1563 = vmatprep.subr.mxu0 %v128
    %1564 = vmatpush1.msra.mxu0 %v127
    %1565 = vmatprep.subr.mxu0 %v125
    %1566 = vmatpush1.msra.mxu0 %v124
    %1567 = vmatprep.subr.mxu0 %v122
    %1568 = vmatpush1.msra.mxu0 %v121
    %1569 = vmatprep.subr.mxu0 %v119
    %1570 = vmatpush1.msra.mxu0 %v118
    %1571 = vmatprep.subr.mxu0 %v116
    %1572 = vmatpush1.msra.mxu0 %v115
    %1573 = vmatprep.subr.mxu0 0.0
    %1574 = vmatpush2.msra.mxu0 0.0
    %1575 = vmatprep.subr.mxu0 0.0
    %1576 = vmatpush2.msra.mxu0 0.0
    %1577 = vmatprep.subr.mxu0 0.0
    %1578 = vmatpush2.msra.mxu0 0.0
    %1579 = vmatprep.subr.mxu0 0.0
    %1580 = vmatpush2.msra.mxu0 0.0
    %1581 = vmatprep.subr.mxu0 0.0
    %1582 = vmatpush2.msra.mxu0 0.0
    %1583 = vmatprep.subr.mxu0 0.0
    %1584 = vmatpush2.msra.mxu0 0.0
    %1585 = vmatprep.subr.mxu0 0.0
    %1586 = vmatpush2.msra.mxu0 0.0
    %1587 = vmatprep.subr.mxu0 0.0
    %1588 = vmatpush2.msra.mxu0 0.0
    %1589 = vmatprep.subr.mxu0 0.0
    %1590 = vmatpush2.msra.mxu0 0.0
    %1591 = vmatprep.subr.mxu0 0.0
    %1592 = vmatpush2.msra.mxu0 0.0
    %1593 = vmatprep.subr.mxu0 0.0
    %1594 = vmatpush2.msra.mxu0 0.0
    %1595 = vmatprep.subr.mxu0 0.0
    %1596 = vmatpush2.msra.mxu0 0.0
    %1597 = vmatprep.subr.mxu0 0.0
    %1598 = vmatpush2.msra.mxu0 0.0
    %1599 = vmatprep.subr.mxu0 0.0
    %1600 = vmatpush2.msra.mxu0 0.0
    %1601 = vmatprep.subr.mxu0 0.0
    %1602 = vmatpush2.msra.mxu0 0.0
    %1603 = vmatprep.subr.mxu0 0.0
    %1604 = vmatpush2.msra.mxu0 0.0
    %1605 = vmatprep.mubr.f32.mxu0 0.0
    %1606 = vmatmul.mubr.f32.gmra.mxu0 %v1540
    %v1607 = vpop.f32.mrf.mxu0
    %v1608 = vadd.f32 0.0, %v1607
    %v1609 = vpop.f32.mrf.mxu0
    %v1610 = vadd.f32 0.0, %v1609
    %1611 = vdwg.mxu0
    %1612 = vmatprep.subr.mxu0 0.0
    %1613 = vmatpush1.msra.mxu0 %v162
    %1614 = vmatprep.subr.mxu0 0.0
    %1615 = vmatpush1.msra.mxu0 %v159
    %1616 = vmatprep.subr.mxu0 0.0
    %1617 = vmatpush1.msra.mxu0 %v156
    %1618 = vmatprep.subr.mxu0 0.0
    %1619 = vmatpush1.msra.mxu0 %v153
    %1620 = vmatprep.subr.mxu0 0.0
    %1621 = vmatpush1.msra.mxu0 %v150
    %1622 = vmatprep.subr.mxu0 0.0
    %1623 = vmatpush1.msra.mxu0 %v147
    %1624 = vmatprep.subr.mxu0 0.0
    %1625 = vmatpush1.msra.mxu0 %v144
    %1626 = vmatprep.subr.mxu0 0.0
    %1627 = vmatpush1.msra.mxu0 %v141
    %1628 = vmatprep.subr.mxu0 0.0
    %1629 = vmatpush1.msra.mxu0 %v138
    %1630 = vmatprep.subr.mxu0 0.0
    %1631 = vmatpush1.msra.mxu0 %v135
    %1632 = vmatprep.subr.mxu0 0.0
    %1633 = vmatpush1.msra.mxu0 %v132
    %1634 = vmatprep.subr.mxu0 0.0
    %1635 = vmatpush1.msra.mxu0 %v129
    %1636 = vmatprep.subr.mxu0 0.0
    %1637 = vmatpush1.msra.mxu0 %v126
    %1638 = vmatprep.subr.mxu0 0.0
    %1639 = vmatpush1.msra.mxu0 %v123
    %1640 = vmatprep.subr.mxu0 0.0
    %1641 = vmatpush1.msra.mxu0 %v120
    %1642 = vmatprep.subr.mxu0 0.0
    %1643 = vmatpush1.msra.mxu0 %v117
    %1644 = vmatprep.subr.mxu0 0.0
    %1645 = vmatpush2.msra.mxu0 0.0
    %1646 = vmatprep.subr.mxu0 0.0
    %1647 = vmatpush2.msra.mxu0 0.0
    %1648 = vmatprep.subr.mxu0 0.0
    %1649 = vmatpush2.msra.mxu0 0.0
    %1650 = vmatprep.subr.mxu0 0.0
    %1651 = vmatpush2.msra.mxu0 0.0
    %1652 = vmatprep.subr.mxu0 0.0
    %1653 = vmatpush2.msra.mxu0 0.0
    %1654 = vmatprep.subr.mxu0 0.0
    %1655 = vmatpush2.msra.mxu0 0.0
    %1656 = vmatprep.subr.mxu0 0.0
    %1657 = vmatpush2.msra.mxu0 0.0
    %1658 = vmatprep.subr.mxu0 0.0
    %1659 = vmatpush2.msra.mxu0 0.0
    %1660 = vmatprep.subr.mxu0 0.0
    %1661 = vmatpush2.msra.mxu0 0.0
    %1662 = vmatprep.subr.mxu0 0.0
    %1663 = vmatpush2.msra.mxu0 0.0
    %1664 = vmatprep.subr.mxu0 0.0
    %1665 = vmatpush2.msra.mxu0 0.0
    %1666 = vmatprep.subr.mxu0 0.0
    %1667 = vmatpush2.msra.mxu0 0.0
    %1668 = vmatprep.subr.mxu0 0.0
    %1669 = vmatpush2.msra.mxu0 0.0
    %1670 = vmatprep.subr.mxu0 0.0
    %1671 = vmatpush2.msra.mxu0 0.0
    %1672 = vmatprep.subr.mxu0 0.0
    %1673 = vmatpush2.msra.mxu0 0.0
    %1674 = vmatprep.subr.mxu0 0.0
    %1675 = vmatpush2.msra.mxu0 0.0
    %1676 = vmatprep.mubr.f32.mxu0 0.0
    %1677 = vmatmul.mubr.f32.gmra.mxu0 %v1540
    %v1678 = vpop.f32.mrf.mxu0
    %v1679 = vadd.f32 0.0, %v1678
    %v1680 = vpop.f32.mrf.mxu0
    %1681 = vdwg.mxu0
    %1682 = vmatprep.subr.mxu0 %v257
    %1683 = vmatpush1.msra.mxu0 %v256
    %1684 = vmatprep.subr.mxu0 %v254
    %1685 = vmatpush1.msra.mxu0 %v253
    %1686 = vmatprep.subr.mxu0 %v251
    %1687 = vmatpush1.msra.mxu0 %v250
    %1688 = vmatprep.subr.mxu0 %v248
    %1689 = vmatpush1.msra.mxu0 %v247
    %1690 = vmatprep.subr.mxu0 %v245
    %1691 = vmatpush1.msra.mxu0 %v244
    %1692 = vmatprep.subr.mxu0 %v242
    %1693 = vmatpush1.msra.mxu0 %v241
    %1694 = vmatprep.subr.mxu0 %v239
    %1695 = vmatpush1.msra.mxu0 %v238
    %1696 = vmatprep.subr.mxu0 %v236
    %1697 = vmatpush1.msra.mxu0 %v235
    %1698 = vmatprep.subr.mxu0 %v233
    %1699 = vmatpush1.msra.mxu0 %v232
    %1700 = vmatprep.subr.mxu0 %v230
    %1701 = vmatpush1.msra.mxu0 %v229
    %1702 = vmatprep.subr.mxu0 %v227
    %1703 = vmatpush1.msra.mxu0 %v226
    %1704 = vmatprep.subr.mxu0 %v224
    %1705 = vmatpush1.msra.mxu0 %v223
    %1706 = vmatprep.subr.mxu0 %v221
    %1707 = vmatpush1.msra.mxu0 %v220
    %1708 = vmatprep.subr.mxu0 %v218
    %1709 = vmatpush1.msra.mxu0 %v217
    %1710 = vmatprep.subr.mxu0 %v215
    %1711 = vmatpush1.msra.mxu0 %v214
    %1712 = vmatprep.subr.mxu0 %v212
    %1713 = vmatpush1.msra.mxu0 %v211
    %1714 = vmatprep.subr.mxu0 0.0
    %1715 = vmatpush2.msra.mxu0 0.0
    %1716 = vmatprep.subr.mxu0 0.0
    %1717 = vmatpush2.msra.mxu0 0.0
    %1718 = vmatprep.subr.mxu0 0.0
    %1719 = vmatpush2.msra.mxu0 0.0
    %1720 = vmatprep.subr.mxu0 0.0
    %1721 = vmatpush2.msra.mxu0 0.0
    %1722 = vmatprep.subr.mxu0 0.0
    %1723 = vmatpush2.msra.mxu0 0.0
    %1724 = vmatprep.subr.mxu0 0.0
    %1725 = vmatpush2.msra.mxu0 0.0
    %1726 = vmatprep.subr.mxu0 0.0
    %1727 = vmatpush2.msra.mxu0 0.0
    %1728 = vmatprep.subr.mxu0 0.0
    %1729 = vmatpush2.msra.mxu0 0.0
    %1730 = vmatprep.subr.mxu0 0.0
    %1731 = vmatpush2.msra.mxu0 0.0
    %1732 = vmatprep.subr.mxu0 0.0
    %1733 = vmatpush2.msra.mxu0 0.0
    %1734 = vmatprep.subr.mxu0 0.0
    %1735 = vmatpush2.msra.mxu0 0.0
    %1736 = vmatprep.subr.mxu0 0.0
    %1737 = vmatpush2.msra.mxu0 0.0
    %1738 = vmatprep.subr.mxu0 0.0
    %1739 = vmatpush2.msra.mxu0 0.0
    %1740 = vmatprep.subr.mxu0 0.0
    %1741 = vmatpush2.msra.mxu0 0.0
    %1742 = vmatprep.subr.mxu0 0.0
    %1743 = vmatpush2.msra.mxu0 0.0
    %1744 = vmatprep.subr.mxu0 0.0
    %1745 = vmatpush2.msra.mxu0 0.0
    %1746 = vmatprep.mubr.f32.mxu0 0.0
    %1747 = vmatmul.mubr.f32.gmra.mxu0 %v1540
    %v1748 = vpop.f32.mrf.mxu0
    %v1749 = vadd.f32 %v264, %v1748
    %v1750 = vpop.f32.mrf.mxu0
    %v1751 = vadd.f32 %v268, %v1750
    %1752 = vdwg.mxu0
    %1753 = vmatprep.subr.mxu0 0.0
    %1754 = vmatpush1.msra.mxu0 %v258
    %1755 = vmatprep.subr.mxu0 0.0
    %1756 = vmatpush1.msra.mxu0 %v255
    %1757 = vmatprep.subr.mxu0 0.0
    %1758 = vmatpush1.msra.mxu0 %v252
    %1759 = vmatprep.subr.mxu0 0.0
    %1760 = vmatpush1.msra.mxu0 %v249
    %1761 = vmatprep.subr.mxu0 0.0
    %1762 = vmatpush1.msra.mxu0 %v246
    %1763 = vmatprep.subr.mxu0 0.0
    %1764 = vmatpush1.msra.mxu0 %v243
    %1765 = vmatprep.subr.mxu0 0.0
    %1766 = vmatpush1.msra.mxu0 %v240
    %1767 = vmatprep.subr.mxu0 0.0
    %1768 = vmatpush1.msra.mxu0 %v237
    %1769 = vmatprep.subr.mxu0 0.0
    %1770 = vmatpush1.msra.mxu0 %v234
    %1771 = vmatprep.subr.mxu0 0.0
    %1772 = vmatpush1.msra.mxu0 %v231
    %1773 = vmatprep.subr.mxu0 0.0
    %1774 = vmatpush1.msra.mxu0 %v228
    %1775 = vmatprep.subr.mxu0 0.0
    %1776 = vmatpush1.msra.mxu0 %v225
    %1777 = vmatprep.subr.mxu0 0.0
    %1778 = vmatpush1.msra.mxu0 %v222
    %1779 = vmatprep.subr.mxu0 0.0
    %1780 = vmatpush1.msra.mxu0 %v219
    %1781 = vmatprep.subr.mxu0 0.0
    %1782 = vmatpush1.msra.mxu0 %v216
    %1783 = vmatprep.subr.mxu0 0.0
    %1784 = vmatpush1.msra.mxu0 %v213
    %1785 = vmatprep.subr.mxu0 0.0
    %1786 = vmatpush2.msra.mxu0 0.0
    %1787 = vmatprep.subr.mxu0 0.0
    %1788 = vmatpush2.msra.mxu0 0.0
    %1789 = vmatprep.subr.mxu0 0.0
    %1790 = vmatpush2.msra.mxu0 0.0
    %1791 = vmatprep.subr.mxu0 0.0
    %1792 = vmatpush2.msra.mxu0 0.0
    %1793 = vmatprep.subr.mxu0 0.0
    %1794 = vmatpush2.msra.mxu0 0.0
    %1795 = vmatprep.subr.mxu0 0.0
    %1796 = vmatpush2.msra.mxu0 0.0
    %1797 = vmatprep.subr.mxu0 0.0
    %1798 = vmatpush2.msra.mxu0 0.0
    %1799 = vmatprep.subr.mxu0 0.0
    %1800 = vmatpush2.msra.mxu0 0.0
    %1801 = vmatprep.subr.mxu0 0.0
    %1802 = vmatpush2.msra.mxu0 0.0
    %1803 = vmatprep.subr.mxu0 0.0
    %1804 = vmatpush2.msra.mxu0 0.0
    %1805 = vmatprep.subr.mxu0 0.0
    %1806 = vmatpush2.msra.mxu0 0.0
    %1807 = vmatprep.subr.mxu0 0.0
    %1808 = vmatpush2.msra.mxu0 0.0
    %1809 = vmatprep.subr.mxu0 0.0
    %1810 = vmatpush2.msra.mxu0 0.0
    %1811 = vmatprep.subr.mxu0 0.0
    %1812 = vmatpush2.msra.mxu0 0.0
    %1813 = vmatprep.subr.mxu0 0.0
    %1814 = vmatpush2.msra.mxu0 0.0
    %1815 = vmatprep.subr.mxu0 0.0
    %1816 = vmatpush2.msra.mxu0 0.0
    %1817 = vmatprep.mubr.f32.mxu0 0.0
    %1818 = vmatmul.mubr.f32.gmra.mxu0 %v1540
    %v1819 = vpop.f32.mrf.mxu0
    %v1820 = vadd.f32 %v272, %v1819
    %v1821 = vpop.f32.mrf.mxu0
    %1822 = vdwg.mxu0
    %v1823 = vadd.f32 %v1749, %v1441
    %v1824 = vxor.u32 %v1823, 2147483648
    %v1825 = vmul.f32 %v1824, 1.442695
    %v1826 = vpow.pop %v1825
    %v1827 = vadd.f32 %v1826, 1.0
    %v1828 = vrcp.pop %v1827
    %v1829 = vmul.f32 1.0, %v1828
    %v1830 = vadd.f32 %v1751, %v1443
    %v1831 = vxor.u32 %v1830, 2147483648
    %v1832 = vmul.f32 %v1831, 1.442695
    %v1833 = vpow.pop %v1832
    %v1834 = vadd.f32 %v1833, 1.0
    %v1835 = vrcp.pop %v1834
    %v1836 = vmul.f32 1.0, %v1835
    %v1837 = vadd.f32 %v1512, %v288
    %v1838 = vmul.f32 %v1829, %v1837
    %v1839 = vadd.f32 %v1820, %v1838
    %v1840 = vtanh.pop %v1839
    %v1841 = vsub.f32 1.0, %v1836
    %v1842 = vmul.f32 %v1841, %v1840
    %v1843 = vmul.f32 %v1836, %v1373
    %v1844 = vadd.f32 %v1842, %v1843
    %1845 = vmatprep.subr.mxu0 %v209
    %1846 = vmatpush1.msra.mxu0 %v208
    %1847 = vmatprep.subr.mxu0 %v206
    %1848 = vmatpush1.msra.mxu0 %v205
    %1849 = vmatprep.subr.mxu0 %v203
    %1850 = vmatpush1.msra.mxu0 %v202
    %1851 = vmatprep.subr.mxu0 %v200
    %1852 = vmatpush1.msra.mxu0 %v199
    %1853 = vmatprep.subr.mxu0 %v197
    %1854 = vmatpush1.msra.mxu0 %v196
    %1855 = vmatprep.subr.mxu0 %v194
    %1856 = vmatpush1.msra.mxu0 %v193
    %1857 = vmatprep.subr.mxu0 %v191
    %1858 = vmatpush1.msra.mxu0 %v190
    %1859 = vmatprep.subr.mxu0 %v188
    %1860 = vmatpush1.msra.mxu0 %v187
    %1861 = vmatprep.subr.mxu0 %v185
    %1862 = vmatpush1.msra.mxu0 %v184
    %1863 = vmatprep.subr.mxu0 %v182
    %1864 = vmatpush1.msra.mxu0 %v181
    %1865 = vmatprep.subr.mxu0 %v179
    %1866 = vmatpush1.msra.mxu0 %v178
    %1867 = vmatprep.subr.mxu0 %v176
    %1868 = vmatpush1.msra.mxu0 %v175
    %1869 = vmatprep.subr.mxu0 %v173
    %1870 = vmatpush1.msra.mxu0 %v172
    %1871 = vmatprep.subr.mxu0 %v170
    %1872 = vmatpush1.msra.mxu0 %v169
    %1873 = vmatprep.subr.mxu0 %v167
    %1874 = vmatpush1.msra.mxu0 %v166
    %1875 = vmatprep.subr.mxu0 %v164
    %1876 = vmatpush1.msra.mxu0 %v163
    %1877 = vmatprep.subr.mxu0 0.0
    %1878 = vmatpush2.msra.mxu0 0.0
    %1879 = vmatprep.subr.mxu0 0.0
    %1880 = vmatpush2.msra.mxu0 0.0
    %1881 = vmatprep.subr.mxu0 0.0
    %1882 = vmatpush2.msra.mxu0 0.0
    %1883 = vmatprep.subr.mxu0 0.0
    %1884 = vmatpush2.msra.mxu0 0.0
    %1885 = vmatprep.subr.mxu0 0.0
    %1886 = vmatpush2.msra.mxu0 0.0
    %1887 = vmatprep.subr.mxu0 0.0
    %1888 = vmatpush2.msra.mxu0 0.0
    %1889 = vmatprep.subr.mxu0 0.0
    %1890 = vmatpush2.msra.mxu0 0.0
    %1891 = vmatprep.subr.mxu0 0.0
    %1892 = vmatpush2.msra.mxu0 0.0
    %1893 = vmatprep.subr.mxu0 0.0
    %1894 = vmatpush2.msra.mxu0 0.0
    %1895 = vmatprep.subr.mxu0 0.0
    %1896 = vmatpush2.msra.mxu0 0.0
    %1897 = vmatprep.subr.mxu0 0.0
    %1898 = vmatpush2.msra.mxu0 0.0
    %1899 = vmatprep.subr.mxu0 0.0
    %1900 = vmatpush2.msra.mxu0 0.0
    %1901 = vmatprep.subr.mxu0 0.0
    %1902 = vmatpush2.msra.mxu0 0.0
    %1903 = vmatprep.subr.mxu0 0.0
    %1904 = vmatpush2.msra.mxu0 0.0
    %1905 = vmatprep.subr.mxu0 0.0
    %1906 = vmatpush2.msra.mxu0 0.0
    %1907 = vmatprep.subr.mxu0 0.0
    %1908 = vmatpush2.msra.mxu0 0.0
    %1909 = vmatprep.mubr.f32.mxu0 0.0
    %1910 = vmatmul.mubr.f32.gmra.mxu0 %v1844
    %v1911 = vpop.f32.mrf.mxu0
    %v1912 = vadd.f32 0.0, %v1911
    %v1913 = vpop.f32.mrf.mxu0
    %v1914 = vadd.f32 0.0, %v1913
    %1915 = vdwg.mxu0
    %1916 = vmatprep.subr.mxu0 0.0
    %1917 = vmatpush1.msra.mxu0 %v210
    %1918 = vmatprep.subr.mxu0 0.0
    %1919 = vmatpush1.msra.mxu0 %v207
    %1920 = vmatprep.subr.mxu0 0.0
    %1921 = vmatpush1.msra.mxu0 %v204
    %1922 = vmatprep.subr.mxu0 0.0
    %1923 = vmatpush1.msra.mxu0 %v201
    %1924 = vmatprep.subr.mxu0 0.0
    %1925 = vmatpush1.msra.mxu0 %v198
    %1926 = vmatprep.subr.mxu0 0.0
    %1927 = vmatpush1.msra.mxu0 %v195
    %1928 = vmatprep.subr.mxu0 0.0
    %1929 = vmatpush1.msra.mxu0 %v192
    %1930 = vmatprep.subr.mxu0 0.0
    %1931 = vmatpush1.msra.mxu0 %v189
    %1932 = vmatprep.subr.mxu0 0.0
    %1933 = vmatpush1.msra.mxu0 %v186
    %1934 = vmatprep.subr.mxu0 0.0
    %1935 = vmatpush1.msra.mxu0 %v183
    %1936 = vmatprep.subr.mxu0 0.0
    %1937 = vmatpush1.msra.mxu0 %v180
    %1938 = vmatprep.subr.mxu0 0.0
    %1939 = vmatpush1.msra.mxu0 %v177
    %1940 = vmatprep.subr.mxu0 0.0
    %1941 = vmatpush1.msra.mxu0 %v174
    %1942 = vmatprep.subr.mxu0 0.0
    %1943 = vmatpush1.msra.mxu0 %v171
    %1944 = vmatprep.subr.mxu0 0.0
    %1945 = vmatpush1.msra.mxu0 %v168
    %1946 = vmatprep.subr.mxu0 0.0
    %1947 = vmatpush1.msra.mxu0 %v165
    %1948 = vmatprep.subr.mxu0 0.0
    %1949 = vmatpush2.msra.mxu0 0.0
    %1950 = vmatprep.subr.mxu0 0.0
    %1951 = vmatpush2.msra.mxu0 0.0
    %1952 = vmatprep.subr.mxu0 0.0
    %1953 = vmatpush2.msra.mxu0 0.0
    %1954 = vmatprep.subr.mxu0 0.0
    %1955 = vmatpush2.msra.mxu0 0.0
    %1956 = vmatprep.subr.mxu0 0.0
    %1957 = vmatpush2.msra.mxu0 0.0
    %1958 = vmatprep.subr.mxu0 0.0
    %1959 = vmatpush2.msra.mxu0 0.0
    %1960 = vmatprep.subr.mxu0 0.0
    %1961 = vmatpush2.msra.mxu0 0.0
    %1962 = vmatprep.subr.mxu0 0.0
    %1963 = vmatpush2.msra.mxu0 0.0
    %1964 = vmatprep.subr.mxu0 0.0
    %1965 = vmatpush2.msra.mxu0 0.0
    %1966 = vmatprep.subr.mxu0 0.0
    %1967 = vmatpush2.msra.mxu0 0.0
    %1968 = vmatprep.subr.mxu0 0.0
    %1969 = vmatpush2.msra.mxu0 0.0
    %1970 = vmatprep.subr.mxu0 0.0
    %1971 = vmatpush2.msra.mxu0 0.0
    %1972 = vmatprep.subr.mxu0 0.0
    %1973 = vmatpush2.msra.mxu0 0.0
    %1974 = vmatprep.subr.mxu0 0.0
    %1975 = vmatpush2.msra.mxu0 0.0
    %1976 = vmatprep.subr.mxu0 0.0
    %1977 = vmatpush2.msra.mxu0 0.0
    %1978 = vmatprep.subr.mxu0 0.0
    %1979 = vmatpush2.msra.mxu0 0.0
    %1980 = vmatprep.mubr.f32.mxu0 0.0
    %1981 = vmatmul.mubr.f32.gmra.mxu0 %v1844
    %v1982 = vpop.f32.mrf.mxu0
    %v1983 = vadd.f32 0.0, %v1982
    %v1984 = vpop.f32.mrf.mxu0
    %1985 = vdwg.mxu0
    %1986 = vst [vmem:[#allocation13 + $0x10] sm:$0xff] %v1844
    %v1987 = vld [vmem:[#allocation2 + $0x48] sm:$0xff]
    %v1988 = vld [vmem:[#allocation2 + $0x50] sm:$0xff]
    %v1989 = vld [vmem:[#allocation2 + $0x58] sm:$0xff]
    %v1990 = vadd.f32 %v1987, %v1608
    %v1991 = vxor.u32 %v1990, 2147483648
    %v1992 = vmul.f32 %v1991, 1.442695
    %v1993 = vpow.pop %v1992
    %v1994 = vadd.f32 %v1993, 1.0
    %v1995 = vrcp.pop %v1994
    %v1996 = vmul.f32 1.0, %v1995
    %v1997 = vadd.f32 %v1988, %v1610
    %v1998 = vxor.u32 %v1997, 2147483648
    %v1999 = vmul.f32 %v1998, 1.442695
    %v2000 = vpow.pop %v1999
    %v2001 = vadd.f32 %v2000, 1.0
    %v2002 = vrcp.pop %v2001
    %v2003 = vmul.f32 1.0, %v2002
    %v2004 = vadd.f32 %v1679, %v281
    %v2005 = vmul.f32 %v1996, %v2004
    %v2006 = vadd.f32 %v1989, %v2005
    %v2007 = vtanh.pop %v2006
    %v2008 = vsub.f32 1.0, %v2003
    %v2009 = vmul.f32 %v2008, %v2007
    %v2010 = vmul.f32 %v2003, %v1540
    %v2011 = vadd.f32 %v2009, %v2010
    %2012 = vmatprep.subr.mxu0 %v161
    %2013 = vmatpush1.msra.mxu0 %v160
    %2014 = vmatprep.subr.mxu0 %v158
    %2015 = vmatpush1.msra.mxu0 %v157
    %2016 = vmatprep.subr.mxu0 %v155
    %2017 = vmatpush1.msra.mxu0 %v154
    %2018 = vmatprep.subr.mxu0 %v152
    %2019 = vmatpush1.msra.mxu0 %v151
    %2020 = vmatprep.subr.mxu0 %v149
    %2021 = vmatpush1.msra.mxu0 %v148
    %2022 = vmatprep.subr.mxu0 %v146
    %2023 = vmatpush1.msra.mxu0 %v145
    %2024 = vmatprep.subr.mxu0 %v143
    %2025 = vmatpush1.msra.mxu0 %v142
    %2026 = vmatprep.subr.mxu0 %v140
    %2027 = vmatpush1.msra.mxu0 %v139
    %2028 = vmatprep.subr.mxu0 %v137
    %2029 = vmatpush1.msra.mxu0 %v136
    %2030 = vmatprep.subr.mxu0 %v134
    %2031 = vmatpush1.msra.mxu0 %v133
    %2032 = vmatprep.subr.mxu0 %v131
    %2033 = vmatpush1.msra.mxu0 %v130
    %2034 = vmatprep.subr.mxu0 %v128
    %2035 = vmatpush1.msra.mxu0 %v127
    %2036 = vmatprep.subr.mxu0 %v125
    %2037 = vmatpush1.msra.mxu0 %v124
    %2038 = vmatprep.subr.mxu0 %v122
    %2039 = vmatpush1.msra.mxu0 %v121
    %2040 = vmatprep.subr.mxu0 %v119
    %2041 = vmatpush1.msra.mxu0 %v118
    %2042 = vmatprep.subr.mxu0 %v116
    %2043 = vmatpush1.msra.mxu0 %v115
    %2044 = vmatprep.subr.mxu0 0.0
    %2045 = vmatpush2.msra.mxu0 0.0
    %2046 = vmatprep.subr.mxu0 0.0
    %2047 = vmatpush2.msra.mxu0 0.0
    %2048 = vmatprep.subr.mxu0 0.0
    %2049 = vmatpush2.msra.mxu0 0.0
    %2050 = vmatprep.subr.mxu0 0.0
    %2051 = vmatpush2.msra.mxu0 0.0
    %2052 = vmatprep.subr.mxu0 0.0
    %2053 = vmatpush2.msra.mxu0 0.0
    %2054 = vmatprep.subr.mxu0 0.0
    %2055 = vmatpush2.msra.mxu0 0.0
    %2056 = vmatprep.subr.mxu0 0.0
    %2057 = vmatpush2.msra.mxu0 0.0
    %2058 = vmatprep.subr.mxu0 0.0
    %2059 = vmatpush2.msra.mxu0 0.0
    %2060 = vmatprep.subr.mxu0 0.0
    %2061 = vmatpush2.msra.mxu0 0.0
    %2062 = vmatprep.subr.mxu0 0.0
    %2063 = vmatpush2.msra.mxu0 0.0
    %2064 = vmatprep.subr.mxu0 0.0
    %2065 = vmatpush2.msra.mxu0 0.0
    %2066 = vmatprep.subr.mxu0 0.0
    %2067 = vmatpush2.msra.mxu0 0.0
    %2068 = vmatprep.subr.mxu0 0.0
    %2069 = vmatpush2.msra.mxu0 0.0
    %2070 = vmatprep.subr.mxu0 0.0
    %2071 = vmatpush2.msra.mxu0 0.0
    %2072 = vmatprep.subr.mxu0 0.0
    %2073 = vmatpush2.msra.mxu0 0.0
    %2074 = vmatprep.subr.mxu0 0.0
    %2075 = vmatpush2.msra.mxu0 0.0
    %2076 = vmatprep.mubr.f32.mxu0 0.0
    %2077 = vmatmul.mubr.f32.gmra.mxu0 %v2011
    %v2078 = vpop.f32.mrf.mxu0
    %v2079 = vadd.f32 0.0, %v2078
    %v2080 = vpop.f32.mrf.mxu0
    %v2081 = vadd.f32 0.0, %v2080
    %2082 = vdwg.mxu0
    %2083 = vmatprep.subr.mxu0 0.0
    %2084 = vmatpush1.msra.mxu0 %v162
    %2085 = vmatprep.subr.mxu0 0.0
    %2086 = vmatpush1.msra.mxu0 %v159
    %2087 = vmatprep.subr.mxu0 0.0
    %2088 = vmatpush1.msra.mxu0 %v156
    %2089 = vmatprep.subr.mxu0 0.0
    %2090 = vmatpush1.msra.mxu0 %v153
    %2091 = vmatprep.subr.mxu0 0.0
    %2092 = vmatpush1.msra.mxu0 %v150
    %2093 = vmatprep.subr.mxu0 0.0
    %2094 = vmatpush1.msra.mxu0 %v147
    %2095 = vmatprep.subr.mxu0 0.0
    %2096 = vmatpush1.msra.mxu0 %v144
    %2097 = vmatprep.subr.mxu0 0.0
    %2098 = vmatpush1.msra.mxu0 %v141
    %2099 = vmatprep.subr.mxu0 0.0
    %2100 = vmatpush1.msra.mxu0 %v138
    %2101 = vmatprep.subr.mxu0 0.0
    %2102 = vmatpush1.msra.mxu0 %v135
    %2103 = vmatprep.subr.mxu0 0.0
    %2104 = vmatpush1.msra.mxu0 %v132
    %2105 = vmatprep.subr.mxu0 0.0
    %2106 = vmatpush1.msra.mxu0 %v129
    %2107 = vmatprep.subr.mxu0 0.0
    %2108 = vmatpush1.msra.mxu0 %v126
    %2109 = vmatprep.subr.mxu0 0.0
    %2110 = vmatpush1.msra.mxu0 %v123
    %2111 = vmatprep.subr.mxu0 0.0
    %2112 = vmatpush1.msra.mxu0 %v120
    %2113 = vmatprep.subr.mxu0 0.0
    %2114 = vmatpush1.msra.mxu0 %v117
    %2115 = vmatprep.subr.mxu0 0.0
    %2116 = vmatpush2.msra.mxu0 0.0
    %2117 = vmatprep.subr.mxu0 0.0
    %2118 = vmatpush2.msra.mxu0 0.0
    %2119 = vmatprep.subr.mxu0 0.0
    %2120 = vmatpush2.msra.mxu0 0.0
    %2121 = vmatprep.subr.mxu0 0.0
    %2122 = vmatpush2.msra.mxu0 0.0
    %2123 = vmatprep.subr.mxu0 0.0
    %2124 = vmatpush2.msra.mxu0 0.0
    %2125 = vmatprep.subr.mxu0 0.0
    %2126 = vmatpush2.msra.mxu0 0.0
    %2127 = vmatprep.subr.mxu0 0.0
    %2128 = vmatpush2.msra.mxu0 0.0
    %2129 = vmatprep.subr.mxu0 0.0
    %2130 = vmatpush2.msra.mxu0 0.0
    %2131 = vmatprep.subr.mxu0 0.0
    %2132 = vmatpush2.msra.mxu0 0.0
    %2133 = vmatprep.subr.mxu0 0.0
    %2134 = vmatpush2.msra.mxu0 0.0
    %2135 = vmatprep.subr.mxu0 0.0
    %2136 = vmatpush2.msra.mxu0 0.0
    %2137 = vmatprep.subr.mxu0 0.0
    %2138 = vmatpush2.msra.mxu0 0.0
    %2139 = vmatprep.subr.mxu0 0.0
    %2140 = vmatpush2.msra.mxu0 0.0
    %2141 = vmatprep.subr.mxu0 0.0
    %2142 = vmatpush2.msra.mxu0 0.0
    %2143 = vmatprep.subr.mxu0 0.0
    %2144 = vmatpush2.msra.mxu0 0.0
    %2145 = vmatprep.subr.mxu0 0.0
    %2146 = vmatpush2.msra.mxu0 0.0
    %2147 = vmatprep.mubr.f32.mxu0 0.0
    %2148 = vmatmul.mubr.f32.gmra.mxu0 %v2011
    %v2149 = vpop.f32.mrf.mxu0
    %v2150 = vadd.f32 0.0, %v2149
    %v2151 = vpop.f32.mrf.mxu0
    %2152 = vdwg.mxu0
    %2153 = vmatprep.subr.mxu0 %v257
    %2154 = vmatpush1.msra.mxu0 %v256
    %2155 = vmatprep.subr.mxu0 %v254
    %2156 = vmatpush1.msra.mxu0 %v253
    %2157 = vmatprep.subr.mxu0 %v251
    %2158 = vmatpush1.msra.mxu0 %v250
    %2159 = vmatprep.subr.mxu0 %v248
    %2160 = vmatpush1.msra.mxu0 %v247
    %2161 = vmatprep.subr.mxu0 %v245
    %2162 = vmatpush1.msra.mxu0 %v244
    %2163 = vmatprep.subr.mxu0 %v242
    %2164 = vmatpush1.msra.mxu0 %v241
    %2165 = vmatprep.subr.mxu0 %v239
    %2166 = vmatpush1.msra.mxu0 %v238
    %2167 = vmatprep.subr.mxu0 %v236
    %2168 = vmatpush1.msra.mxu0 %v235
    %2169 = vmatprep.subr.mxu0 %v233
    %2170 = vmatpush1.msra.mxu0 %v232
    %2171 = vmatprep.subr.mxu0 %v230
    %2172 = vmatpush1.msra.mxu0 %v229
    %2173 = vmatprep.subr.mxu0 %v227
    %2174 = vmatpush1.msra.mxu0 %v226
    %2175 = vmatprep.subr.mxu0 %v224
    %2176 = vmatpush1.msra.mxu0 %v223
    %2177 = vmatprep.subr.mxu0 %v221
    %2178 = vmatpush1.msra.mxu0 %v220
    %2179 = vmatprep.subr.mxu0 %v218
    %2180 = vmatpush1.msra.mxu0 %v217
    %2181 = vmatprep.subr.mxu0 %v215
    %2182 = vmatpush1.msra.mxu0 %v214
    %2183 = vmatprep.subr.mxu0 %v212
    %2184 = vmatpush1.msra.mxu0 %v211
    %2185 = vmatprep.subr.mxu0 0.0
    %2186 = vmatpush2.msra.mxu0 0.0
    %2187 = vmatprep.subr.mxu0 0.0
    %2188 = vmatpush2.msra.mxu0 0.0
    %2189 = vmatprep.subr.mxu0 0.0
    %2190 = vmatpush2.msra.mxu0 0.0
    %2191 = vmatprep.subr.mxu0 0.0
    %2192 = vmatpush2.msra.mxu0 0.0
    %2193 = vmatprep.subr.mxu0 0.0
    %2194 = vmatpush2.msra.mxu0 0.0
    %2195 = vmatprep.subr.mxu0 0.0
    %2196 = vmatpush2.msra.mxu0 0.0
    %2197 = vmatprep.subr.mxu0 0.0
    %2198 = vmatpush2.msra.mxu0 0.0
    %2199 = vmatprep.subr.mxu0 0.0
    %2200 = vmatpush2.msra.mxu0 0.0
    %2201 = vmatprep.subr.mxu0 0.0
    %2202 = vmatpush2.msra.mxu0 0.0
    %2203 = vmatprep.subr.mxu0 0.0
    %2204 = vmatpush2.msra.mxu0 0.0
    %2205 = vmatprep.subr.mxu0 0.0
    %2206 = vmatpush2.msra.mxu0 0.0
    %2207 = vmatprep.subr.mxu0 0.0
    %2208 = vmatpush2.msra.mxu0 0.0
    %2209 = vmatprep.subr.mxu0 0.0
    %2210 = vmatpush2.msra.mxu0 0.0
    %2211 = vmatprep.subr.mxu0 0.0
    %2212 = vmatpush2.msra.mxu0 0.0
    %2213 = vmatprep.subr.mxu0 0.0
    %2214 = vmatpush2.msra.mxu0 0.0
    %2215 = vmatprep.subr.mxu0 0.0
    %2216 = vmatpush2.msra.mxu0 0.0
    %2217 = vmatprep.mubr.f32.mxu0 0.0
    %2218 = vmatmul.mubr.f32.gmra.mxu0 %v2011
    %v2219 = vpop.f32.mrf.mxu0
    %v2220 = vadd.f32 %v264, %v2219
    %v2221 = vpop.f32.mrf.mxu0
    %v2222 = vadd.f32 %v268, %v2221
    %2223 = vdwg.mxu0
    %2224 = vmatprep.subr.mxu0 0.0
    %2225 = vmatpush1.msra.mxu0 %v258
    %2226 = vmatprep.subr.mxu0 0.0
    %2227 = vmatpush1.msra.mxu0 %v255
    %2228 = vmatprep.subr.mxu0 0.0
    %2229 = vmatpush1.msra.mxu0 %v252
    %2230 = vmatprep.subr.mxu0 0.0
    %2231 = vmatpush1.msra.mxu0 %v249
    %2232 = vmatprep.subr.mxu0 0.0
    %2233 = vmatpush1.msra.mxu0 %v246
    %2234 = vmatprep.subr.mxu0 0.0
    %2235 = vmatpush1.msra.mxu0 %v243
    %2236 = vmatprep.subr.mxu0 0.0
    %2237 = vmatpush1.msra.mxu0 %v240
    %2238 = vmatprep.subr.mxu0 0.0
    %2239 = vmatpush1.msra.mxu0 %v237
    %2240 = vmatprep.subr.mxu0 0.0
    %2241 = vmatpush1.msra.mxu0 %v234
    %2242 = vmatprep.subr.mxu0 0.0
    %2243 = vmatpush1.msra.mxu0 %v231
    %2244 = vmatprep.subr.mxu0 0.0
    %2245 = vmatpush1.msra.mxu0 %v228
    %2246 = vmatprep.subr.mxu0 0.0
    %2247 = vmatpush1.msra.mxu0 %v225
    %2248 = vmatprep.subr.mxu0 0.0
    %2249 = vmatpush1.msra.mxu0 %v222
    %2250 = vmatprep.subr.mxu0 0.0
    %2251 = vmatpush1.msra.mxu0 %v219
    %2252 = vmatprep.subr.mxu0 0.0
    %2253 = vmatpush1.msra.mxu0 %v216
    %2254 = vmatprep.subr.mxu0 0.0
    %2255 = vmatpush1.msra.mxu0 %v213
    %2256 = vmatprep.subr.mxu0 0.0
    %2257 = vmatpush2.msra.mxu0 0.0
    %2258 = vmatprep.subr.mxu0 0.0
    %2259 = vmatpush2.msra.mxu0 0.0
    %2260 = vmatprep.subr.mxu0 0.0
    %2261 = vmatpush2.msra.mxu0 0.0
    %2262 = vmatprep.subr.mxu0 0.0
    %2263 = vmatpush2.msra.mxu0 0.0
    %2264 = vmatprep.subr.mxu0 0.0
    %2265 = vmatpush2.msra.mxu0 0.0
    %2266 = vmatprep.subr.mxu0 0.0
    %2267 = vmatpush2.msra.mxu0 0.0
    %2268 = vmatprep.subr.mxu0 0.0
    %2269 = vmatpush2.msra.mxu0 0.0
    %2270 = vmatprep.subr.mxu0 0.0
    %2271 = vmatpush2.msra.mxu0 0.0
    %2272 = vmatprep.subr.mxu0 0.0
    %2273 = vmatpush2.msra.mxu0 0.0
    %2274 = vmatprep.subr.mxu0 0.0
    %2275 = vmatpush2.msra.mxu0 0.0
    %2276 = vmatprep.subr.mxu0 0.0
    %2277 = vmatpush2.msra.mxu0 0.0
    %2278 = vmatprep.subr.mxu0 0.0
    %2279 = vmatpush2.msra.mxu0 0.0
    %2280 = vmatprep.subr.mxu0 0.0
    %2281 = vmatpush2.msra.mxu0 0.0
    %2282 = vmatprep.subr.mxu0 0.0
    %2283 = vmatpush2.msra.mxu0 0.0
    %2284 = vmatprep.subr.mxu0 0.0
    %2285 = vmatpush2.msra.mxu0 0.0
    %2286 = vmatprep.subr.mxu0 0.0
    %2287 = vmatpush2.msra.mxu0 0.0
    %2288 = vmatprep.mubr.f32.mxu0 0.0
    %2289 = vmatmul.mubr.f32.gmra.mxu0 %v2011
    %v2290 = vpop.f32.mrf.mxu0
    %v2291 = vadd.f32 %v272, %v2290
    %v2292 = vpop.f32.mrf.mxu0
    %2293 = vdwg.mxu0
    %v2294 = vadd.f32 %v2220, %v1912
    %v2295 = vxor.u32 %v2294, 2147483648
    %v2296 = vmul.f32 %v2295, 1.442695
    %v2297 = vpow.pop %v2296
    %v2298 = vadd.f32 %v2297, 1.0
    %v2299 = vrcp.pop %v2298
    %v2300 = vmul.f32 1.0, %v2299
    %v2301 = vadd.f32 %v2222, %v1914
    %v2302 = vxor.u32 %v2301, 2147483648
    %v2303 = vmul.f32 %v2302, 1.442695
    %v2304 = vpow.pop %v2303
    %v2305 = vadd.f32 %v2304, 1.0
    %v2306 = vrcp.pop %v2305
    %v2307 = vmul.f32 1.0, %v2306
    %v2308 = vadd.f32 %v1983, %v288
    %v2309 = vmul.f32 %v2300, %v2308
    %v2310 = vadd.f32 %v2291, %v2309
    %v2311 = vtanh.pop %v2310
    %v2312 = vsub.f32 1.0, %v2307
    %v2313 = vmul.f32 %v2312, %v2311
    %v2314 = vmul.f32 %v2307, %v1844
    %v2315 = vadd.f32 %v2313, %v2314
    %2316 = vmatprep.subr.mxu0 %v209
    %2317 = vmatpush1.msra.mxu0 %v208
    %2318 = vmatprep.subr.mxu0 %v206
    %2319 = vmatpush1.msra.mxu0 %v205
    %2320 = vmatprep.subr.mxu0 %v203
    %2321 = vmatpush1.msra.mxu0 %v202
    %2322 = vmatprep.subr.mxu0 %v200
    %2323 = vmatpush1.msra.mxu0 %v199
    %2324 = vmatprep.subr.mxu0 %v197
    %2325 = vmatpush1.msra.mxu0 %v196
    %2326 = vmatprep.subr.mxu0 %v194
    %2327 = vmatpush1.msra.mxu0 %v193
    %2328 = vmatprep.subr.mxu0 %v191
    %2329 = vmatpush1.msra.mxu0 %v190
    %2330 = vmatprep.subr.mxu0 %v188
    %2331 = vmatpush1.msra.mxu0 %v187
    %2332 = vmatprep.subr.mxu0 %v185
    %2333 = vmatpush1.msra.mxu0 %v184
    %2334 = vmatprep.subr.mxu0 %v182
    %2335 = vmatpush1.msra.mxu0 %v181
    %2336 = vmatprep.subr.mxu0 %v179
    %2337 = vmatpush1.msra.mxu0 %v178
    %2338 = vmatprep.subr.mxu0 %v176
    %2339 = vmatpush1.msra.mxu0 %v175
    %2340 = vmatprep.subr.mxu0 %v173
    %2341 = vmatpush1.msra.mxu0 %v172
    %2342 = vmatprep.subr.mxu0 %v170
    %2343 = vmatpush1.msra.mxu0 %v169
    %2344 = vmatprep.subr.mxu0 %v167
    %2345 = vmatpush1.msra.mxu0 %v166
    %2346 = vmatprep.subr.mxu0 %v164
    %2347 = vmatpush1.msra.mxu0 %v163
    %2348 = vmatprep.subr.mxu0 0.0
    %2349 = vmatpush2.msra.mxu0 0.0
    %2350 = vmatprep.subr.mxu0 0.0
    %2351 = vmatpush2.msra.mxu0 0.0
    %2352 = vmatprep.subr.mxu0 0.0
    %2353 = vmatpush2.msra.mxu0 0.0
    %2354 = vmatprep.subr.mxu0 0.0
    %2355 = vmatpush2.msra.mxu0 0.0
    %2356 = vmatprep.subr.mxu0 0.0
    %2357 = vmatpush2.msra.mxu0 0.0
    %2358 = vmatprep.subr.mxu0 0.0
    %2359 = vmatpush2.msra.mxu0 0.0
    %2360 = vmatprep.subr.mxu0 0.0
    %2361 = vmatpush2.msra.mxu0 0.0
    %2362 = vmatprep.subr.mxu0 0.0
    %2363 = vmatpush2.msra.mxu0 0.0
    %2364 = vmatprep.subr.mxu0 0.0
    %2365 = vmatpush2.msra.mxu0 0.0
    %2366 = vmatprep.subr.mxu0 0.0
    %2367 = vmatpush2.msra.mxu0 0.0
    %2368 = vmatprep.subr.mxu0 0.0
    %2369 = vmatpush2.msra.mxu0 0.0
    %2370 = vmatprep.subr.mxu0 0.0
    %2371 = vmatpush2.msra.mxu0 0.0
    %2372 = vmatprep.subr.mxu0 0.0
    %2373 = vmatpush2.msra.mxu0 0.0
    %2374 = vmatprep.subr.mxu0 0.0
    %2375 = vmatpush2.msra.mxu0 0.0
    %2376 = vmatprep.subr.mxu0 0.0
    %2377 = vmatpush2.msra.mxu0 0.0
    %2378 = vmatprep.subr.mxu0 0.0
    %2379 = vmatpush2.msra.mxu0 0.0
    %2380 = vmatprep.mubr.f32.mxu0 0.0
    %2381 = vmatmul.mubr.f32.gmra.mxu0 %v2315
    %v2382 = vpop.f32.mrf.mxu0
    %v2383 = vadd.f32 0.0, %v2382
    %v2384 = vpop.f32.mrf.mxu0
    %v2385 = vadd.f32 0.0, %v2384
    %2386 = vdwg.mxu0
    %2387 = vmatprep.subr.mxu0 0.0
    %2388 = vmatpush1.msra.mxu0 %v210
    %2389 = vmatprep.subr.mxu0 0.0
    %2390 = vmatpush1.msra.mxu0 %v207
    %2391 = vmatprep.subr.mxu0 0.0
    %2392 = vmatpush1.msra.mxu0 %v204
    %2393 = vmatprep.subr.mxu0 0.0
    %2394 = vmatpush1.msra.mxu0 %v201
    %2395 = vmatprep.subr.mxu0 0.0
    %2396 = vmatpush1.msra.mxu0 %v198
    %2397 = vmatprep.subr.mxu0 0.0
    %2398 = vmatpush1.msra.mxu0 %v195
    %2399 = vmatprep.subr.mxu0 0.0
    %2400 = vmatpush1.msra.mxu0 %v192
    %2401 = vmatprep.subr.mxu0 0.0
    %2402 = vmatpush1.msra.mxu0 %v189
    %2403 = vmatprep.subr.mxu0 0.0
    %2404 = vmatpush1.msra.mxu0 %v186
    %2405 = vmatprep.subr.mxu0 0.0
    %2406 = vmatpush1.msra.mxu0 %v183
    %2407 = vmatprep.subr.mxu0 0.0
    %2408 = vmatpush1.msra.mxu0 %v180
    %2409 = vmatprep.subr.mxu0 0.0
    %2410 = vmatpush1.msra.mxu0 %v177
    %2411 = vmatprep.subr.mxu0 0.0
    %2412 = vmatpush1.msra.mxu0 %v174
    %2413 = vmatprep.subr.mxu0 0.0
    %2414 = vmatpush1.msra.mxu0 %v171
    %2415 = vmatprep.subr.mxu0 0.0
    %2416 = vmatpush1.msra.mxu0 %v168
    %2417 = vmatprep.subr.mxu0 0.0
    %2418 = vmatpush1.msra.mxu0 %v165
    %2419 = vmatprep.subr.mxu0 0.0
    %2420 = vmatpush2.msra.mxu0 0.0
    %2421 = vmatprep.subr.mxu0 0.0
    %2422 = vmatpush2.msra.mxu0 0.0
    %2423 = vmatprep.subr.mxu0 0.0
    %2424 = vmatpush2.msra.mxu0 0.0
    %2425 = vmatprep.subr.mxu0 0.0
    %2426 = vmatpush2.msra.mxu0 0.0
    %2427 = vmatprep.subr.mxu0 0.0
    %2428 = vmatpush2.msra.mxu0 0.0
    %2429 = vmatprep.subr.mxu0 0.0
    %2430 = vmatpush2.msra.mxu0 0.0
    %2431 = vmatprep.subr.mxu0 0.0
    %2432 = vmatpush2.msra.mxu0 0.0
    %2433 = vmatprep.subr.mxu0 0.0
    %2434 = vmatpush2.msra.mxu0 0.0
    %2435 = vmatprep.subr.mxu0 0.0
    %2436 = vmatpush2.msra.mxu0 0.0
    %2437 = vmatprep.subr.mxu0 0.0
    %2438 = vmatpush2.msra.mxu0 0.0
    %2439 = vmatprep.subr.mxu0 0.0
    %2440 = vmatpush2.msra.mxu0 0.0
    %2441 = vmatprep.subr.mxu0 0.0
    %2442 = vmatpush2.msra.mxu0 0.0
    %2443 = vmatprep.subr.mxu0 0.0
    %2444 = vmatpush2.msra.mxu0 0.0
    %2445 = vmatprep.subr.mxu0 0.0
    %2446 = vmatpush2.msra.mxu0 0.0
    %2447 = vmatprep.subr.mxu0 0.0
    %2448 = vmatpush2.msra.mxu0 0.0
    %2449 = vmatprep.subr.mxu0 0.0
    %2450 = vmatpush2.msra.mxu0 0.0
    %2451 = vmatprep.mubr.f32.mxu0 0.0
    %2452 = vmatmul.mubr.f32.gmra.mxu0 %v2315
    %v2453 = vpop.f32.mrf.mxu0
    %v2454 = vadd.f32 0.0, %v2453
    %v2455 = vpop.f32.mrf.mxu0
    %2456 = vdwg.mxu0
    %2457 = vst [vmem:[#allocation13 + $0x18] sm:$0xff] %v2315
    %v2458 = vld [vmem:[#allocation2 + $0x60] sm:$0xff]
    %v2459 = vld [vmem:[#allocation2 + $0x68] sm:$0xff]
    %v2460 = vld [vmem:[#allocation2 + $0x70] sm:$0xff]
    %v2461 = vadd.f32 %v2458, %v2079
    %v2462 = vxor.u32 %v2461, 2147483648
    %v2463 = vmul.f32 %v2462, 1.442695
    %v2464 = vpow.pop %v2463
    %v2465 = vadd.f32 %v2464, 1.0
    %v2466 = vrcp.pop %v2465
    %v2467 = vmul.f32 1.0, %v2466
    %v2468 = vadd.f32 %v2459, %v2081
    %v2469 = vxor.u32 %v2468, 2147483648
    %v2470 = vmul.f32 %v2469, 1.442695
    %v2471 = vpow.pop %v2470
    %v2472 = vadd.f32 %v2471, 1.0
    %v2473 = vrcp.pop %v2472
    %v2474 = vmul.f32 1.0, %v2473
    %v2475 = vadd.f32 %v2150, %v281
    %v2476 = vmul.f32 %v2467, %v2475
    %v2477 = vadd.f32 %v2460, %v2476
    %v2478 = vtanh.pop %v2477
    %v2479 = vsub.f32 1.0, %v2474
    %v2480 = vmul.f32 %v2479, %v2478
    %v2481 = vmul.f32 %v2474, %v2011
    %v2482 = vadd.f32 %v2480, %v2481
    %2483 = vmatprep.subr.mxu0 %v161
    %2484 = vmatpush1.msra.mxu0 %v160
    %2485 = vmatprep.subr.mxu0 %v158
    %2486 = vmatpush1.msra.mxu0 %v157
    %2487 = vmatprep.subr.mxu0 %v155
    %2488 = vmatpush1.msra.mxu0 %v154
    %2489 = vmatprep.subr.mxu0 %v152
    %2490 = vmatpush1.msra.mxu0 %v151
    %2491 = vmatprep.subr.mxu0 %v149
    %2492 = vmatpush1.msra.mxu0 %v148
    %2493 = vmatprep.subr.mxu0 %v146
    %2494 = vmatpush1.msra.mxu0 %v145
    %2495 = vmatprep.subr.mxu0 %v143
    %2496 = vmatpush1.msra.mxu0 %v142
    %2497 = vmatprep.subr.mxu0 %v140
    %2498 = vmatpush1.msra.mxu0 %v139
    %2499 = vmatprep.subr.mxu0 %v137
    %2500 = vmatpush1.msra.mxu0 %v136
    %2501 = vmatprep.subr.mxu0 %v134
    %2502 = vmatpush1.msra.mxu0 %v133
    %2503 = vmatprep.subr.mxu0 %v131
    %2504 = vmatpush1.msra.mxu0 %v130
    %2505 = vmatprep.subr.mxu0 %v128
    %2506 = vmatpush1.msra.mxu0 %v127
    %2507 = vmatprep.subr.mxu0 %v125
    %2508 = vmatpush1.msra.mxu0 %v124
    %2509 = vmatprep.subr.mxu0 %v122
    %2510 = vmatpush1.msra.mxu0 %v121
    %2511 = vmatprep.subr.mxu0 %v119
    %2512 = vmatpush1.msra.mxu0 %v118
    %2513 = vmatprep.subr.mxu0 %v116
    %2514 = vmatpush1.msra.mxu0 %v115
    %2515 = vmatprep.subr.mxu0 0.0
    %2516 = vmatpush2.msra.mxu0 0.0
    %2517 = vmatprep.subr.mxu0 0.0
    %2518 = vmatpush2.msra.mxu0 0.0
    %2519 = vmatprep.subr.mxu0 0.0
    %2520 = vmatpush2.msra.mxu0 0.0
    %2521 = vmatprep.subr.mxu0 0.0
    %2522 = vmatpush2.msra.mxu0 0.0
    %2523 = vmatprep.subr.mxu0 0.0
    %2524 = vmatpush2.msra.mxu0 0.0
    %2525 = vmatprep.subr.mxu0 0.0
    %2526 = vmatpush2.msra.mxu0 0.0
    %2527 = vmatprep.subr.mxu0 0.0
    %2528 = vmatpush2.msra.mxu0 0.0
    %2529 = vmatprep.subr.mxu0 0.0
    %2530 = vmatpush2.msra.mxu0 0.0
    %2531 = vmatprep.subr.mxu0 0.0
    %2532 = vmatpush2.msra.mxu0 0.0
    %2533 = vmatprep.subr.mxu0 0.0
    %2534 = vmatpush2.msra.mxu0 0.0
    %2535 = vmatprep.subr.mxu0 0.0
    %2536 = vmatpush2.msra.mxu0 0.0
    %2537 = vmatprep.subr.mxu0 0.0
    %2538 = vmatpush2.msra.mxu0 0.0
    %2539 = vmatprep.subr.mxu0 0.0
    %2540 = vmatpush2.msra.mxu0 0.0
    %2541 = vmatprep.subr.mxu0 0.0
    %2542 = vmatpush2.msra.mxu0 0.0
    %2543 = vmatprep.subr.mxu0 0.0
    %2544 = vmatpush2.msra.mxu0 0.0
    %2545 = vmatprep.subr.mxu0 0.0
    %2546 = vmatpush2.msra.mxu0 0.0
    %2547 = vmatprep.mubr.f32.mxu0 0.0
    %2548 = vmatmul.mubr.f32.gmra.mxu0 %v2482
    %v2549 = vpop.f32.mrf.mxu0
    %v2550 = vadd.f32 0.0, %v2549
    %v2551 = vpop.f32.mrf.mxu0
    %v2552 = vadd.f32 0.0, %v2551
    %2553 = vdwg.mxu0
    %2554 = vmatprep.subr.mxu0 0.0
    %2555 = vmatpush1.msra.mxu0 %v162
    %2556 = vmatprep.subr.mxu0 0.0
    %2557 = vmatpush1.msra.mxu0 %v159
    %2558 = vmatprep.subr.mxu0 0.0
    %2559 = vmatpush1.msra.mxu0 %v156
    %2560 = vmatprep.subr.mxu0 0.0
    %2561 = vmatpush1.msra.mxu0 %v153
    %2562 = vmatprep.subr.mxu0 0.0
    %2563 = vmatpush1.msra.mxu0 %v150
    %2564 = vmatprep.subr.mxu0 0.0
    %2565 = vmatpush1.msra.mxu0 %v147
    %2566 = vmatprep.subr.mxu0 0.0
    %2567 = vmatpush1.msra.mxu0 %v144
    %2568 = vmatprep.subr.mxu0 0.0
    %2569 = vmatpush1.msra.mxu0 %v141
    %2570 = vmatprep.subr.mxu0 0.0
    %2571 = vmatpush1.msra.mxu0 %v138
    %2572 = vmatprep.subr.mxu0 0.0
    %2573 = vmatpush1.msra.mxu0 %v135
    %2574 = vmatprep.subr.mxu0 0.0
    %2575 = vmatpush1.msra.mxu0 %v132
    %2576 = vmatprep.subr.mxu0 0.0
    %2577 = vmatpush1.msra.mxu0 %v129
    %2578 = vmatprep.subr.mxu0 0.0
    %2579 = vmatpush1.msra.mxu0 %v126
    %2580 = vmatprep.subr.mxu0 0.0
    %2581 = vmatpush1.msra.mxu0 %v123
    %2582 = vmatprep.subr.mxu0 0.0
    %2583 = vmatpush1.msra.mxu0 %v120
    %2584 = vmatprep.subr.mxu0 0.0
    %2585 = vmatpush1.msra.mxu0 %v117
    %2586 = vmatprep.subr.mxu0 0.0
    %2587 = vmatpush2.msra.mxu0 0.0
    %2588 = vmatprep.subr.mxu0 0.0
    %2589 = vmatpush2.msra.mxu0 0.0
    %2590 = vmatprep.subr.mxu0 0.0
    %2591 = vmatpush2.msra.mxu0 0.0
    %2592 = vmatprep.subr.mxu0 0.0
    %2593 = vmatpush2.msra.mxu0 0.0
    %2594 = vmatprep.subr.mxu0 0.0
    %2595 = vmatpush2.msra.mxu0 0.0
    %2596 = vmatprep.subr.mxu0 0.0
    %2597 = vmatpush2.msra.mxu0 0.0
    %2598 = vmatprep.subr.mxu0 0.0
    %2599 = vmatpush2.msra.mxu0 0.0
    %2600 = vmatprep.subr.mxu0 0.0
    %2601 = vmatpush2.msra.mxu0 0.0
    %2602 = vmatprep.subr.mxu0 0.0
    %2603 = vmatpush2.msra.mxu0 0.0
    %2604 = vmatprep.subr.mxu0 0.0
    %2605 = vmatpush2.msra.mxu0 0.0
    %2606 = vmatprep.subr.mxu0 0.0
    %2607 = vmatpush2.msra.mxu0 0.0
    %2608 = vmatprep.subr.mxu0 0.0
    %2609 = vmatpush2.msra.mxu0 0.0
    %2610 = vmatprep.subr.mxu0 0.0
    %2611 = vmatpush2.msra.mxu0 0.0
    %2612 = vmatprep.subr.mxu0 0.0
    %2613 = vmatpush2.msra.mxu0 0.0
    %2614 = vmatprep.subr.mxu0 0.0
    %2615 = vmatpush2.msra.mxu0 0.0
    %2616 = vmatprep.subr.mxu0 0.0
    %2617 = vmatpush2.msra.mxu0 0.0
    %2618 = vmatprep.mubr.f32.mxu0 0.0
    %2619 = vmatmul.mubr.f32.gmra.mxu0 %v2482
    %v2620 = vpop.f32.mrf.mxu0
    %v2621 = vadd.f32 0.0, %v2620
    %v2622 = vpop.f32.mrf.mxu0
    %2623 = vdwg.mxu0
    %2624 = vmatprep.subr.mxu0 %v257
    %2625 = vmatpush1.msra.mxu0 %v256
    %2626 = vmatprep.subr.mxu0 %v254
    %2627 = vmatpush1.msra.mxu0 %v253
    %2628 = vmatprep.subr.mxu0 %v251
    %2629 = vmatpush1.msra.mxu0 %v250
    %2630 = vmatprep.subr.mxu0 %v248
    %2631 = vmatpush1.msra.mxu0 %v247
    %2632 = vmatprep.subr.mxu0 %v245
    %2633 = vmatpush1.msra.mxu0 %v244
    %2634 = vmatprep.subr.mxu0 %v242
    %2635 = vmatpush1.msra.mxu0 %v241
    %2636 = vmatprep.subr.mxu0 %v239
    %2637 = vmatpush1.msra.mxu0 %v238
    %2638 = vmatprep.subr.mxu0 %v236
    %2639 = vmatpush1.msra.mxu0 %v235
    %2640 = vmatprep.subr.mxu0 %v233
    %2641 = vmatpush1.msra.mxu0 %v232
    %2642 = vmatprep.subr.mxu0 %v230
    %2643 = vmatpush1.msra.mxu0 %v229
    %2644 = vmatprep.subr.mxu0 %v227
    %2645 = vmatpush1.msra.mxu0 %v226
    %2646 = vmatprep.subr.mxu0 %v224
    %2647 = vmatpush1.msra.mxu0 %v223
    %2648 = vmatprep.subr.mxu0 %v221
    %2649 = vmatpush1.msra.mxu0 %v220
    %2650 = vmatprep.subr.mxu0 %v218
    %2651 = vmatpush1.msra.mxu0 %v217
    %2652 = vmatprep.subr.mxu0 %v215
    %2653 = vmatpush1.msra.mxu0 %v214
    %2654 = vmatprep.subr.mxu0 %v212
    %2655 = vmatpush1.msra.mxu0 %v211
    %2656 = vmatprep.subr.mxu0 0.0
    %2657 = vmatpush2.msra.mxu0 0.0
    %2658 = vmatprep.subr.mxu0 0.0
    %2659 = vmatpush2.msra.mxu0 0.0
    %2660 = vmatprep.subr.mxu0 0.0
    %2661 = vmatpush2.msra.mxu0 0.0
    %2662 = vmatprep.subr.mxu0 0.0
    %2663 = vmatpush2.msra.mxu0 0.0
    %2664 = vmatprep.subr.mxu0 0.0
    %2665 = vmatpush2.msra.mxu0 0.0
    %2666 = vmatprep.subr.mxu0 0.0
    %2667 = vmatpush2.msra.mxu0 0.0
    %2668 = vmatprep.subr.mxu0 0.0
    %2669 = vmatpush2.msra.mxu0 0.0
    %2670 = vmatprep.subr.mxu0 0.0
    %2671 = vmatpush2.msra.mxu0 0.0
    %2672 = vmatprep.subr.mxu0 0.0
    %2673 = vmatpush2.msra.mxu0 0.0
    %2674 = vmatprep.subr.mxu0 0.0
    %2675 = vmatpush2.msra.mxu0 0.0
    %2676 = vmatprep.subr.mxu0 0.0
    %2677 = vmatpush2.msra.mxu0 0.0
    %2678 = vmatprep.subr.mxu0 0.0
    %2679 = vmatpush2.msra.mxu0 0.0
    %2680 = vmatprep.subr.mxu0 0.0
    %2681 = vmatpush2.msra.mxu0 0.0
    %2682 = vmatprep.subr.mxu0 0.0
    %2683 = vmatpush2.msra.mxu0 0.0
    %2684 = vmatprep.subr.mxu0 0.0
    %2685 = vmatpush2.msra.mxu0 0.0
    %2686 = vmatprep.subr.mxu0 0.0
    %2687 = vmatpush2.msra.mxu0 0.0
    %2688 = vmatprep.mubr.f32.mxu0 0.0
    %2689 = vmatmul.mubr.f32.gmra.mxu0 %v2482
    %v2690 = vpop.f32.mrf.mxu0
    %v2691 = vadd.f32 %v264, %v2690
    %v2692 = vpop.f32.mrf.mxu0
    %v2693 = vadd.f32 %v268, %v2692
    %2694 = vdwg.mxu0
    %2695 = vmatprep.subr.mxu0 0.0
    %2696 = vmatpush1.msra.mxu0 %v258
    %2697 = vmatprep.subr.mxu0 0.0
    %2698 = vmatpush1.msra.mxu0 %v255
    %2699 = vmatprep.subr.mxu0 0.0
    %2700 = vmatpush1.msra.mxu0 %v252
    %2701 = vmatprep.subr.mxu0 0.0
    %2702 = vmatpush1.msra.mxu0 %v249
    %2703 = vmatprep.subr.mxu0 0.0
    %2704 = vmatpush1.msra.mxu0 %v246
    %2705 = vmatprep.subr.mxu0 0.0
    %2706 = vmatpush1.msra.mxu0 %v243
    %2707 = vmatprep.subr.mxu0 0.0
    %2708 = vmatpush1.msra.mxu0 %v240
    %2709 = vmatprep.subr.mxu0 0.0
    %2710 = vmatpush1.msra.mxu0 %v237
    %2711 = vmatprep.subr.mxu0 0.0
    %2712 = vmatpush1.msra.mxu0 %v234
    %2713 = vmatprep.subr.mxu0 0.0
    %2714 = vmatpush1.msra.mxu0 %v231
    %2715 = vmatprep.subr.mxu0 0.0
    %2716 = vmatpush1.msra.mxu0 %v228
    %2717 = vmatprep.subr.mxu0 0.0
    %2718 = vmatpush1.msra.mxu0 %v225
    %2719 = vmatprep.subr.mxu0 0.0
    %2720 = vmatpush1.msra.mxu0 %v222
    %2721 = vmatprep.subr.mxu0 0.0
    %2722 = vmatpush1.msra.mxu0 %v219
    %2723 = vmatprep.subr.mxu0 0.0
    %2724 = vmatpush1.msra.mxu0 %v216
    %2725 = vmatprep.subr.mxu0 0.0
    %2726 = vmatpush1.msra.mxu0 %v213
    %2727 = vmatprep.subr.mxu0 0.0
    %2728 = vmatpush2.msra.mxu0 0.0
    %2729 = vmatprep.subr.mxu0 0.0
    %2730 = vmatpush2.msra.mxu0 0.0
    %2731 = vmatprep.subr.mxu0 0.0
    %2732 = vmatpush2.msra.mxu0 0.0
    %2733 = vmatprep.subr.mxu0 0.0
    %2734 = vmatpush2.msra.mxu0 0.0
    %2735 = vmatprep.subr.mxu0 0.0
    %2736 = vmatpush2.msra.mxu0 0.0
    %2737 = vmatprep.subr.mxu0 0.0
    %2738 = vmatpush2.msra.mxu0 0.0
    %2739 = vmatprep.subr.mxu0 0.0
    %2740 = vmatpush2.msra.mxu0 0.0
    %2741 = vmatprep.subr.mxu0 0.0
    %2742 = vmatpush2.msra.mxu0 0.0
    %2743 = vmatprep.subr.mxu0 0.0
    %2744 = vmatpush2.msra.mxu0 0.0
    %2745 = vmatprep.subr.mxu0 0.0
    %2746 = vmatpush2.msra.mxu0 0.0
    %2747 = vmatprep.subr.mxu0 0.0
    %2748 = vmatpush2.msra.mxu0 0.0
    %2749 = vmatprep.subr.mxu0 0.0
    %2750 = vmatpush2.msra.mxu0 0.0
    %2751 = vmatprep.subr.mxu0 0.0
    %2752 = vmatpush2.msra.mxu0 0.0
    %2753 = vmatprep.subr.mxu0 0.0
    %2754 = vmatpush2.msra.mxu0 0.0
    %2755 = vmatprep.subr.mxu0 0.0
    %2756 = vmatpush2.msra.mxu0 0.0
    %2757 = vmatprep.subr.mxu0 0.0
    %2758 = vmatpush2.msra.mxu0 0.0
    %2759 = vmatprep.mubr.f32.mxu0 0.0
    %2760 = vmatmul.mubr.f32.gmra.mxu0 %v2482
    %v2761 = vpop.f32.mrf.mxu0
    %v2762 = vadd.f32 %v272, %v2761
    %v2763 = vpop.f32.mrf.mxu0
    %2764 = vdwg.mxu0
    %v2765 = vadd.f32 %v2691, %v2383
    %v2766 = vxor.u32 %v2765, 2147483648
    %v2767 = vmul.f32 %v2766, 1.442695
    %v2768 = vpow.pop %v2767
    %v2769 = vadd.f32 %v2768, 1.0
    %v2770 = vrcp.pop %v2769
    %v2771 = vmul.f32 1.0, %v2770
    %v2772 = vadd.f32 %v2693, %v2385
    %v2773 = vxor.u32 %v2772, 2147483648
    %v2774 = vmul.f32 %v2773, 1.442695
    %v2775 = vpow.pop %v2774
    %v2776 = vadd.f32 %v2775, 1.0
    %v2777 = vrcp.pop %v2776
    %v2778 = vmul.f32 1.0, %v2777
    %v2779 = vadd.f32 %v2454, %v288
    %v2780 = vmul.f32 %v2771, %v2779
    %v2781 = vadd.f32 %v2762, %v2780
    %v2782 = vtanh.pop %v2781
    %v2783 = vsub.f32 1.0, %v2778
    %v2784 = vmul.f32 %v2783, %v2782
    %v2785 = vmul.f32 %v2778, %v2315
    %v2786 = vadd.f32 %v2784, %v2785
    %2787 = vmatprep.subr.mxu0 %v209
    %2788 = vmatpush1.msra.mxu0 %v208
    %2789 = vmatprep.subr.mxu0 %v206
    %2790 = vmatpush1.msra.mxu0 %v205
    %2791 = vmatprep.subr.mxu0 %v203
    %2792 = vmatpush1.msra.mxu0 %v202
    %2793 = vmatprep.subr.mxu0 %v200
    %2794 = vmatpush1.msra.mxu0 %v199
    %2795 = vmatprep.subr.mxu0 %v197
    %2796 = vmatpush1.msra.mxu0 %v196
    %2797 = vmatprep.subr.mxu0 %v194
    %2798 = vmatpush1.msra.mxu0 %v193
    %2799 = vmatprep.subr.mxu0 %v191
    %2800 = vmatpush1.msra.mxu0 %v190
    %2801 = vmatprep.subr.mxu0 %v188
    %2802 = vmatpush1.msra.mxu0 %v187
    %2803 = vmatprep.subr.mxu0 %v185
    %2804 = vmatpush1.msra.mxu0 %v184
    %2805 = vmatprep.subr.mxu0 %v182
    %2806 = vmatpush1.msra.mxu0 %v181
    %2807 = vmatprep.subr.mxu0 %v179
    %2808 = vmatpush1.msra.mxu0 %v178
    %2809 = vmatprep.subr.mxu0 %v176
    %2810 = vmatpush1.msra.mxu0 %v175
    %2811 = vmatprep.subr.mxu0 %v173
    %2812 = vmatpush1.msra.mxu0 %v172
    %2813 = vmatprep.subr.mxu0 %v170
    %2814 = vmatpush1.msra.mxu0 %v169
    %2815 = vmatprep.subr.mxu0 %v167
    %2816 = vmatpush1.msra.mxu0 %v166
    %2817 = vmatprep.subr.mxu0 %v164
    %2818 = vmatpush1.msra.mxu0 %v163
    %2819 = vmatprep.subr.mxu0 0.0
    %2820 = vmatpush2.msra.mxu0 0.0
    %2821 = vmatprep.subr.mxu0 0.0
    %2822 = vmatpush2.msra.mxu0 0.0
    %2823 = vmatprep.subr.mxu0 0.0
    %2824 = vmatpush2.msra.mxu0 0.0
    %2825 = vmatprep.subr.mxu0 0.0
    %2826 = vmatpush2.msra.mxu0 0.0
    %2827 = vmatprep.subr.mxu0 0.0
    %2828 = vmatpush2.msra.mxu0 0.0
    %2829 = vmatprep.subr.mxu0 0.0
    %2830 = vmatpush2.msra.mxu0 0.0
    %2831 = vmatprep.subr.mxu0 0.0
    %2832 = vmatpush2.msra.mxu0 0.0
    %2833 = vmatprep.subr.mxu0 0.0
    %2834 = vmatpush2.msra.mxu0 0.0
    %2835 = vmatprep.subr.mxu0 0.0
    %2836 = vmatpush2.msra.mxu0 0.0
    %2837 = vmatprep.subr.mxu0 0.0
    %2838 = vmatpush2.msra.mxu0 0.0
    %2839 = vmatprep.subr.mxu0 0.0
    %2840 = vmatpush2.msra.mxu0 0.0
    %2841 = vmatprep.subr.mxu0 0.0
    %2842 = vmatpush2.msra.mxu0 0.0
    %2843 = vmatprep.subr.mxu0 0.0
    %2844 = vmatpush2.msra.mxu0 0.0
    %2845 = vmatprep.subr.mxu0 0.0
    %2846 = vmatpush2.msra.mxu0 0.0
    %2847 = vmatprep.subr.mxu0 0.0
    %2848 = vmatpush2.msra.mxu0 0.0
    %2849 = vmatprep.subr.mxu0 0.0
    %2850 = vmatpush2.msra.mxu0 0.0
    %2851 = vmatprep.mubr.f32.mxu0 0.0
    %2852 = vmatmul.mubr.f32.gmra.mxu0 %v2786
    %v2853 = vpop.f32.mrf.mxu0
    %v2854 = vadd.f32 0.0, %v2853
    %v2855 = vpop.f32.mrf.mxu0
    %v2856 = vadd.f32 0.0, %v2855
    %2857 = vdwg.mxu0
    %2858 = vmatprep.subr.mxu0 0.0
    %2859 = vmatpush1.msra.mxu0 %v210
    %2860 = vmatprep.subr.mxu0 0.0
    %2861 = vmatpush1.msra.mxu0 %v207
    %2862 = vmatprep.subr.mxu0 0.0
    %2863 = vmatpush1.msra.mxu0 %v204
    %2864 = vmatprep.subr.mxu0 0.0
    %2865 = vmatpush1.msra.mxu0 %v201
    %2866 = vmatprep.subr.mxu0 0.0
    %2867 = vmatpush1.msra.mxu0 %v198
    %2868 = vmatprep.subr.mxu0 0.0
    %2869 = vmatpush1.msra.mxu0 %v195
    %2870 = vmatprep.subr.mxu0 0.0
    %2871 = vmatpush1.msra.mxu0 %v192
    %2872 = vmatprep.subr.mxu0 0.0
    %2873 = vmatpush1.msra.mxu0 %v189
    %2874 = vmatprep.subr.mxu0 0.0
    %2875 = vmatpush1.msra.mxu0 %v186
    %2876 = vmatprep.subr.mxu0 0.0
    %2877 = vmatpush1.msra.mxu0 %v183
    %2878 = vmatprep.subr.mxu0 0.0
    %2879 = vmatpush1.msra.mxu0 %v180
    %2880 = vmatprep.subr.mxu0 0.0
    %2881 = vmatpush1.msra.mxu0 %v177
    %2882 = vmatprep.subr.mxu0 0.0
    %2883 = vmatpush1.msra.mxu0 %v174
    %2884 = vmatprep.subr.mxu0 0.0
    %2885 = vmatpush1.msra.mxu0 %v171
    %2886 = vmatprep.subr.mxu0 0.0
    %2887 = vmatpush1.msra.mxu0 %v168
    %2888 = vmatprep.subr.mxu0 0.0
    %2889 = vmatpush1.msra.mxu0 %v165
    %2890 = vmatprep.subr.mxu0 0.0
    %2891 = vmatpush2.msra.mxu0 0.0
    %2892 = vmatprep.subr.mxu0 0.0
    %2893 = vmatpush2.msra.mxu0 0.0
    %2894 = vmatprep.subr.mxu0 0.0
    %2895 = vmatpush2.msra.mxu0 0.0
    %2896 = vmatprep.subr.mxu0 0.0
    %2897 = vmatpush2.msra.mxu0 0.0
    %2898 = vmatprep.subr.mxu0 0.0
    %2899 = vmatpush2.msra.mxu0 0.0
    %2900 = vmatprep.subr.mxu0 0.0
    %2901 = vmatpush2.msra.mxu0 0.0
    %2902 = vmatprep.subr.mxu0 0.0
    %2903 = vmatpush2.msra.mxu0 0.0
    %2904 = vmatprep.subr.mxu0 0.0
    %2905 = vmatpush2.msra.mxu0 0.0
    %2906 = vmatprep.subr.mxu0 0.0
    %2907 = vmatpush2.msra.mxu0 0.0
    %2908 = vmatprep.subr.mxu0 0.0
    %2909 = vmatpush2.msra.mxu0 0.0
    %2910 = vmatprep.subr.mxu0 0.0
    %2911 = vmatpush2.msra.mxu0 0.0
    %2912 = vmatprep.subr.mxu0 0.0
    %2913 = vmatpush2.msra.mxu0 0.0
    %2914 = vmatprep.subr.mxu0 0.0
    %2915 = vmatpush2.msra.mxu0 0.0
    %2916 = vmatprep.subr.mxu0 0.0
    %2917 = vmatpush2.msra.mxu0 0.0
    %2918 = vmatprep.subr.mxu0 0.0
    %2919 = vmatpush2.msra.mxu0 0.0
    %2920 = vmatprep.subr.mxu0 0.0
    %2921 = vmatpush2.msra.mxu0 0.0
    %2922 = vmatprep.mubr.f32.mxu0 0.0
    %2923 = vmatmul.mubr.f32.gmra.mxu0 %v2786
    %v2924 = vpop.f32.mrf.mxu0
    %v2925 = vadd.f32 0.0, %v2924
    %v2926 = vpop.f32.mrf.mxu0
    %2927 = vdwg.mxu0
    %2928 = vst [vmem:[#allocation13 + $0x20] sm:$0xff] %v2786
    %v2929 = vld [vmem:[#allocation2 + $0x78] sm:$0xff]
    %v2930 = vld [vmem:[#allocation2 + $0x80] sm:$0xff]
    %v2931 = vld [vmem:[#allocation2 + $0x88] sm:$0xff]
    %v2932 = vadd.f32 %v2929, %v2550
    %v2933 = vxor.u32 %v2932, 2147483648
    %v2934 = vmul.f32 %v2933, 1.442695
    %v2935 = vpow.pop %v2934
    %v2936 = vadd.f32 %v2935, 1.0
    %v2937 = vrcp.pop %v2936
    %v2938 = vmul.f32 1.0, %v2937
    %v2939 = vadd.f32 %v2930, %v2552
    %v2940 = vxor.u32 %v2939, 2147483648
    %v2941 = vmul.f32 %v2940, 1.442695
    %v2942 = vpow.pop %v2941
    %v2943 = vadd.f32 %v2942, 1.0
    %v2944 = vrcp.pop %v2943
    %v2945 = vmul.f32 1.0, %v2944
    %v2946 = vadd.f32 %v2621, %v281
    %v2947 = vmul.f32 %v2938, %v2946
    %v2948 = vadd.f32 %v2931, %v2947
    %v2949 = vtanh.pop %v2948
    %v2950 = vsub.f32 1.0, %v2945
    %v2951 = vmul.f32 %v2950, %v2949
    %v2952 = vmul.f32 %v2945, %v2482
    %v2953 = vadd.f32 %v2951, %v2952
    %2954 = vmatprep.subr.mxu0 %v161
    %2955 = vmatpush1.msra.mxu0 %v160
    %2956 = vmatprep.subr.mxu0 %v158
    %2957 = vmatpush1.msra.mxu0 %v157
    %2958 = vmatprep.subr.mxu0 %v155
    %2959 = vmatpush1.msra.mxu0 %v154
    %2960 = vmatprep.subr.mxu0 %v152
    %2961 = vmatpush1.msra.mxu0 %v151
    %2962 = vmatprep.subr.mxu0 %v149
    %2963 = vmatpush1.msra.mxu0 %v148
    %2964 = vmatprep.subr.mxu0 %v146
    %2965 = vmatpush1.msra.mxu0 %v145
    %2966 = vmatprep.subr.mxu0 %v143
    %2967 = vmatpush1.msra.mxu0 %v142
    %2968 = vmatprep.subr.mxu0 %v140
    %2969 = vmatpush1.msra.mxu0 %v139
    %2970 = vmatprep.subr.mxu0 %v137
    %2971 = vmatpush1.msra.mxu0 %v136
    %2972 = vmatprep.subr.mxu0 %v134
    %2973 = vmatpush1.msra.mxu0 %v133
    %2974 = vmatprep.subr.mxu0 %v131
    %2975 = vmatpush1.msra.mxu0 %v130
    %2976 = vmatprep.subr.mxu0 %v128
    %2977 = vmatpush1.msra.mxu0 %v127
    %2978 = vmatprep.subr.mxu0 %v125
    %2979 = vmatpush1.msra.mxu0 %v124
    %2980 = vmatprep.subr.mxu0 %v122
    %2981 = vmatpush1.msra.mxu0 %v121
    %2982 = vmatprep.subr.mxu0 %v119
    %2983 = vmatpush1.msra.mxu0 %v118
    %2984 = vmatprep.subr.mxu0 %v116
    %2985 = vmatpush1.msra.mxu0 %v115
    %2986 = vmatprep.subr.mxu0 0.0
    %2987 = vmatpush2.msra.mxu0 0.0
    %2988 = vmatprep.subr.mxu0 0.0
    %2989 = vmatpush2.msra.mxu0 0.0
    %2990 = vmatprep.subr.mxu0 0.0
    %2991 = vmatpush2.msra.mxu0 0.0
    %2992 = vmatprep.subr.mxu0 0.0
    %2993 = vmatpush2.msra.mxu0 0.0
    %2994 = vmatprep.subr.mxu0 0.0
    %2995 = vmatpush2.msra.mxu0 0.0
    %2996 = vmatprep.subr.mxu0 0.0
    %2997 = vmatpush2.msra.mxu0 0.0
    %2998 = vmatprep.subr.mxu0 0.0
    %2999 = vmatpush2.msra.mxu0 0.0
    %3000 = vmatprep.subr.mxu0 0.0
    %3001 = vmatpush2.msra.mxu0 0.0
    %3002 = vmatprep.subr.mxu0 0.0
    %3003 = vmatpush2.msra.mxu0 0.0
    %3004 = vmatprep.subr.mxu0 0.0
    %3005 = vmatpush2.msra.mxu0 0.0
    %3006 = vmatprep.subr.mxu0 0.0
    %3007 = vmatpush2.msra.mxu0 0.0
    %3008 = vmatprep.subr.mxu0 0.0
    %3009 = vmatpush2.msra.mxu0 0.0
    %3010 = vmatprep.subr.mxu0 0.0
    %3011 = vmatpush2.msra.mxu0 0.0
    %3012 = vmatprep.subr.mxu0 0.0
    %3013 = vmatpush2.msra.mxu0 0.0
    %3014 = vmatprep.subr.mxu0 0.0
    %3015 = vmatpush2.msra.mxu0 0.0
    %3016 = vmatprep.subr.mxu0 0.0
    %3017 = vmatpush2.msra.mxu0 0.0
    %3018 = vmatprep.mubr.f32.mxu0 0.0
    %3019 = vmatmul.mubr.f32.gmra.mxu0 %v2953
    %v3020 = vpop.f32.mrf.mxu0
    %v3021 = vadd.f32 0.0, %v3020
    %v3022 = vpop.f32.mrf.mxu0
    %v3023 = vadd.f32 0.0, %v3022
    %3024 = vdwg.mxu0
    %3025 = vmatprep.subr.mxu0 0.0
    %3026 = vmatpush1.msra.mxu0 %v162
    %3027 = vmatprep.subr.mxu0 0.0
    %3028 = vmatpush1.msra.mxu0 %v159
    %3029 = vmatprep.subr.mxu0 0.0
    %3030 = vmatpush1.msra.mxu0 %v156
    %3031 = vmatprep.subr.mxu0 0.0
    %3032 = vmatpush1.msra.mxu0 %v153
    %3033 = vmatprep.subr.mxu0 0.0
    %3034 = vmatpush1.msra.mxu0 %v150
    %3035 = vmatprep.subr.mxu0 0.0
    %3036 = vmatpush1.msra.mxu0 %v147
    %3037 = vmatprep.subr.mxu0 0.0
    %3038 = vmatpush1.msra.mxu0 %v144
    %3039 = vmatprep.subr.mxu0 0.0
    %3040 = vmatpush1.msra.mxu0 %v141
    %3041 = vmatprep.subr.mxu0 0.0
    %3042 = vmatpush1.msra.mxu0 %v138
    %3043 = vmatprep.subr.mxu0 0.0
    %3044 = vmatpush1.msra.mxu0 %v135
    %3045 = vmatprep.subr.mxu0 0.0
    %3046 = vmatpush1.msra.mxu0 %v132
    %3047 = vmatprep.subr.mxu0 0.0
    %3048 = vmatpush1.msra.mxu0 %v129
    %3049 = vmatprep.subr.mxu0 0.0
    %3050 = vmatpush1.msra.mxu0 %v126
    %3051 = vmatprep.subr.mxu0 0.0
    %3052 = vmatpush1.msra.mxu0 %v123
    %3053 = vmatprep.subr.mxu0 0.0
    %3054 = vmatpush1.msra.mxu0 %v120
    %3055 = vmatprep.subr.mxu0 0.0
    %3056 = vmatpush1.msra.mxu0 %v117
    %3057 = vmatprep.subr.mxu0 0.0
    %3058 = vmatpush2.msra.mxu0 0.0
    %3059 = vmatprep.subr.mxu0 0.0
    %3060 = vmatpush2.msra.mxu0 0.0
    %3061 = vmatprep.subr.mxu0 0.0
    %3062 = vmatpush2.msra.mxu0 0.0
    %3063 = vmatprep.subr.mxu0 0.0
    %3064 = vmatpush2.msra.mxu0 0.0
    %3065 = vmatprep.subr.mxu0 0.0
    %3066 = vmatpush2.msra.mxu0 0.0
    %3067 = vmatprep.subr.mxu0 0.0
    %3068 = vmatpush2.msra.mxu0 0.0
    %3069 = vmatprep.subr.mxu0 0.0
    %3070 = vmatpush2.msra.mxu0 0.0
    %3071 = vmatprep.subr.mxu0 0.0
    %3072 = vmatpush2.msra.mxu0 0.0
    %3073 = vmatprep.subr.mxu0 0.0
    %3074 = vmatpush2.msra.mxu0 0.0
    %3075 = vmatprep.subr.mxu0 0.0
    %3076 = vmatpush2.msra.mxu0 0.0
    %3077 = vmatprep.subr.mxu0 0.0
    %3078 = vmatpush2.msra.mxu0 0.0
    %3079 = vmatprep.subr.mxu0 0.0
    %3080 = vmatpush2.msra.mxu0 0.0
    %3081 = vmatprep.subr.mxu0 0.0
    %3082 = vmatpush2.msra.mxu0 0.0
    %3083 = vmatprep.subr.mxu0 0.0
    %3084 = vmatpush2.msra.mxu0 0.0
    %3085 = vmatprep.subr.mxu0 0.0
    %3086 = vmatpush2.msra.mxu0 0.0
    %3087 = vmatprep.subr.mxu0 0.0
    %3088 = vmatpush2.msra.mxu0 0.0
    %3089 = vmatprep.mubr.f32.mxu0 0.0
    %3090 = vmatmul.mubr.f32.gmra.mxu0 %v2953
    %v3091 = vpop.f32.mrf.mxu0
    %v3092 = vadd.f32 0.0, %v3091
    %v3093 = vpop.f32.mrf.mxu0
    %3094 = vdwg.mxu0
    %3095 = vmatprep.subr.mxu0 %v257
    %3096 = vmatpush1.msra.mxu0 %v256
    %3097 = vmatprep.subr.mxu0 %v254
    %3098 = vmatpush1.msra.mxu0 %v253
    %3099 = vmatprep.subr.mxu0 %v251
    %3100 = vmatpush1.msra.mxu0 %v250
    %3101 = vmatprep.subr.mxu0 %v248
    %3102 = vmatpush1.msra.mxu0 %v247
    %3103 = vmatprep.subr.mxu0 %v245
    %3104 = vmatpush1.msra.mxu0 %v244
    %3105 = vmatprep.subr.mxu0 %v242
    %3106 = vmatpush1.msra.mxu0 %v241
    %3107 = vmatprep.subr.mxu0 %v239
    %3108 = vmatpush1.msra.mxu0 %v238
    %3109 = vmatprep.subr.mxu0 %v236
    %3110 = vmatpush1.msra.mxu0 %v235
    %3111 = vmatprep.subr.mxu0 %v233
    %3112 = vmatpush1.msra.mxu0 %v232
    %3113 = vmatprep.subr.mxu0 %v230
    %3114 = vmatpush1.msra.mxu0 %v229
    %3115 = vmatprep.subr.mxu0 %v227
    %3116 = vmatpush1.msra.mxu0 %v226
    %3117 = vmatprep.subr.mxu0 %v224
    %3118 = vmatpush1.msra.mxu0 %v223
    %3119 = vmatprep.subr.mxu0 %v221
    %3120 = vmatpush1.msra.mxu0 %v220
    %3121 = vmatprep.subr.mxu0 %v218
    %3122 = vmatpush1.msra.mxu0 %v217
    %3123 = vmatprep.subr.mxu0 %v215
    %3124 = vmatpush1.msra.mxu0 %v214
    %3125 = vmatprep.subr.mxu0 %v212
    %3126 = vmatpush1.msra.mxu0 %v211
    %3127 = vmatprep.subr.mxu0 0.0
    %3128 = vmatpush2.msra.mxu0 0.0
    %3129 = vmatprep.subr.mxu0 0.0
    %3130 = vmatpush2.msra.mxu0 0.0
    %3131 = vmatprep.subr.mxu0 0.0
    %3132 = vmatpush2.msra.mxu0 0.0
    %3133 = vmatprep.subr.mxu0 0.0
    %3134 = vmatpush2.msra.mxu0 0.0
    %3135 = vmatprep.subr.mxu0 0.0
    %3136 = vmatpush2.msra.mxu0 0.0
    %3137 = vmatprep.subr.mxu0 0.0
    %3138 = vmatpush2.msra.mxu0 0.0
    %3139 = vmatprep.subr.mxu0 0.0
    %3140 = vmatpush2.msra.mxu0 0.0
    %3141 = vmatprep.subr.mxu0 0.0
    %3142 = vmatpush2.msra.mxu0 0.0
    %3143 = vmatprep.subr.mxu0 0.0
    %3144 = vmatpush2.msra.mxu0 0.0
    %3145 = vmatprep.subr.mxu0 0.0
    %3146 = vmatpush2.msra.mxu0 0.0
    %3147 = vmatprep.subr.mxu0 0.0
    %3148 = vmatpush2.msra.mxu0 0.0
    %3149 = vmatprep.subr.mxu0 0.0
    %3150 = vmatpush2.msra.mxu0 0.0
    %3151 = vmatprep.subr.mxu0 0.0
    %3152 = vmatpush2.msra.mxu0 0.0
    %3153 = vmatprep.subr.mxu0 0.0
    %3154 = vmatpush2.msra.mxu0 0.0
    %3155 = vmatprep.subr.mxu0 0.0
    %3156 = vmatpush2.msra.mxu0 0.0
    %3157 = vmatprep.subr.mxu0 0.0
    %3158 = vmatpush2.msra.mxu0 0.0
    %3159 = vmatprep.mubr.f32.mxu0 0.0
    %3160 = vmatmul.mubr.f32.gmra.mxu0 %v2953
    %v3161 = vpop.f32.mrf.mxu0
    %v3162 = vadd.f32 %v264, %v3161
    %v3163 = vpop.f32.mrf.mxu0
    %v3164 = vadd.f32 %v268, %v3163
    %3165 = vdwg.mxu0
    %3166 = vmatprep.subr.mxu0 0.0
    %3167 = vmatpush1.msra.mxu0 %v258
    %3168 = vmatprep.subr.mxu0 0.0
    %3169 = vmatpush1.msra.mxu0 %v255
    %3170 = vmatprep.subr.mxu0 0.0
    %3171 = vmatpush1.msra.mxu0 %v252
    %3172 = vmatprep.subr.mxu0 0.0
    %3173 = vmatpush1.msra.mxu0 %v249
    %3174 = vmatprep.subr.mxu0 0.0
    %3175 = vmatpush1.msra.mxu0 %v246
    %3176 = vmatprep.subr.mxu0 0.0
    %3177 = vmatpush1.msra.mxu0 %v243
    %3178 = vmatprep.subr.mxu0 0.0
    %3179 = vmatpush1.msra.mxu0 %v240
    %3180 = vmatprep.subr.mxu0 0.0
    %3181 = vmatpush1.msra.mxu0 %v237
    %3182 = vmatprep.subr.mxu0 0.0
    %3183 = vmatpush1.msra.mxu0 %v234
    %3184 = vmatprep.subr.mxu0 0.0
    %3185 = vmatpush1.msra.mxu0 %v231
    %3186 = vmatprep.subr.mxu0 0.0
    %3187 = vmatpush1.msra.mxu0 %v228
    %3188 = vmatprep.subr.mxu0 0.0
    %3189 = vmatpush1.msra.mxu0 %v225
    %3190 = vmatprep.subr.mxu0 0.0
    %3191 = vmatpush1.msra.mxu0 %v222
    %3192 = vmatprep.subr.mxu0 0.0
    %3193 = vmatpush1.msra.mxu0 %v219
    %3194 = vmatprep.subr.mxu0 0.0
    %3195 = vmatpush1.msra.mxu0 %v216
    %3196 = vmatprep.subr.mxu0 0.0
    %3197 = vmatpush1.msra.mxu0 %v213
    %3198 = vmatprep.subr.mxu0 0.0
    %3199 = vmatpush2.msra.mxu0 0.0
    %3200 = vmatprep.subr.mxu0 0.0
    %3201 = vmatpush2.msra.mxu0 0.0
    %3202 = vmatprep.subr.mxu0 0.0
    %3203 = vmatpush2.msra.mxu0 0.0
    %3204 = vmatprep.subr.mxu0 0.0
    %3205 = vmatpush2.msra.mxu0 0.0
    %3206 = vmatprep.subr.mxu0 0.0
    %3207 = vmatpush2.msra.mxu0 0.0
    %3208 = vmatprep.subr.mxu0 0.0
    %3209 = vmatpush2.msra.mxu0 0.0
    %3210 = vmatprep.subr.mxu0 0.0
    %3211 = vmatpush2.msra.mxu0 0.0
    %3212 = vmatprep.subr.mxu0 0.0
    %3213 = vmatpush2.msra.mxu0 0.0
    %3214 = vmatprep.subr.mxu0 0.0
    %3215 = vmatpush2.msra.mxu0 0.0
    %3216 = vmatprep.subr.mxu0 0.0
    %3217 = vmatpush2.msra.mxu0 0.0
    %3218 = vmatprep.subr.mxu0 0.0
    %3219 = vmatpush2.msra.mxu0 0.0
    %3220 = vmatprep.subr.mxu0 0.0
    %3221 = vmatpush2.msra.mxu0 0.0
    %3222 = vmatprep.subr.mxu0 0.0
    %3223 = vmatpush2.msra.mxu0 0.0
    %3224 = vmatprep.subr.mxu0 0.0
    %3225 = vmatpush2.msra.mxu0 0.0
    %3226 = vmatprep.subr.mxu0 0.0
    %3227 = vmatpush2.msra.mxu0 0.0
    %3228 = vmatprep.subr.mxu0 0.0
    %3229 = vmatpush2.msra.mxu0 0.0
    %3230 = vmatprep.mubr.f32.mxu0 0.0
    %3231 = vmatmul.mubr.f32.gmra.mxu0 %v2953
    %v3232 = vpop.f32.mrf.mxu0
    %v3233 = vadd.f32 %v272, %v3232
    %v3234 = vpop.f32.mrf.mxu0
    %3235 = vdwg.mxu0
    %v3236 = vadd.f32 %v3162, %v2854
    %v3237 = vxor.u32 %v3236, 2147483648
    %v3238 = vmul.f32 %v3237, 1.442695
    %v3239 = vpow.pop %v3238
    %v3240 = vadd.f32 %v3239, 1.0
    %v3241 = vrcp.pop %v3240
    %v3242 = vmul.f32 1.0, %v3241
    %v3243 = vadd.f32 %v3164, %v2856
    %v3244 = vxor.u32 %v3243, 2147483648
    %v3245 = vmul.f32 %v3244, 1.442695
    %v3246 = vpow.pop %v3245
    %v3247 = vadd.f32 %v3246, 1.0
    %v3248 = vrcp.pop %v3247
    %v3249 = vmul.f32 1.0, %v3248
    %v3250 = vadd.f32 %v2925, %v288
    %v3251 = vmul.f32 %v3242, %v3250
    %v3252 = vadd.f32 %v3233, %v3251
    %v3253 = vtanh.pop %v3252
    %v3254 = vsub.f32 1.0, %v3249
    %v3255 = vmul.f32 %v3254, %v3253
    %v3256 = vmul.f32 %v3249, %v2786
    %v3257 = vadd.f32 %v3255, %v3256
    %3258 = vmatprep.subr.mxu0 %v209
    %3259 = vmatpush1.msra.mxu0 %v208
    %3260 = vmatprep.subr.mxu0 %v206
    %3261 = vmatpush1.msra.mxu0 %v205
    %3262 = vmatprep.subr.mxu0 %v203
    %3263 = vmatpush1.msra.mxu0 %v202
    %3264 = vmatprep.subr.mxu0 %v200
    %3265 = vmatpush1.msra.mxu0 %v199
    %3266 = vmatprep.subr.mxu0 %v197
    %3267 = vmatpush1.msra.mxu0 %v196
    %3268 = vmatprep.subr.mxu0 %v194
    %3269 = vmatpush1.msra.mxu0 %v193
    %3270 = vmatprep.subr.mxu0 %v191
    %3271 = vmatpush1.msra.mxu0 %v190
    %3272 = vmatprep.subr.mxu0 %v188
    %3273 = vmatpush1.msra.mxu0 %v187
    %3274 = vmatprep.subr.mxu0 %v185
    %3275 = vmatpush1.msra.mxu0 %v184
    %3276 = vmatprep.subr.mxu0 %v182
    %3277 = vmatpush1.msra.mxu0 %v181
    %3278 = vmatprep.subr.mxu0 %v179
    %3279 = vmatpush1.msra.mxu0 %v178
    %3280 = vmatprep.subr.mxu0 %v176
    %3281 = vmatpush1.msra.mxu0 %v175
    %3282 = vmatprep.subr.mxu0 %v173
    %3283 = vmatpush1.msra.mxu0 %v172
    %3284 = vmatprep.subr.mxu0 %v170
    %3285 = vmatpush1.msra.mxu0 %v169
    %3286 = vmatprep.subr.mxu0 %v167
    %3287 = vmatpush1.msra.mxu0 %v166
    %3288 = vmatprep.subr.mxu0 %v164
    %3289 = vmatpush1.msra.mxu0 %v163
    %3290 = vmatprep.subr.mxu0 0.0
    %3291 = vmatpush2.msra.mxu0 0.0
    %3292 = vmatprep.subr.mxu0 0.0
    %3293 = vmatpush2.msra.mxu0 0.0
    %3294 = vmatprep.subr.mxu0 0.0
    %3295 = vmatpush2.msra.mxu0 0.0
    %3296 = vmatprep.subr.mxu0 0.0
    %3297 = vmatpush2.msra.mxu0 0.0
    %3298 = vmatprep.subr.mxu0 0.0
    %3299 = vmatpush2.msra.mxu0 0.0
    %3300 = vmatprep.subr.mxu0 0.0
    %3301 = vmatpush2.msra.mxu0 0.0
    %3302 = vmatprep.subr.mxu0 0.0
    %3303 = vmatpush2.msra.mxu0 0.0
    %3304 = vmatprep.subr.mxu0 0.0
    %3305 = vmatpush2.msra.mxu0 0.0
    %3306 = vmatprep.subr.mxu0 0.0
    %3307 = vmatpush2.msra.mxu0 0.0
    %3308 = vmatprep.subr.mxu0 0.0
    %3309 = vmatpush2.msra.mxu0 0.0
    %3310 = vmatprep.subr.mxu0 0.0
    %3311 = vmatpush2.msra.mxu0 0.0
    %3312 = vmatprep.subr.mxu0 0.0
    %3313 = vmatpush2.msra.mxu0 0.0
    %3314 = vmatprep.subr.mxu0 0.0
    %3315 = vmatpush2.msra.mxu0 0.0
    %3316 = vmatprep.subr.mxu0 0.0
    %3317 = vmatpush2.msra.mxu0 0.0
    %3318 = vmatprep.subr.mxu0 0.0
    %3319 = vmatpush2.msra.mxu0 0.0
    %3320 = vmatprep.subr.mxu0 0.0
    %3321 = vmatpush2.msra.mxu0 0.0
    %3322 = vmatprep.mubr.f32.mxu0 0.0
    %3323 = vmatmul.mubr.f32.gmra.mxu0 %v3257
    %v3324 = vpop.f32.mrf.mxu0
    %v3325 = vadd.f32 0.0, %v3324
    %v3326 = vpop.f32.mrf.mxu0
    %v3327 = vadd.f32 0.0, %v3326
    %3328 = vdwg.mxu0
    %3329 = vmatprep.subr.mxu0 0.0
    %3330 = vmatpush1.msra.mxu0 %v210
    %3331 = vmatprep.subr.mxu0 0.0
    %3332 = vmatpush1.msra.mxu0 %v207
    %3333 = vmatprep.subr.mxu0 0.0
    %3334 = vmatpush1.msra.mxu0 %v204
    %3335 = vmatprep.subr.mxu0 0.0
    %3336 = vmatpush1.msra.mxu0 %v201
    %3337 = vmatprep.subr.mxu0 0.0
    %3338 = vmatpush1.msra.mxu0 %v198
    %3339 = vmatprep.subr.mxu0 0.0
    %3340 = vmatpush1.msra.mxu0 %v195
    %3341 = vmatprep.subr.mxu0 0.0
    %3342 = vmatpush1.msra.mxu0 %v192
    %3343 = vmatprep.subr.mxu0 0.0
    %3344 = vmatpush1.msra.mxu0 %v189
    %3345 = vmatprep.subr.mxu0 0.0
    %3346 = vmatpush1.msra.mxu0 %v186
    %3347 = vmatprep.subr.mxu0 0.0
    %3348 = vmatpush1.msra.mxu0 %v183
    %3349 = vmatprep.subr.mxu0 0.0
    %3350 = vmatpush1.msra.mxu0 %v180
    %3351 = vmatprep.subr.mxu0 0.0
    %3352 = vmatpush1.msra.mxu0 %v177
    %3353 = vmatprep.subr.mxu0 0.0
    %3354 = vmatpush1.msra.mxu0 %v174
    %3355 = vmatprep.subr.mxu0 0.0
    %3356 = vmatpush1.msra.mxu0 %v171
    %3357 = vmatprep.subr.mxu0 0.0
    %3358 = vmatpush1.msra.mxu0 %v168
    %3359 = vmatprep.subr.mxu0 0.0
    %3360 = vmatpush1.msra.mxu0 %v165
    %3361 = vmatprep.subr.mxu0 0.0
    %3362 = vmatpush2.msra.mxu0 0.0
    %3363 = vmatprep.subr.mxu0 0.0
    %3364 = vmatpush2.msra.mxu0 0.0
    %3365 = vmatprep.subr.mxu0 0.0
    %3366 = vmatpush2.msra.mxu0 0.0
    %3367 = vmatprep.subr.mxu0 0.0
    %3368 = vmatpush2.msra.mxu0 0.0
    %3369 = vmatprep.subr.mxu0 0.0
    %3370 = vmatpush2.msra.mxu0 0.0
    %3371 = vmatprep.subr.mxu0 0.0
    %3372 = vmatpush2.msra.mxu0 0.0
    %3373 = vmatprep.subr.mxu0 0.0
    %3374 = vmatpush2.msra.mxu0 0.0
    %3375 = vmatprep.subr.mxu0 0.0
    %3376 = vmatpush2.msra.mxu0 0.0
    %3377 = vmatprep.subr.mxu0 0.0
    %3378 = vmatpush2.msra.mxu0 0.0
    %3379 = vmatprep.subr.mxu0 0.0
    %3380 = vmatpush2.msra.mxu0 0.0
    %3381 = vmatprep.subr.mxu0 0.0
    %3382 = vmatpush2.msra.mxu0 0.0
    %3383 = vmatprep.subr.mxu0 0.0
    %3384 = vmatpush2.msra.mxu0 0.0
    %3385 = vmatprep.subr.mxu0 0.0
    %3386 = vmatpush2.msra.mxu0 0.0
    %3387 = vmatprep.subr.mxu0 0.0
    %3388 = vmatpush2.msra.mxu0 0.0
    %3389 = vmatprep.subr.mxu0 0.0
    %3390 = vmatpush2.msra.mxu0 0.0
    %3391 = vmatprep.subr.mxu0 0.0
    %3392 = vmatpush2.msra.mxu0 0.0
    %3393 = vmatprep.mubr.f32.mxu0 0.0
    %3394 = vmatmul.mubr.f32.gmra.mxu0 %v3257
    %v3395 = vpop.f32.mrf.mxu0
    %v3396 = vadd.f32 0.0, %v3395
    %v3397 = vpop.f32.mrf.mxu0
    %3398 = vdwg.mxu0
    %3399 = vst [vmem:[#allocation13 + $0x28] sm:$0xff] %v3257
    %v3400 = vld [vmem:[#allocation2 + $0x90] sm:$0xff]
    %v3401 = vld [vmem:[#allocation2 + $0x98] sm:$0xff]
    %v3402 = vld [vmem:[#allocation2 + $0xa0] sm:$0xff]
    %v3403 = vadd.f32 %v3400, %v3021
    %v3404 = vxor.u32 %v3403, 2147483648
    %v3405 = vmul.f32 %v3404, 1.442695
    %v3406 = vpow.pop %v3405
    %v3407 = vadd.f32 %v3406, 1.0
    %v3408 = vrcp.pop %v3407
    %v3409 = vmul.f32 1.0, %v3408
    %v3410 = vadd.f32 %v3401, %v3023
    %v3411 = vxor.u32 %v3410, 2147483648
    %v3412 = vmul.f32 %v3411, 1.442695
    %v3413 = vpow.pop %v3412
    %v3414 = vadd.f32 %v3413, 1.0
    %v3415 = vrcp.pop %v3414
    %v3416 = vmul.f32 1.0, %v3415
    %v3417 = vadd.f32 %v3092, %v281
    %v3418 = vmul.f32 %v3409, %v3417
    %v3419 = vadd.f32 %v3402, %v3418
    %v3420 = vtanh.pop %v3419
    %v3421 = vsub.f32 1.0, %v3416
    %v3422 = vmul.f32 %v3421, %v3420
    %v3423 = vmul.f32 %v3416, %v2953
    %v3424 = vadd.f32 %v3422, %v3423
    %3425 = vmatprep.subr.mxu0 %v161
    %3426 = vmatpush1.msra.mxu0 %v160
    %3427 = vmatprep.subr.mxu0 %v158
    %3428 = vmatpush1.msra.mxu0 %v157
    %3429 = vmatprep.subr.mxu0 %v155
    %3430 = vmatpush1.msra.mxu0 %v154
    %3431 = vmatprep.subr.mxu0 %v152
    %3432 = vmatpush1.msra.mxu0 %v151
    %3433 = vmatprep.subr.mxu0 %v149
    %3434 = vmatpush1.msra.mxu0 %v148
    %3435 = vmatprep.subr.mxu0 %v146
    %3436 = vmatpush1.msra.mxu0 %v145
    %3437 = vmatprep.subr.mxu0 %v143
    %3438 = vmatpush1.msra.mxu0 %v142
    %3439 = vmatprep.subr.mxu0 %v140
    %3440 = vmatpush1.msra.mxu0 %v139
    %3441 = vmatprep.subr.mxu0 %v137
    %3442 = vmatpush1.msra.mxu0 %v136
    %3443 = vmatprep.subr.mxu0 %v134
    %3444 = vmatpush1.msra.mxu0 %v133
    %3445 = vmatprep.subr.mxu0 %v131
    %3446 = vmatpush1.msra.mxu0 %v130
    %3447 = vmatprep.subr.mxu0 %v128
    %3448 = vmatpush1.msra.mxu0 %v127
    %3449 = vmatprep.subr.mxu0 %v125
    %3450 = vmatpush1.msra.mxu0 %v124
    %3451 = vmatprep.subr.mxu0 %v122
    %3452 = vmatpush1.msra.mxu0 %v121
    %3453 = vmatprep.subr.mxu0 %v119
    %3454 = vmatpush1.msra.mxu0 %v118
    %3455 = vmatprep.subr.mxu0 %v116
    %3456 = vmatpush1.msra.mxu0 %v115
    %3457 = vmatprep.subr.mxu0 0.0
    %3458 = vmatpush2.msra.mxu0 0.0
    %3459 = vmatprep.subr.mxu0 0.0
    %3460 = vmatpush2.msra.mxu0 0.0
    %3461 = vmatprep.subr.mxu0 0.0
    %3462 = vmatpush2.msra.mxu0 0.0
    %3463 = vmatprep.subr.mxu0 0.0
    %3464 = vmatpush2.msra.mxu0 0.0
    %3465 = vmatprep.subr.mxu0 0.0
    %3466 = vmatpush2.msra.mxu0 0.0
    %3467 = vmatprep.subr.mxu0 0.0
    %3468 = vmatpush2.msra.mxu0 0.0
    %3469 = vmatprep.subr.mxu0 0.0
    %3470 = vmatpush2.msra.mxu0 0.0
    %3471 = vmatprep.subr.mxu0 0.0
    %3472 = vmatpush2.msra.mxu0 0.0
    %3473 = vmatprep.subr.mxu0 0.0
    %3474 = vmatpush2.msra.mxu0 0.0
    %3475 = vmatprep.subr.mxu0 0.0
    %3476 = vmatpush2.msra.mxu0 0.0
    %3477 = vmatprep.subr.mxu0 0.0
    %3478 = vmatpush2.msra.mxu0 0.0
    %3479 = vmatprep.subr.mxu0 0.0
    %3480 = vmatpush2.msra.mxu0 0.0
    %3481 = vmatprep.subr.mxu0 0.0
    %3482 = vmatpush2.msra.mxu0 0.0
    %3483 = vmatprep.subr.mxu0 0.0
    %3484 = vmatpush2.msra.mxu0 0.0
    %3485 = vmatprep.subr.mxu0 0.0
    %3486 = vmatpush2.msra.mxu0 0.0
    %3487 = vmatprep.subr.mxu0 0.0
    %3488 = vmatpush2.msra.mxu0 0.0
    %3489 = vmatprep.mubr.f32.mxu0 0.0
    %3490 = vmatmul.mubr.f32.gmra.mxu0 %v3424
    %v3491 = vpop.f32.mrf.mxu0
    %v3492 = vadd.f32 0.0, %v3491
    %v3493 = vpop.f32.mrf.mxu0
    %v3494 = vadd.f32 0.0, %v3493
    %3495 = vdwg.mxu0
    %3496 = vmatprep.subr.mxu0 0.0
    %3497 = vmatpush1.msra.mxu0 %v162
    %3498 = vmatprep.subr.mxu0 0.0
    %3499 = vmatpush1.msra.mxu0 %v159
    %3500 = vmatprep.subr.mxu0 0.0
    %3501 = vmatpush1.msra.mxu0 %v156
    %3502 = vmatprep.subr.mxu0 0.0
    %3503 = vmatpush1.msra.mxu0 %v153
    %3504 = vmatprep.subr.mxu0 0.0
    %3505 = vmatpush1.msra.mxu0 %v150
    %3506 = vmatprep.subr.mxu0 0.0
    %3507 = vmatpush1.msra.mxu0 %v147
    %3508 = vmatprep.subr.mxu0 0.0
    %3509 = vmatpush1.msra.mxu0 %v144
    %3510 = vmatprep.subr.mxu0 0.0
    %3511 = vmatpush1.msra.mxu0 %v141
    %3512 = vmatprep.subr.mxu0 0.0
    %3513 = vmatpush1.msra.mxu0 %v138
    %3514 = vmatprep.subr.mxu0 0.0
    %3515 = vmatpush1.msra.mxu0 %v135
    %3516 = vmatprep.subr.mxu0 0.0
    %3517 = vmatpush1.msra.mxu0 %v132
    %3518 = vmatprep.subr.mxu0 0.0
    %3519 = vmatpush1.msra.mxu0 %v129
    %3520 = vmatprep.subr.mxu0 0.0
    %3521 = vmatpush1.msra.mxu0 %v126
    %3522 = vmatprep.subr.mxu0 0.0
    %3523 = vmatpush1.msra.mxu0 %v123
    %3524 = vmatprep.subr.mxu0 0.0
    %3525 = vmatpush1.msra.mxu0 %v120
    %3526 = vmatprep.subr.mxu0 0.0
    %3527 = vmatpush1.msra.mxu0 %v117
    %3528 = vmatprep.subr.mxu0 0.0
    %3529 = vmatpush2.msra.mxu0 0.0
    %3530 = vmatprep.subr.mxu0 0.0
    %3531 = vmatpush2.msra.mxu0 0.0
    %3532 = vmatprep.subr.mxu0 0.0
    %3533 = vmatpush2.msra.mxu0 0.0
    %3534 = vmatprep.subr.mxu0 0.0
    %3535 = vmatpush2.msra.mxu0 0.0
    %3536 = vmatprep.subr.mxu0 0.0
    %3537 = vmatpush2.msra.mxu0 0.0
    %3538 = vmatprep.subr.mxu0 0.0
    %3539 = vmatpush2.msra.mxu0 0.0
    %3540 = vmatprep.subr.mxu0 0.0
    %3541 = vmatpush2.msra.mxu0 0.0
    %3542 = vmatprep.subr.mxu0 0.0
    %3543 = vmatpush2.msra.mxu0 0.0
    %3544 = vmatprep.subr.mxu0 0.0
    %3545 = vmatpush2.msra.mxu0 0.0
    %3546 = vmatprep.subr.mxu0 0.0
    %3547 = vmatpush2.msra.mxu0 0.0
    %3548 = vmatprep.subr.mxu0 0.0
    %3549 = vmatpush2.msra.mxu0 0.0
    %3550 = vmatprep.subr.mxu0 0.0
    %3551 = vmatpush2.msra.mxu0 0.0
    %3552 = vmatprep.subr.mxu0 0.0
    %3553 = vmatpush2.msra.mxu0 0.0
    %3554 = vmatprep.subr.mxu0 0.0
    %3555 = vmatpush2.msra.mxu0 0.0
    %3556 = vmatprep.subr.mxu0 0.0
    %3557 = vmatpush2.msra.mxu0 0.0
    %3558 = vmatprep.subr.mxu0 0.0
    %3559 = vmatpush2.msra.mxu0 0.0
    %3560 = vmatprep.mubr.f32.mxu0 0.0
    %3561 = vmatmul.mubr.f32.gmra.mxu0 %v3424
    %v3562 = vpop.f32.mrf.mxu0
    %v3563 = vadd.f32 0.0, %v3562
    %v3564 = vpop.f32.mrf.mxu0
    %3565 = vdwg.mxu0
    %3566 = vmatprep.subr.mxu0 %v257
    %3567 = vmatpush1.msra.mxu0 %v256
    %3568 = vmatprep.subr.mxu0 %v254
    %3569 = vmatpush1.msra.mxu0 %v253
    %3570 = vmatprep.subr.mxu0 %v251
    %3571 = vmatpush1.msra.mxu0 %v250
    %3572 = vmatprep.subr.mxu0 %v248
    %3573 = vmatpush1.msra.mxu0 %v247
    %3574 = vmatprep.subr.mxu0 %v245
    %3575 = vmatpush1.msra.mxu0 %v244
    %3576 = vmatprep.subr.mxu0 %v242
    %3577 = vmatpush1.msra.mxu0 %v241
    %3578 = vmatprep.subr.mxu0 %v239
    %3579 = vmatpush1.msra.mxu0 %v238
    %3580 = vmatprep.subr.mxu0 %v236
    %3581 = vmatpush1.msra.mxu0 %v235
    %3582 = vmatprep.subr.mxu0 %v233
    %3583 = vmatpush1.msra.mxu0 %v232
    %3584 = vmatprep.subr.mxu0 %v230
    %3585 = vmatpush1.msra.mxu0 %v229
    %3586 = vmatprep.subr.mxu0 %v227
    %3587 = vmatpush1.msra.mxu0 %v226
    %3588 = vmatprep.subr.mxu0 %v224
    %3589 = vmatpush1.msra.mxu0 %v223
    %3590 = vmatprep.subr.mxu0 %v221
    %3591 = vmatpush1.msra.mxu0 %v220
    %3592 = vmatprep.subr.mxu0 %v218
    %3593 = vmatpush1.msra.mxu0 %v217
    %3594 = vmatprep.subr.mxu0 %v215
    %3595 = vmatpush1.msra.mxu0 %v214
    %3596 = vmatprep.subr.mxu0 %v212
    %3597 = vmatpush1.msra.mxu0 %v211
    %3598 = vmatprep.subr.mxu0 0.0
    %3599 = vmatpush2.msra.mxu0 0.0
    %3600 = vmatprep.subr.mxu0 0.0
    %3601 = vmatpush2.msra.mxu0 0.0
    %3602 = vmatprep.subr.mxu0 0.0
    %3603 = vmatpush2.msra.mxu0 0.0
    %3604 = vmatprep.subr.mxu0 0.0
    %3605 = vmatpush2.msra.mxu0 0.0
    %3606 = vmatprep.subr.mxu0 0.0
    %3607 = vmatpush2.msra.mxu0 0.0
    %3608 = vmatprep.subr.mxu0 0.0
    %3609 = vmatpush2.msra.mxu0 0.0
    %3610 = vmatprep.subr.mxu0 0.0
    %3611 = vmatpush2.msra.mxu0 0.0
    %3612 = vmatprep.subr.mxu0 0.0
    %3613 = vmatpush2.msra.mxu0 0.0
    %3614 = vmatprep.subr.mxu0 0.0
    %3615 = vmatpush2.msra.mxu0 0.0
    %3616 = vmatprep.subr.mxu0 0.0
    %3617 = vmatpush2.msra.mxu0 0.0
    %3618 = vmatprep.subr.mxu0 0.0
    %3619 = vmatpush2.msra.mxu0 0.0
    %3620 = vmatprep.subr.mxu0 0.0
    %3621 = vmatpush2.msra.mxu0 0.0
    %3622 = vmatprep.subr.mxu0 0.0
    %3623 = vmatpush2.msra.mxu0 0.0
    %3624 = vmatprep.subr.mxu0 0.0
    %3625 = vmatpush2.msra.mxu0 0.0
    %3626 = vmatprep.subr.mxu0 0.0
    %3627 = vmatpush2.msra.mxu0 0.0
    %3628 = vmatprep.subr.mxu0 0.0
    %3629 = vmatpush2.msra.mxu0 0.0
    %3630 = vmatprep.mubr.f32.mxu0 0.0
    %3631 = vmatmul.mubr.f32.gmra.mxu0 %v3424
    %v3632 = vpop.f32.mrf.mxu0
    %v3633 = vadd.f32 %v264, %v3632
    %v3634 = vpop.f32.mrf.mxu0
    %v3635 = vadd.f32 %v268, %v3634
    %3636 = vdwg.mxu0
    %3637 = vmatprep.subr.mxu0 0.0
    %3638 = vmatpush1.msra.mxu0 %v258
    %3639 = vmatprep.subr.mxu0 0.0
    %3640 = vmatpush1.msra.mxu0 %v255
    %3641 = vmatprep.subr.mxu0 0.0
    %3642 = vmatpush1.msra.mxu0 %v252
    %3643 = vmatprep.subr.mxu0 0.0
    %3644 = vmatpush1.msra.mxu0 %v249
    %3645 = vmatprep.subr.mxu0 0.0
    %3646 = vmatpush1.msra.mxu0 %v246
    %3647 = vmatprep.subr.mxu0 0.0
    %3648 = vmatpush1.msra.mxu0 %v243
    %3649 = vmatprep.subr.mxu0 0.0
    %3650 = vmatpush1.msra.mxu0 %v240
    %3651 = vmatprep.subr.mxu0 0.0
    %3652 = vmatpush1.msra.mxu0 %v237
    %3653 = vmatprep.subr.mxu0 0.0
    %3654 = vmatpush1.msra.mxu0 %v234
    %3655 = vmatprep.subr.mxu0 0.0
    %3656 = vmatpush1.msra.mxu0 %v231
    %3657 = vmatprep.subr.mxu0 0.0
    %3658 = vmatpush1.msra.mxu0 %v228
    %3659 = vmatprep.subr.mxu0 0.0
    %3660 = vmatpush1.msra.mxu0 %v225
    %3661 = vmatprep.subr.mxu0 0.0
    %3662 = vmatpush1.msra.mxu0 %v222
    %3663 = vmatprep.subr.mxu0 0.0
    %3664 = vmatpush1.msra.mxu0 %v219
    %3665 = vmatprep.subr.mxu0 0.0
    %3666 = vmatpush1.msra.mxu0 %v216
    %3667 = vmatprep.subr.mxu0 0.0
    %3668 = vmatpush1.msra.mxu0 %v213
    %3669 = vmatprep.subr.mxu0 0.0
    %3670 = vmatpush2.msra.mxu0 0.0
    %3671 = vmatprep.subr.mxu0 0.0
    %3672 = vmatpush2.msra.mxu0 0.0
    %3673 = vmatprep.subr.mxu0 0.0
    %3674 = vmatpush2.msra.mxu0 0.0
    %3675 = vmatprep.subr.mxu0 0.0
    %3676 = vmatpush2.msra.mxu0 0.0
    %3677 = vmatprep.subr.mxu0 0.0
    %3678 = vmatpush2.msra.mxu0 0.0
    %3679 = vmatprep.subr.mxu0 0.0
    %3680 = vmatpush2.msra.mxu0 0.0
    %3681 = vmatprep.subr.mxu0 0.0
    %3682 = vmatpush2.msra.mxu0 0.0
    %3683 = vmatprep.subr.mxu0 0.0
    %3684 = vmatpush2.msra.mxu0 0.0
    %3685 = vmatprep.subr.mxu0 0.0
    %3686 = vmatpush2.msra.mxu0 0.0
    %3687 = vmatprep.subr.mxu0 0.0
    %3688 = vmatpush2.msra.mxu0 0.0
    %3689 = vmatprep.subr.mxu0 0.0
    %3690 = vmatpush2.msra.mxu0 0.0
    %3691 = vmatprep.subr.mxu0 0.0
    %3692 = vmatpush2.msra.mxu0 0.0
    %3693 = vmatprep.subr.mxu0 0.0
    %3694 = vmatpush2.msra.mxu0 0.0
    %3695 = vmatprep.subr.mxu0 0.0
    %3696 = vmatpush2.msra.mxu0 0.0
    %3697 = vmatprep.subr.mxu0 0.0
    %3698 = vmatpush2.msra.mxu0 0.0
    %3699 = vmatprep.subr.mxu0 0.0
    %3700 = vmatpush2.msra.mxu0 0.0
    %3701 = vmatprep.mubr.f32.mxu0 0.0
    %3702 = vmatmul.mubr.f32.gmra.mxu0 %v3424
    %v3703 = vpop.f32.mrf.mxu0
    %v3704 = vadd.f32 %v272, %v3703
    %v3705 = vpop.f32.mrf.mxu0
    %3706 = vdwg.mxu0
    %v3707 = vadd.f32 %v3633, %v3325
    %v3708 = vxor.u32 %v3707, 2147483648
    %v3709 = vmul.f32 %v3708, 1.442695
    %v3710 = vpow.pop %v3709
    %v3711 = vadd.f32 %v3710, 1.0
    %v3712 = vrcp.pop %v3711
    %v3713 = vmul.f32 1.0, %v3712
    %v3714 = vadd.f32 %v3635, %v3327
    %v3715 = vxor.u32 %v3714, 2147483648
    %v3716 = vmul.f32 %v3715, 1.442695
    %v3717 = vpow.pop %v3716
    %v3718 = vadd.f32 %v3717, 1.0
    %v3719 = vrcp.pop %v3718
    %v3720 = vmul.f32 1.0, %v3719
    %v3721 = vadd.f32 %v3396, %v288
    %v3722 = vmul.f32 %v3713, %v3721
    %v3723 = vadd.f32 %v3704, %v3722
    %v3724 = vtanh.pop %v3723
    %v3725 = vsub.f32 1.0, %v3720
    %v3726 = vmul.f32 %v3725, %v3724
    %v3727 = vmul.f32 %v3720, %v3257
    %v3728 = vadd.f32 %v3726, %v3727
    %3729 = vmatprep.subr.mxu0 %v209
    %3730 = vmatpush1.msra.mxu0 %v208
    %3731 = vmatprep.subr.mxu0 %v206
    %3732 = vmatpush1.msra.mxu0 %v205
    %3733 = vmatprep.subr.mxu0 %v203
    %3734 = vmatpush1.msra.mxu0 %v202
    %3735 = vmatprep.subr.mxu0 %v200
    %3736 = vmatpush1.msra.mxu0 %v199
    %3737 = vmatprep.subr.mxu0 %v197
    %3738 = vmatpush1.msra.mxu0 %v196
    %3739 = vmatprep.subr.mxu0 %v194
    %3740 = vmatpush1.msra.mxu0 %v193
    %3741 = vmatprep.subr.mxu0 %v191
    %3742 = vmatpush1.msra.mxu0 %v190
    %3743 = vmatprep.subr.mxu0 %v188
    %3744 = vmatpush1.msra.mxu0 %v187
    %3745 = vmatprep.subr.mxu0 %v185
    %3746 = vmatpush1.msra.mxu0 %v184
    %3747 = vmatprep.subr.mxu0 %v182
    %3748 = vmatpush1.msra.mxu0 %v181
    %3749 = vmatprep.subr.mxu0 %v179
    %3750 = vmatpush1.msra.mxu0 %v178
    %3751 = vmatprep.subr.mxu0 %v176
    %3752 = vmatpush1.msra.mxu0 %v175
    %3753 = vmatprep.subr.mxu0 %v173
    %3754 = vmatpush1.msra.mxu0 %v172
    %3755 = vmatprep.subr.mxu0 %v170
    %3756 = vmatpush1.msra.mxu0 %v169
    %3757 = vmatprep.subr.mxu0 %v167
    %3758 = vmatpush1.msra.mxu0 %v166
    %3759 = vmatprep.subr.mxu0 %v164
    %3760 = vmatpush1.msra.mxu0 %v163
    %3761 = vmatprep.subr.mxu0 0.0
    %3762 = vmatpush2.msra.mxu0 0.0
    %3763 = vmatprep.subr.mxu0 0.0
    %3764 = vmatpush2.msra.mxu0 0.0
    %3765 = vmatprep.subr.mxu0 0.0
    %3766 = vmatpush2.msra.mxu0 0.0
    %3767 = vmatprep.subr.mxu0 0.0
    %3768 = vmatpush2.msra.mxu0 0.0
    %3769 = vmatprep.subr.mxu0 0.0
    %3770 = vmatpush2.msra.mxu0 0.0
    %3771 = vmatprep.subr.mxu0 0.0
    %3772 = vmatpush2.msra.mxu0 0.0
    %3773 = vmatprep.subr.mxu0 0.0
    %3774 = vmatpush2.msra.mxu0 0.0
    %3775 = vmatprep.subr.mxu0 0.0
    %3776 = vmatpush2.msra.mxu0 0.0
    %3777 = vmatprep.subr.mxu0 0.0
    %3778 = vmatpush2.msra.mxu0 0.0
    %3779 = vmatprep.subr.mxu0 0.0
    %3780 = vmatpush2.msra.mxu0 0.0
    %3781 = vmatprep.subr.mxu0 0.0
    %3782 = vmatpush2.msra.mxu0 0.0
    %3783 = vmatprep.subr.mxu0 0.0
    %3784 = vmatpush2.msra.mxu0 0.0
    %3785 = vmatprep.subr.mxu0 0.0
    %3786 = vmatpush2.msra.mxu0 0.0
    %3787 = vmatprep.subr.mxu0 0.0
    %3788 = vmatpush2.msra.mxu0 0.0
    %3789 = vmatprep.subr.mxu0 0.0
    %3790 = vmatpush2.msra.mxu0 0.0
    %3791 = vmatprep.subr.mxu0 0.0
    %3792 = vmatpush2.msra.mxu0 0.0
    %3793 = vmatprep.mubr.f32.mxu0 0.0
    %3794 = vmatmul.mubr.f32.gmra.mxu0 %v3728
    %v3795 = vpop.f32.mrf.mxu0
    %v3796 = vadd.f32 0.0, %v3795
    %v3797 = vpop.f32.mrf.mxu0
    %v3798 = vadd.f32 0.0, %v3797
    %3799 = vdwg.mxu0
    %3800 = vmatprep.subr.mxu0 0.0
    %3801 = vmatpush1.msra.mxu0 %v210
    %3802 = vmatprep.subr.mxu0 0.0
    %3803 = vmatpush1.msra.mxu0 %v207
    %3804 = vmatprep.subr.mxu0 0.0
    %3805 = vmatpush1.msra.mxu0 %v204
    %3806 = vmatprep.subr.mxu0 0.0
    %3807 = vmatpush1.msra.mxu0 %v201
    %3808 = vmatprep.subr.mxu0 0.0
    %3809 = vmatpush1.msra.mxu0 %v198
    %3810 = vmatprep.subr.mxu0 0.0
    %3811 = vmatpush1.msra.mxu0 %v195
    %3812 = vmatprep.subr.mxu0 0.0
    %3813 = vmatpush1.msra.mxu0 %v192
    %3814 = vmatprep.subr.mxu0 0.0
    %3815 = vmatpush1.msra.mxu0 %v189
    %3816 = vmatprep.subr.mxu0 0.0
    %3817 = vmatpush1.msra.mxu0 %v186
    %3818 = vmatprep.subr.mxu0 0.0
    %3819 = vmatpush1.msra.mxu0 %v183
    %3820 = vmatprep.subr.mxu0 0.0
    %3821 = vmatpush1.msra.mxu0 %v180
    %3822 = vmatprep.subr.mxu0 0.0
    %3823 = vmatpush1.msra.mxu0 %v177
    %3824 = vmatprep.subr.mxu0 0.0
    %3825 = vmatpush1.msra.mxu0 %v174
    %3826 = vmatprep.subr.mxu0 0.0
    %3827 = vmatpush1.msra.mxu0 %v171
    %3828 = vmatprep.subr.mxu0 0.0
    %3829 = vmatpush1.msra.mxu0 %v168
    %3830 = vmatprep.subr.mxu0 0.0
    %3831 = vmatpush1.msra.mxu0 %v165
    %3832 = vmatprep.subr.mxu0 0.0
    %3833 = vmatpush2.msra.mxu0 0.0
    %3834 = vmatprep.subr.mxu0 0.0
    %3835 = vmatpush2.msra.mxu0 0.0
    %3836 = vmatprep.subr.mxu0 0.0
    %3837 = vmatpush2.msra.mxu0 0.0
    %3838 = vmatprep.subr.mxu0 0.0
    %3839 = vmatpush2.msra.mxu0 0.0
    %3840 = vmatprep.subr.mxu0 0.0
    %3841 = vmatpush2.msra.mxu0 0.0
    %3842 = vmatprep.subr.mxu0 0.0
    %3843 = vmatpush2.msra.mxu0 0.0
    %3844 = vmatprep.subr.mxu0 0.0
    %3845 = vmatpush2.msra.mxu0 0.0
    %3846 = vmatprep.subr.mxu0 0.0
    %3847 = vmatpush2.msra.mxu0 0.0
    %3848 = vmatprep.subr.mxu0 0.0
    %3849 = vmatpush2.msra.mxu0 0.0
    %3850 = vmatprep.subr.mxu0 0.0
    %3851 = vmatpush2.msra.mxu0 0.0
    %3852 = vmatprep.subr.mxu0 0.0
    %3853 = vmatpush2.msra.mxu0 0.0
    %3854 = vmatprep.subr.mxu0 0.0
    %3855 = vmatpush2.msra.mxu0 0.0
    %3856 = vmatprep.subr.mxu0 0.0
    %3857 = vmatpush2.msra.mxu0 0.0
    %3858 = vmatprep.subr.mxu0 0.0
    %3859 = vmatpush2.msra.mxu0 0.0
    %3860 = vmatprep.subr.mxu0 0.0
    %3861 = vmatpush2.msra.mxu0 0.0
    %3862 = vmatprep.subr.mxu0 0.0
    %3863 = vmatpush2.msra.mxu0 0.0
    %3864 = vmatprep.mubr.f32.mxu0 0.0
    %3865 = vmatmul.mubr.f32.gmra.mxu0 %v3728
    %v3866 = vpop.f32.mrf.mxu0
    %v3867 = vadd.f32 0.0, %v3866
    %v3868 = vpop.f32.mrf.mxu0
    %3869 = vdwg.mxu0
    %3870 = vst [vmem:[#allocation13 + $0x30] sm:$0xff] %v3728
    %v3871 = vld [vmem:[#allocation2 + $0xa8] sm:$0xff]
    %v3872 = vld [vmem:[#allocation2 + $0xb0] sm:$0xff]
    %v3873 = vld [vmem:[#allocation2 + $0xb8] sm:$0xff]
    %v3874 = vadd.f32 %v3871, %v3492
    %v3875 = vxor.u32 %v3874, 2147483648
    %v3876 = vmul.f32 %v3875, 1.442695
    %v3877 = vpow.pop %v3876
    %v3878 = vadd.f32 %v3877, 1.0
    %v3879 = vrcp.pop %v3878
    %v3880 = vmul.f32 1.0, %v3879
    %v3881 = vadd.f32 %v3872, %v3494
    %v3882 = vxor.u32 %v3881, 2147483648
    %v3883 = vmul.f32 %v3882, 1.442695
    %v3884 = vpow.pop %v3883
    %v3885 = vadd.f32 %v3884, 1.0
    %v3886 = vrcp.pop %v3885
    %v3887 = vmul.f32 1.0, %v3886
    %v3888 = vadd.f32 %v3563, %v281
    %v3889 = vmul.f32 %v3880, %v3888
    %v3890 = vadd.f32 %v3873, %v3889
    %v3891 = vtanh.pop %v3890
    %v3892 = vsub.f32 1.0, %v3887
    %v3893 = vmul.f32 %v3892, %v3891
    %v3894 = vmul.f32 %v3887, %v3424
    %v3895 = vadd.f32 %v3893, %v3894
    %3896 = vmatprep.subr.mxu0 %v257
    %3897 = vmatpush1.msra.mxu0 %v256
    %3898 = vmatprep.subr.mxu0 %v254
    %3899 = vmatpush1.msra.mxu0 %v253
    %3900 = vmatprep.subr.mxu0 %v251
    %3901 = vmatpush1.msra.mxu0 %v250
    %3902 = vmatprep.subr.mxu0 %v248
    %3903 = vmatpush1.msra.mxu0 %v247
    %3904 = vmatprep.subr.mxu0 %v245
    %3905 = vmatpush1.msra.mxu0 %v244
    %3906 = vmatprep.subr.mxu0 %v242
    %3907 = vmatpush1.msra.mxu0 %v241
    %3908 = vmatprep.subr.mxu0 %v239
    %3909 = vmatpush1.msra.mxu0 %v238
    %3910 = vmatprep.subr.mxu0 %v236
    %3911 = vmatpush1.msra.mxu0 %v235
    %3912 = vmatprep.subr.mxu0 %v233
    %3913 = vmatpush1.msra.mxu0 %v232
    %3914 = vmatprep.subr.mxu0 %v230
    %3915 = vmatpush1.msra.mxu0 %v229
    %3916 = vmatprep.subr.mxu0 %v227
    %3917 = vmatpush1.msra.mxu0 %v226
    %3918 = vmatprep.subr.mxu0 %v224
    %3919 = vmatpush1.msra.mxu0 %v223
    %3920 = vmatprep.subr.mxu0 %v221
    %3921 = vmatpush1.msra.mxu0 %v220
    %3922 = vmatprep.subr.mxu0 %v218
    %3923 = vmatpush1.msra.mxu0 %v217
    %3924 = vmatprep.subr.mxu0 %v215
    %3925 = vmatpush1.msra.mxu0 %v214
    %3926 = vmatprep.subr.mxu0 %v212
    %3927 = vmatpush1.msra.mxu0 %v211
    %3928 = vmatprep.subr.mxu0 0.0
    %3929 = vmatpush2.msra.mxu0 0.0
    %3930 = vmatprep.subr.mxu0 0.0
    %3931 = vmatpush2.msra.mxu0 0.0
    %3932 = vmatprep.subr.mxu0 0.0
    %3933 = vmatpush2.msra.mxu0 0.0
    %3934 = vmatprep.subr.mxu0 0.0
    %3935 = vmatpush2.msra.mxu0 0.0
    %3936 = vmatprep.subr.mxu0 0.0
    %3937 = vmatpush2.msra.mxu0 0.0
    %3938 = vmatprep.subr.mxu0 0.0
    %3939 = vmatpush2.msra.mxu0 0.0
    %3940 = vmatprep.subr.mxu0 0.0
    %3941 = vmatpush2.msra.mxu0 0.0
    %3942 = vmatprep.subr.mxu0 0.0
    %3943 = vmatpush2.msra.mxu0 0.0
    %3944 = vmatprep.subr.mxu0 0.0
    %3945 = vmatpush2.msra.mxu0 0.0
    %3946 = vmatprep.subr.mxu0 0.0
    %3947 = vmatpush2.msra.mxu0 0.0
    %3948 = vmatprep.subr.mxu0 0.0
    %3949 = vmatpush2.msra.mxu0 0.0
    %3950 = vmatprep.subr.mxu0 0.0
    %3951 = vmatpush2.msra.mxu0 0.0
    %3952 = vmatprep.subr.mxu0 0.0
    %3953 = vmatpush2.msra.mxu0 0.0
    %3954 = vmatprep.subr.mxu0 0.0
    %3955 = vmatpush2.msra.mxu0 0.0
    %3956 = vmatprep.subr.mxu0 0.0
    %3957 = vmatpush2.msra.mxu0 0.0
    %3958 = vmatprep.subr.mxu0 0.0
    %3959 = vmatpush2.msra.mxu0 0.0
    %3960 = vmatprep.mubr.f32.mxu0 0.0
    %3961 = vmatmul.mubr.f32.gmra.mxu0 %v3895
    %v3962 = vpop.f32.mrf.mxu0
    %v3963 = vadd.f32 %v264, %v3962
    %v3964 = vpop.f32.mrf.mxu0
    %v3965 = vadd.f32 %v268, %v3964
    %3966 = vdwg.mxu0
    %3967 = vmatprep.subr.mxu0 0.0
    %3968 = vmatpush1.msra.mxu0 %v258
    %3969 = vmatprep.subr.mxu0 0.0
    %3970 = vmatpush1.msra.mxu0 %v255
    %3971 = vmatprep.subr.mxu0 0.0
    %3972 = vmatpush1.msra.mxu0 %v252
    %3973 = vmatprep.subr.mxu0 0.0
    %3974 = vmatpush1.msra.mxu0 %v249
    %3975 = vmatprep.subr.mxu0 0.0
    %3976 = vmatpush1.msra.mxu0 %v246
    %3977 = vmatprep.subr.mxu0 0.0
    %3978 = vmatpush1.msra.mxu0 %v243
    %3979 = vmatprep.subr.mxu0 0.0
    %3980 = vmatpush1.msra.mxu0 %v240
    %3981 = vmatprep.subr.mxu0 0.0
    %3982 = vmatpush1.msra.mxu0 %v237
    %3983 = vmatprep.subr.mxu0 0.0
    %3984 = vmatpush1.msra.mxu0 %v234
    %3985 = vmatprep.subr.mxu0 0.0
    %3986 = vmatpush1.msra.mxu0 %v231
    %3987 = vmatprep.subr.mxu0 0.0
    %3988 = vmatpush1.msra.mxu0 %v228
    %3989 = vmatprep.subr.mxu0 0.0
    %3990 = vmatpush1.msra.mxu0 %v225
    %3991 = vmatprep.subr.mxu0 0.0
    %3992 = vmatpush1.msra.mxu0 %v222
    %3993 = vmatprep.subr.mxu0 0.0
    %3994 = vmatpush1.msra.mxu0 %v219
    %3995 = vmatprep.subr.mxu0 0.0
    %3996 = vmatpush1.msra.mxu0 %v216
    %3997 = vmatprep.subr.mxu0 0.0
    %3998 = vmatpush1.msra.mxu0 %v213
    %3999 = vmatprep.subr.mxu0 0.0
    %4000 = vmatpush2.msra.mxu0 0.0
    %4001 = vmatprep.subr.mxu0 0.0
    %4002 = vmatpush2.msra.mxu0 0.0
    %4003 = vmatprep.subr.mxu0 0.0
    %4004 = vmatpush2.msra.mxu0 0.0
    %4005 = vmatprep.subr.mxu0 0.0
    %4006 = vmatpush2.msra.mxu0 0.0
    %4007 = vmatprep.subr.mxu0 0.0
    %4008 = vmatpush2.msra.mxu0 0.0
    %4009 = vmatprep.subr.mxu0 0.0
    %4010 = vmatpush2.msra.mxu0 0.0
    %4011 = vmatprep.subr.mxu0 0.0
    %4012 = vmatpush2.msra.mxu0 0.0
    %4013 = vmatprep.subr.mxu0 0.0
    %4014 = vmatpush2.msra.mxu0 0.0
    %4015 = vmatprep.subr.mxu0 0.0
    %4016 = vmatpush2.msra.mxu0 0.0
    %4017 = vmatprep.subr.mxu0 0.0
    %4018 = vmatpush2.msra.mxu0 0.0
    %4019 = vmatprep.subr.mxu0 0.0
    %4020 = vmatpush2.msra.mxu0 0.0
    %4021 = vmatprep.subr.mxu0 0.0
    %4022 = vmatpush2.msra.mxu0 0.0
    %4023 = vmatprep.subr.mxu0 0.0
    %4024 = vmatpush2.msra.mxu0 0.0
    %4025 = vmatprep.subr.mxu0 0.0
    %4026 = vmatpush2.msra.mxu0 0.0
    %4027 = vmatprep.subr.mxu0 0.0
    %4028 = vmatpush2.msra.mxu0 0.0
    %4029 = vmatprep.subr.mxu0 0.0
    %4030 = vmatpush2.msra.mxu0 0.0
    %4031 = vmatprep.mubr.f32.mxu0 0.0
    %4032 = vmatmul.mubr.f32.gmra.mxu0 %v3895
    %v4033 = vpop.f32.mrf.mxu0
    %v4034 = vadd.f32 %v272, %v4033
    %v4035 = vpop.f32.mrf.mxu0
    %4036 = vdwg.mxu0
    %v4037 = vadd.f32 %v3963, %v3796
    %v4038 = vxor.u32 %v4037, 2147483648
    %v4039 = vmul.f32 %v4038, 1.442695
    %v4040 = vpow.pop %v4039
    %v4041 = vadd.f32 %v4040, 1.0
    %v4042 = vrcp.pop %v4041
    %v4043 = vmul.f32 1.0, %v4042
    %v4044 = vadd.f32 %v3965, %v3798
    %v4045 = vxor.u32 %v4044, 2147483648
    %v4046 = vmul.f32 %v4045, 1.442695
    %v4047 = vpow.pop %v4046
    %v4048 = vadd.f32 %v4047, 1.0
    %v4049 = vrcp.pop %v4048
    %v4050 = vmul.f32 1.0, %v4049
    %v4051 = vadd.f32 %v3867, %v288
    %v4052 = vmul.f32 %v4043, %v4051
    %v4053 = vadd.f32 %v4034, %v4052
    %v4054 = vtanh.pop %v4053
    %v4055 = vsub.f32 1.0, %v4050
    %v4056 = vmul.f32 %v4055, %v4054
    %v4057 = vmul.f32 %v4050, %v3728
    %v4058 = vadd.f32 %v4056, %v4057
    %4059 = vst [vmem:[#allocation13 + $0x38] sm:$0xff] %v4058
    %4060 = vst [vmem:[#allocation14] sm:$0xff] %v3895
    %4061 = vst [vmem:[#allocation16] sm:$0xff] %v4058
    // Predicated region
    $region62: #{tpu_custom_call.1} parent=1 // pred_check
      _
    $region63: #{tpu_custom_call.1} parent=1 // pred_check_branch
      %4063 = sbr.rel (0) target = $region65
    $region64: #{tpu_custom_call.1} parent=1 // pred_region
      %s4065 = ssub.s32 1024, 1024
      %4066 = vsyncadd [#allocation4], %s4065
      %s4067 = sshll.u32 [#allocation13], 4
      %s4068 = int_to_ptr.vmem [resolvable:$true] %s4067
      %4073 = dma.vmem_to_hbm [thread:$0]  %s4068, 1024, %s9, [#allocation4], 128, 128, 8
    $region65: #{tpu_custom_call.1} parent=1 // pred_fallthru
      _
    // Predicated region
    $region66: #{tpu_custom_call.1} parent=1 // pred_check
      _
    $region67: #{tpu_custom_call.1} parent=1 // pred_check_branch
      %4075 = sbr.rel (0) target = $region69
    $region68: #{tpu_custom_call.1} parent=1 // pred_region
      %s4077 = ssub.s32 128, 128
      %4078 = vsyncadd [#allocation15], %s4077
      %s4080 = sshll.u32 [#allocation14], 4
      %s4081 = int_to_ptr.vmem [resolvable:$true] %s4080
      %4083 = dma.vmem_to_hbm [thread:$0]  %s4081, 128, %s10, [#allocation15]
    $region69: #{tpu_custom_call.1} parent=1 // pred_fallthru
      _
    // Predicated region
    $region70: #{tpu_custom_call.1} parent=1 // pred_check
      _
    $region71: #{tpu_custom_call.1} parent=1 // pred_check_branch
      %4085 = sbr.rel (0) target = $region73
    $region72: #{tpu_custom_call.1} parent=1 // pred_region
      %s4087 = ssub.s32 128, 128
      %4088 = vsyncadd [#allocation15], %s4087
      %s4090 = sshll.u32 [#allocation16], 4
      %s4091 = int_to_ptr.vmem [resolvable:$true] %s4090
      %4093 = dma.vmem_to_hbm [thread:$0]  %s4091, 128, %s11, [#allocation15]
    $region73: #{tpu_custom_call.1} parent=1 // pred_fallthru
      _
    // Predicated region
    $region74: #{tpu_custom_call.1} parent=1 // pred_check
      _
    $region75: #{tpu_custom_call.1} parent=1 // pred_check_branch
      %4095 = sbr.rel (0) target = $region77
    $region76: #{tpu_custom_call.1} parent=1 // pred_region
      %4096 = dma.done [#allocation4], 1024
    $region77: #{tpu_custom_call.1} parent=1 // pred_fallthru
      _
    // Predicated region
    $region78: #{tpu_custom_call.1} parent=1 // pred_check
      _
    $region79: #{tpu_custom_call.1} parent=1 // pred_check_branch
      %4098 = sbr.rel (0) target = $region81
    $region80: #{tpu_custom_call.1} parent=1 // pred_region
      %4099 = dma.done [#allocation15], 128
    $region81: #{tpu_custom_call.1} parent=1 // pred_fallthru
      _
    // Predicated region
    $region82: #{tpu_custom_call.1} parent=1 // pred_check
      _
    $region83: #{tpu_custom_call.1} parent=1 // pred_check_branch
      %4101 = sbr.rel (0) target = $region85
    $region84: #{tpu_custom_call.1} parent=1 // pred_region
      %4102 = dma.done [#allocation15], 128
    $region85: #{tpu_custom_call.1} parent=1 // pred_fallthru
      _
    %4103 = vsyncpa [#allocation3], 1
    %4104 = vsyncpa [#allocation6], 1
    %4105 = vsyncpa [#allocation9], 1
    %4106 = vsyncpa [#allocation12], 1
    %4107 = vsyncpa [#allocation4], 1
    %4108 = vsyncpa [#allocation15], 1

</llo_original>
